<compile_context>
chip_gen: v7x
topology: tpu7x:2x2x1
jax: 0.10.0
libtpu: 0.0.40
codegen_flags: <defaults>
</compile_context>

<pallas_src>
import functools
import math

import jax
import jax.numpy as jnp
from jax.experimental import pallas as pl
from jax.experimental.pallas import tpu as pltpu  # noqa: F401  (TPU backend assumed)


# ----------------------------------------------------------------------------
# Fused decoder-layer kernel (single invocation, everything resident in VMEM)
# ----------------------------------------------------------------------------
def _make_kernel(*, B, Lq, Lm, Lc, E, F, H, hd, has_qp, has_pos, has_clip):
    scale = 1.0 / math.sqrt(hd)
    f32 = jnp.float32

    def layernorm(x, g, b):
        mu = jnp.mean(x, axis=-1, keepdims=True)
        xc = x - mu
        var = jnp.mean(xc * xc, axis=-1, keepdims=True)
        return xc * jax.lax.rsqrt(var + 1e-5) * g + b

    def mh_attention(q, k, v, Lkv):
        """q:(B*Lq,E) k,v:(B*Lkv,E), already projected (+bias). Returns (B*Lq,E)."""
        q3 = q.reshape(B, Lq, E)
        k3 = k.reshape(B, Lkv, E)
        v3 = v.reshape(B, Lkv, E)
        outs = []
        for h in range(H):                       # static unroll, H small
            lo, hi = h * hd, (h + 1) * hd
            s = jnp.einsum('bqd,bkd->bqk', q3[:, :, lo:hi] * scale, k3[:, :, lo:hi],
                           preferred_element_type=f32)
            s = s - jnp.max(s, axis=-1, keepdims=True)
            p = jnp.exp(s)
            p = p / jnp.sum(p, axis=-1, keepdims=True)
            outs.append(jnp.einsum('bqk,bkd->bqd', p, v3[:, :, lo:hi],
                                   preferred_element_type=f32))
        return jnp.concatenate(outs, axis=-1).reshape(B * Lq, E)

    def kernel(*refs):
        it = iter(refs)
        tgt_ref = next(it)
        mem_ref = next(it)
        qp_ref = next(it) if has_qp else None
        pos_ref = next(it) if has_pos else None
        clip_ref = next(it) if has_clip else None
        w_sa_ref = next(it)
        b_sa_ref = next(it)
        w_ca_ref = next(it)
        b_ca_ref = next(it)
        ff1_ref = next(it)
        ff2_ref = next(it)
        ln_ref = next(it)
        o_ref = next(it)

        x = tgt_ref[...].astype(f32)             # (B*Lq, E)
        mem = mem_ref[...].astype(f32)           # (B*Lm, E)
        w_sa = w_sa_ref[...]                     # (E, 4E)  [Wq^T|Wk^T|Wv^T|Wo^T]
        b_sa = b_sa_ref[...]                     # (1, 4E)  [bq|bk|bv|bo]
        w_ca = w_ca_ref[...]                     # (E, 4E)
        b_ca = b_ca_ref[...]                     # (1, 4E)
        ff1 = ff1_ref[...]                       # (E+1, F) rows 0..E-1 = W1^T, row E = b1
        ff2 = ff2_ref[...]                       # (F+1, E) rows 0..F-1 = W2^T, row F = b2
        ln = ln_ref[...]                         # (6, E)   [g1,b1,g2,b2,g3,b3]
        qp = qp_ref[...].astype(f32) if has_qp else None

        # ---- self attention + residual + norm1 --------------------------------
        qk_in = x + qp if has_qp else x
        qk = jnp.dot(qk_in, w_sa[:, 0:2 * E], preferred_element_type=f32) + b_sa[:, 0:2 * E]
        v = jnp.dot(x, w_sa[:, 2 * E:3 * E], preferred_element_type=f32) + b_sa[:, 2 * E:3 * E]
        attn = mh_attention(qk[:, 0:E], qk[:, E:2 * E], v, Lq)
        sa = jnp.dot(attn, w_sa[:, 3 * E:4 * E], preferred_element_type=f32) + b_sa[:, 3 * E:4 * E]
        x1 = layernorm(x + sa, ln[0:1, :], ln[1:2, :])

        # ---- cross attention over memory (Q projected once, reused for clip) --
        qc_in = x1 + qp if has_qp else x1
        qc = jnp.dot(qc_in, w_ca[:, 0:E], preferred_element_type=f32) + b_ca[:, 0:E]
        if has_pos:
            k_in = mem + pos_ref[...].astype(f32)
            km = jnp.dot(k_in, w_ca[:, E:2 * E], preferred_element_type=f32) + b_ca[:, E:2 * E]
            vm = jnp.dot(mem, w_ca[:, 2 * E:3 * E], preferred_element_type=f32) + b_ca[:, 2 * E:3 * E]
        else:
            kvm = jnp.dot(mem, w_ca[:, E:3 * E], preferred_element_type=f32) + b_ca[:, E:3 * E]
            km, vm = kvm[:, 0:E], kvm[:, E:2 * E]
        attn_m = mh_attention(qc, km, vm, Lm)
        ca_m = jnp.dot(attn_m, w_ca[:, 3 * E:4 * E], preferred_element_type=f32) + b_ca[:, 3 * E:4 * E]
        t2 = layernorm(x1 + ca_m, ln[2:3, :], ln[3:4, :])

        if has_clip:
            clip = clip_ref[...].astype(f32)     # (B*Lc, E)
            kv = jnp.dot(clip, w_ca[:, E:3 * E], preferred_element_type=f32) + b_ca[:, E:3 * E]
            attn_c = mh_attention(qc, kv[:, 0:E], kv[:, E:2 * E], Lc)
            ca_c = jnp.dot(attn_c, w_ca[:, 3 * E:4 * E], preferred_element_type=f32) + b_ca[:, 3 * E:4 * E]
            t3 = layernorm(x1 + ca_c, ln[2:3, :], ln[3:4, :])
            x2 = t2 + t3
        else:
            x2 = t2

        # ---- feed-forward + residual + norm3 -----------------------------------
        h = jnp.dot(x2, ff1[0:E, :], preferred_element_type=f32) + ff1[E:E + 1, :]
        h = jnp.maximum(h, 0.0)                  # relu
        ff = jnp.dot(h, ff2[0:F, :], preferred_element_type=f32) + ff2[F:F + 1, :]
        o_ref[...] = layernorm(x2 + ff, ln[4:5, :], ln[5:6, :]).astype(o_ref.dtype)

    return kernel


# ----------------------------------------------------------------------------
# One-time, host-side weight packing (call once at parameter-load time,
# NOT inside the jitted per-call forward path).
# ----------------------------------------------------------------------------
def prepare_params(p):
    E = p['sa_wo'].shape[0]

    def pack_attn(prefix):
        w = jnp.concatenate([p[prefix + '_wq'].T, p[prefix + '_wk'].T,
                             p[prefix + '_wv'].T, p[prefix + '_wo'].T], axis=1)   # (E, 4E)
        b = jnp.concatenate([p[prefix + '_bq'], p[prefix + '_bk'],
                             p[prefix + '_bv'], p[prefix + '_bo']]).reshape(1, 4 * E)
        return w.astype(jnp.float32), b.astype(jnp.float32)

    w_sa, b_sa = pack_attn('sa')
    w_ca, b_ca = pack_attn('ca')
    ff1 = jnp.concatenate([p['ff_w1'].T, p['ff_b1'].reshape(1, -1)], axis=0)      # (E+1, F)
    ff2 = jnp.concatenate([p['ff_w2'].T, p['ff_b2'].reshape(1, -1)], axis=0)      # (F+1, E)
    ln = jnp.stack([p['ln1_g'], p['ln1_b'], p['ln2_g'], p['ln2_b'],
                    p['ln3_g'], p['ln3_b']], axis=0)                              # (6, E)
    return {'w_sa': w_sa, 'b_sa': b_sa, 'w_ca': w_ca, 'b_ca': b_ca,
            'ff1': ff1, 'ff2': ff2, 'ln': ln}


# ----------------------------------------------------------------------------
# Forward wrapper: fold (L, B, E) -> (B*L, E) rows and run the single fused kernel.
# ----------------------------------------------------------------------------
def transformer_decoder_layer(packed, tgt, memory, clip_visual=None,
                              pos=None, query_pos=None, *, nhead):
    """forward_post semantics (normalize_before=False), dropout = identity (eval).
    tgt/memory/clip_visual/pos/query_pos follow the PyTorch (L, B, E) convention."""
    Lq, B, E = tgt.shape
    Lm = memory.shape[0]
    hd = E // nhead
    F = packed['ff2'].shape[0] - 1

    has_qp = query_pos is not None
    has_pos = pos is not None
    has_clip = clip_visual is not None
    Lc = clip_visual.shape[0] if has_clip else 0

    def fold(x, L):                                   # (L, B, E) -> (B*L, E), batch-major rows
        return jnp.transpose(x, (1, 0, 2)).reshape(B * L, E)

    inputs = [fold(tgt, Lq), fold(memory, Lm)]
    if has_qp:
        inputs.append(fold(query_pos, Lq))
    if has_pos:
        inputs.append(fold(pos, Lm))
    if has_clip:
        inputs.append(fold(clip_visual, Lc))
    inputs += [packed['w_sa'], packed['b_sa'], packed['w_ca'], packed['b_ca'],
               packed['ff1'], packed['ff2'], packed['ln']]

    kernel = _make_kernel(B=B, Lq=Lq, Lm=Lm, Lc=Lc, E=E, F=F, H=nhead, hd=hd,
                          has_qp=has_qp, has_pos=has_pos, has_clip=has_clip)

    # Single invocation (no grid): every operand is one whole-array VMEM block;
    # total live data is a few tens of KB, far under any generation's VMEM budget.
    out2d = pl.pallas_call(
        kernel,
        out_shape=jax.ShapeDtypeStruct((B * Lq, E), tgt.dtype),
    )(*inputs)

    return jnp.transpose(out2d.reshape(B, Lq, E), (1, 0, 2))      # back to (L, B, E)


# ----------------------------------------------------------------------------
# Pure-JAX reference (PyTorch forward_post semantics) for a numerical check.
# ----------------------------------------------------------------------------
def _reference_forward(p, tgt, memory, clip_visual, pos, query_pos, nhead):
    E = tgt.shape[-1]
    hd = E // nhead

    def mha(q_in, k_in, v_in, wq, bq, wk, bk, wv, bv, wo, bo):
        Lq, B, _ = q_in.shape
        Lk = k_in.shape[0]
        q = q_in @ wq.T + bq
        k = k_in @ wk.T + bk
        v = v_in @ wv.T + bv

        def split(x, L):
            return x.reshape(L, B, nhead, hd).transpose(1, 2, 0, 3)   # (B, H, L, hd)

        qh, kh, vh = split(q, Lq), split(k, Lk), split(v, Lk)
        s = jnp.einsum('bhqd,bhkd->bhqk', qh / math.sqrt(hd), kh)
        a = jax.nn.softmax(s, axis=-1)
        o = jnp.einsum('bhqk,bhkd->bhqd', a, vh)
        o = o.transpose(2, 0, 1, 3).reshape(Lq, B, E)
        return o @ wo.T + bo

    def ln(x, g, b):
        mu = x.mean(-1, keepdims=True)
        xc = x - mu
        return xc * jax.lax.rsqrt((xc * xc).mean(-1, keepdims=True) + 1e-5) * g + b

    qk = tgt + query_pos
    t = ln(tgt + mha(qk, qk, tgt,
                     p['sa_wq'], p['sa_bq'], p['sa_wk'], p['sa_bk'],
                     p['sa_wv'], p['sa_bv'], p['sa_wo'], p['sa_bo']),
           p['ln1_g'], p['ln1_b'])
    q2 = t + query_pos
    t2 = ln(t + mha(q2, memory + pos, memory,
                    p['ca_wq'], p['ca_bq'], p['ca_wk'], p['ca_bk'],
                    p['ca_wv'], p['ca_bv'], p['ca_wo'], p['ca_bo']),
            p['ln2_g'], p['ln2_b'])
    t3 = ln(t + mha(q2, clip_visual, clip_visual,
                    p['ca_wq'], p['ca_bq'], p['ca_wk'], p['ca_bk'],
                    p['ca_wv'], p['ca_bv'], p['ca_wo'], p['ca_bo']),
            p['ln2_g'], p['ln2_b'])
    t = t2 + t3
    ffn = jnp.maximum(t @ p['ff_w1'].T + p['ff_b1'], 0.0) @ p['ff_w2'].T + p['ff_b2']
    return ln(t + ffn, p['ln3_g'], p['ln3_b'])


# ----------------------------------------------------------------------------
# Deterministic parameter init (PyTorch-convention shapes) + main
# ----------------------------------------------------------------------------
def make_params(key, d_model, nhead, dim_feedforward):
    E, Fdim = d_model, dim_feedforward
    keys = jax.random.split(key, 20)
    s = 0.05

    def w(k, shape):
        return jax.random.normal(k, shape, jnp.float32) * s

    return {
        # self-attention (PyTorch in_proj split into q/k/v)
        'sa_wq': w(keys[0], (E, E)), 'sa_wk': w(keys[1], (E, E)), 'sa_wv': w(keys[2], (E, E)),
        'sa_bq': w(keys[3], (E,)), 'sa_bk': w(keys[4], (E,)), 'sa_bv': w(keys[5], (E,)),
        'sa_wo': w(keys[6], (E, E)), 'sa_bo': w(keys[7], (E,)),
        # cross-attention (shared by memory and clip_visual attention)
        'ca_wq': w(keys[8], (E, E)), 'ca_wk': w(keys[9], (E, E)), 'ca_wv': w(keys[10], (E, E)),
        'ca_bq': w(keys[11], (E,)), 'ca_bk': w(keys[12], (E,)), 'ca_bv': w(keys[13], (E,)),
        'ca_wo': w(keys[14], (E, E)), 'ca_bo': w(keys[15], (E,)),
        # feed-forward
        'ff_w1': w(keys[16], (Fdim, E)), 'ff_b1': w(keys[17], (Fdim,)),
        'ff_w2': w(keys[18], (E, Fdim)), 'ff_b2': w(keys[19], (E,)),
        # layer norms
        'ln1_g': jnp.ones((E,), jnp.float32), 'ln1_b': jnp.zeros((E,), jnp.float32),
        'ln2_g': jnp.ones((E,), jnp.float32), 'ln2_b': jnp.zeros((E,), jnp.float32),
        'ln3_g': jnp.ones((E,), jnp.float32), 'ln3_b': jnp.zeros((E,), jnp.float32),
    }


if __name__ == "__main__":
    d_model, nhead, dim_ff = 32, 4, 64
    Lq, Lm, Lc, B = 8, 16, 16, 2

    root = jax.random.PRNGKey(0)
    k_par, k_tgt, k_mem, k_clip, k_qp, k_pos = jax.random.split(root, 6)

    params = make_params(k_par, d_model, nhead, dim_ff)
    packed = prepare_params(params)          # one-time host-side weight re-layout

    # PyTorch (L, B, E) layout inputs
    tgt = jax.random.normal(k_tgt, (Lq, B, d_model), jnp.float32)
    memory = jax.random.normal(k_mem, (Lm, B, d_model), jnp.float32)
    clip_visual = jax.random.normal(k_clip, (Lc, B, d_model), jnp.float32)
    query_pos = jax.random.normal(k_qp, (Lq, B, d_model), jnp.float32)
    pos = jax.random.normal(k_pos, (Lm, B, d_model), jnp.float32)

    fwd = jax.jit(functools.partial(transformer_decoder_layer, nhead=nhead))
    out = fwd(packed, tgt, memory, clip_visual, pos, query_pos)
    out = jax.block_until_ready(out)

    assert out.shape == (Lq, B, d_model), out.shape
    assert bool(jnp.all(jnp.isfinite(out)))

    # numerical check against the pure-JAX reference (exact softmax in-kernel -> tight match)
    ref = _reference_forward(params, tgt, memory, clip_visual, pos, query_pos, nhead)
    err = float(jnp.max(jnp.abs(out - ref)))
    assert err < 1e-3, f"max abs error vs reference: {err}"

    print("KERNEL_OK")
</pallas_src>

<mosaic_0001>
module attributes {stable_mosaic.version = 11 : i64} {
  func.func @kernel(%arg0: memref<16x32xf32, #tpu.memory_space<vmem>>, %arg1: memref<32x32xf32, #tpu.memory_space<vmem>>, %arg2: memref<16x32xf32, #tpu.memory_space<vmem>>, %arg3: memref<32x32xf32, #tpu.memory_space<vmem>>, %arg4: memref<32x32xf32, #tpu.memory_space<vmem>>, %arg5: memref<32x128xf32, #tpu.memory_space<vmem>>, %arg6: memref<1x128xf32, #tpu.memory_space<vmem>>, %arg7: memref<32x128xf32, #tpu.memory_space<vmem>>, %arg8: memref<1x128xf32, #tpu.memory_space<vmem>>, %arg9: memref<33x64xf32, #tpu.memory_space<vmem>>, %arg10: memref<65x32xf32, #tpu.memory_space<vmem>>, %arg11: memref<6x32xf32, #tpu.memory_space<vmem>>, %arg12: memref<16x32xf32, #tpu.memory_space<vmem>>) attributes {dimension_semantics = [], scalar_prefetch = 0 : i64, scratch_operands = 0 : i64, tpu.core_type = #tpu.core_type<tc>} {
    %c0 = arith.constant 0 : index
    %c0_0 = arith.constant 0 : index
    %0 = vector.load %arg0[%c0, %c0_0] : memref<16x32xf32, #tpu.memory_space<vmem>>, vector<16x32xf32>
    %c0_1 = arith.constant 0 : index
    %c0_2 = arith.constant 0 : index
    %1 = vector.load %arg1[%c0_1, %c0_2] : memref<32x32xf32, #tpu.memory_space<vmem>>, vector<32x32xf32>
    %c0_3 = arith.constant 0 : index
    %c0_4 = arith.constant 0 : index
    %2 = vector.load %arg5[%c0_3, %c0_4] : memref<32x128xf32, #tpu.memory_space<vmem>>, vector<32x128xf32>
    %c0_5 = arith.constant 0 : index
    %c0_6 = arith.constant 0 : index
    %3 = vector.load %arg6[%c0_5, %c0_6] : memref<1x128xf32, #tpu.memory_space<vmem>>, vector<1x128xf32>
    %c0_7 = arith.constant 0 : index
    %c0_8 = arith.constant 0 : index
    %4 = vector.load %arg7[%c0_7, %c0_8] : memref<32x128xf32, #tpu.memory_space<vmem>>, vector<32x128xf32>
    %c0_9 = arith.constant 0 : index
    %c0_10 = arith.constant 0 : index
    %5 = vector.load %arg8[%c0_9, %c0_10] : memref<1x128xf32, #tpu.memory_space<vmem>>, vector<1x128xf32>
    %c0_11 = arith.constant 0 : index
    %c0_12 = arith.constant 0 : index
    %6 = vector.load %arg9[%c0_11, %c0_12] : memref<33x64xf32, #tpu.memory_space<vmem>>, vector<33x64xf32>
    %c0_13 = arith.constant 0 : index
    %c0_14 = arith.constant 0 : index
    %7 = vector.load %arg10[%c0_13, %c0_14] : memref<65x32xf32, #tpu.memory_space<vmem>>, vector<65x32xf32>
    %c0_15 = arith.constant 0 : index
    %c0_16 = arith.constant 0 : index
    %8 = vector.load %arg11[%c0_15, %c0_16] : memref<6x32xf32, #tpu.memory_space<vmem>>, vector<6x32xf32>
    %c0_17 = arith.constant 0 : index
    %c0_18 = arith.constant 0 : index
    %9 = vector.load %arg2[%c0_17, %c0_18] : memref<16x32xf32, #tpu.memory_space<vmem>>, vector<16x32xf32>
    %10 = arith.addf %0, %9 : vector<16x32xf32>
    %11 = vector.extract_strided_slice %2 {offsets = [0, 0], sizes = [32, 64], strides = [1, 1]} : vector<32x128xf32> to vector<32x64xf32>
    %cst = arith.constant dense<0.000000e+00> : vector<16x64xf32>
    %12 = tpu.matmul %10, %11, %cst {dimension_numbers = #tpu.dot_dimension_numbers<[1], [0], [0], [1], [0, 0, 1, 1], [], []>} : vector<16x32xf32>, vector<32x64xf32>, vector<16x64xf32> -> vector<16x64xf32>
    %13 = vector.extract_strided_slice %3 {offsets = [0, 0], sizes = [1, 64], strides = [1, 1]} : vector<1x128xf32> to vector<1x64xf32>
    %14 = vector.broadcast %13 : vector<1x64xf32> to vector<16x64xf32>
    %15 = arith.addf %12, %14 : vector<16x64xf32>
    %16 = vector.extract_strided_slice %2 {offsets = [0, 64], sizes = [32, 32], strides = [1, 1]} : vector<32x128xf32> to vector<32x32xf32>
    %cst_19 = arith.constant dense<0.000000e+00> : vector<16x32xf32>
    %17 = tpu.matmul %0, %16, %cst_19 {dimension_numbers = #tpu.dot_dimension_numbers<[1], [0], [0], [1], [0, 0, 1, 1], [], []>} : vector<16x32xf32>, vector<32x32xf32>, vector<16x32xf32> -> vector<16x32xf32>
    %18 = vector.extract_strided_slice %3 {offsets = [0, 64], sizes = [1, 32], strides = [1, 1]} : vector<1x128xf32> to vector<1x32xf32>
    %19 = vector.broadcast %18 : vector<1x32xf32> to vector<16x32xf32>
    %20 = arith.addf %17, %19 : vector<16x32xf32>
    %21 = vector.extract_strided_slice %15 {offsets = [0, 0], sizes = [16, 32], strides = [1, 1]} : vector<16x64xf32> to vector<16x32xf32>
    %22 = vector.extract_strided_slice %15 {offsets = [0, 32], sizes = [16, 32], strides = [1, 1]} : vector<16x64xf32> to vector<16x32xf32>
    %23 = vector.shape_cast %21 : vector<16x32xf32> to vector<2x8x32xf32>
    %24 = vector.shape_cast %22 : vector<16x32xf32> to vector<2x8x32xf32>
    %25 = vector.shape_cast %20 : vector<16x32xf32> to vector<2x8x32xf32>
    %26 = vector.extract_strided_slice %23 {offsets = [0, 0, 0], sizes = [2, 8, 8], strides = [1, 1, 1]} : vector<2x8x32xf32> to vector<2x8x8xf32>
    %cst_20 = arith.constant 0.353553385 : f32
    %27 = vector.broadcast %cst_20 : f32 to vector<2x8x8xf32>
    %28 = arith.mulf %26, %27 : vector<2x8x8xf32>
    %29 = vector.extract_strided_slice %24 {offsets = [0, 0, 0], sizes = [2, 8, 8], strides = [1, 1, 1]} : vector<2x8x32xf32> to vector<2x8x8xf32>
    "tpu.trace_start"() <{level = 10 : i32, message = "bqd,bkd->bqk"}> : () -> ()
    %cst_21 = arith.constant dense<0.000000e+00> : vector<2x8x8xf32>
    %30 = tpu.matmul %28, %29, %cst_21 {dimension_numbers = #tpu.dot_dimension_numbers<[2], [2], [1], [1], [0, 0, 0, 1, 1, 1], [0], [0]>} : vector<2x8x8xf32>, vector<2x8x8xf32>, vector<2x8x8xf32> -> vector<2x8x8xf32>
    "tpu.trace_stop"() : () -> ()
    %cst_22 = arith.constant dense<0xFF800000> : vector<2x8xf32>
    %31 = vector.multi_reduction <maximumf>, %30, %cst_22 [2] : vector<2x8x8xf32> to vector<2x8xf32>
    %32 = vector.shape_cast %31 : vector<2x8xf32> to vector<2x8x1xf32>
    %33 = vector.broadcast %32 : vector<2x8x1xf32> to vector<2x8x8xf32>
    %34 = arith.subf %30, %33 : vector<2x8x8xf32>
    %35 = math.exp %34 : vector<2x8x8xf32>
    %cst_23 = arith.constant dense<0.000000e+00> : vector<2x8xf32>
    %36 = vector.multi_reduction <add>, %35, %cst_23 [2] : vector<2x8x8xf32> to vector<2x8xf32>
    %37 = vector.shape_cast %36 : vector<2x8xf32> to vector<2x8x1xf32>
    %38 = vector.broadcast %37 : vector<2x8x1xf32> to vector<2x8x8xf32>
    %39 = arith.divf %35, %38 : vector<2x8x8xf32>
    %40 = vector.extract_strided_slice %25 {offsets = [0, 0, 0], sizes = [2, 8, 8], strides = [1, 1, 1]} : vector<2x8x32xf32> to vector<2x8x8xf32>
    "tpu.trace_start"() <{level = 10 : i32, message = "bqk,bkd->bqd"}> : () -> ()
    %cst_24 = arith.constant dense<0.000000e+00> : vector<2x8x8xf32>
    %41 = tpu.matmul %39, %40, %cst_24 {dimension_numbers = #tpu.dot_dimension_numbers<[2], [1], [1], [2], [0, 0, 0, 1, 1, 2], [0], [0]>} : vector<2x8x8xf32>, vector<2x8x8xf32>, vector<2x8x8xf32> -> vector<2x8x8xf32>
    "tpu.trace_stop"() : () -> ()
    %42 = vector.extract_strided_slice %23 {offsets = [0, 0, 8], sizes = [2, 8, 8], strides = [1, 1, 1]} : vector<2x8x32xf32> to vector<2x8x8xf32>
    %cst_25 = arith.constant 0.353553385 : f32
    %43 = vector.broadcast %cst_25 : f32 to vector<2x8x8xf32>
    %44 = arith.mulf %42, %43 : vector<2x8x8xf32>
    %45 = vector.extract_strided_slice %24 {offsets = [0, 0, 8], sizes = [2, 8, 8], strides = [1, 1, 1]} : vector<2x8x32xf32> to vector<2x8x8xf32>
    "tpu.trace_start"() <{level = 10 : i32, message = "bqd,bkd->bqk"}> : () -> ()
    %cst_26 = arith.constant dense<0.000000e+00> : vector<2x8x8xf32>
    %46 = tpu.matmul %44, %45, %cst_26 {dimension_numbers = #tpu.dot_dimension_numbers<[2], [2], [1], [1], [0, 0, 0, 1, 1, 1], [0], [0]>} : vector<2x8x8xf32>, vector<2x8x8xf32>, vector<2x8x8xf32> -> vector<2x8x8xf32>
    "tpu.trace_stop"() : () -> ()
    %cst_27 = arith.constant dense<0xFF800000> : vector<2x8xf32>
    %47 = vector.multi_reduction <maximumf>, %46, %cst_27 [2] : vector<2x8x8xf32> to vector<2x8xf32>
    %48 = vector.shape_cast %47 : vector<2x8xf32> to vector<2x8x1xf32>
    %49 = vector.broadcast %48 : vector<2x8x1xf32> to vector<2x8x8xf32>
    %50 = arith.subf %46, %49 : vector<2x8x8xf32>
    %51 = math.exp %50 : vector<2x8x8xf32>
    %cst_28 = arith.constant dense<0.000000e+00> : vector<2x8xf32>
    %52 = vector.multi_reduction <add>, %51, %cst_28 [2] : vector<2x8x8xf32> to vector<2x8xf32>
    %53 = vector.shape_cast %52 : vector<2x8xf32> to vector<2x8x1xf32>
    %54 = vector.broadcast %53 : vector<2x8x1xf32> to vector<2x8x8xf32>
    %55 = arith.divf %51, %54 : vector<2x8x8xf32>
    %56 = vector.extract_strided_slice %25 {offsets = [0, 0, 8], sizes = [2, 8, 8], strides = [1, 1, 1]} : vector<2x8x32xf32> to vector<2x8x8xf32>
    "tpu.trace_start"() <{level = 10 : i32, message = "bqk,bkd->bqd"}> : () -> ()
    %cst_29 = arith.constant dense<0.000000e+00> : vector<2x8x8xf32>
    %57 = tpu.matmul %55, %56, %cst_29 {dimension_numbers = #tpu.dot_dimension_numbers<[2], [1], [1], [2], [0, 0, 0, 1, 1, 2], [0], [0]>} : vector<2x8x8xf32>, vector<2x8x8xf32>, vector<2x8x8xf32> -> vector<2x8x8xf32>
    "tpu.trace_stop"() : () -> ()
    %58 = vector.extract_strided_slice %23 {offsets = [0, 0, 16], sizes = [2, 8, 8], strides = [1, 1, 1]} : vector<2x8x32xf32> to vector<2x8x8xf32>
    %cst_30 = arith.constant 0.353553385 : f32
    %59 = vector.broadcast %cst_30 : f32 to vector<2x8x8xf32>
    %60 = arith.mulf %58, %59 : vector<2x8x8xf32>
    %61 = vector.extract_strided_slice %24 {offsets = [0, 0, 16], sizes = [2, 8, 8], strides = [1, 1, 1]} : vector<2x8x32xf32> to vector<2x8x8xf32>
    "tpu.trace_start"() <{level = 10 : i32, message = "bqd,bkd->bqk"}> : () -> ()
    %cst_31 = arith.constant dense<0.000000e+00> : vector<2x8x8xf32>
    %62 = tpu.matmul %60, %61, %cst_31 {dimension_numbers = #tpu.dot_dimension_numbers<[2], [2], [1], [1], [0, 0, 0, 1, 1, 1], [0], [0]>} : vector<2x8x8xf32>, vector<2x8x8xf32>, vector<2x8x8xf32> -> vector<2x8x8xf32>
    "tpu.trace_stop"() : () -> ()
    %cst_32 = arith.constant dense<0xFF800000> : vector<2x8xf32>
    %63 = vector.multi_reduction <maximumf>, %62, %cst_32 [2] : vector<2x8x8xf32> to vector<2x8xf32>
    %64 = vector.shape_cast %63 : vector<2x8xf32> to vector<2x8x1xf32>
    %65 = vector.broadcast %64 : vector<2x8x1xf32> to vector<2x8x8xf32>
    %66 = arith.subf %62, %65 : vector<2x8x8xf32>
    %67 = math.exp %66 : vector<2x8x8xf32>
    %cst_33 = arith.constant dense<0.000000e+00> : vector<2x8xf32>
    %68 = vector.multi_reduction <add>, %67, %cst_33 [2] : vector<2x8x8xf32> to vector<2x8xf32>
    %69 = vector.shape_cast %68 : vector<2x8xf32> to vector<2x8x1xf32>
    %70 = vector.broadcast %69 : vector<2x8x1xf32> to vector<2x8x8xf32>
    %71 = arith.divf %67, %70 : vector<2x8x8xf32>
    %72 = vector.extract_strided_slice %25 {offsets = [0, 0, 16], sizes = [2, 8, 8], strides = [1, 1, 1]} : vector<2x8x32xf32> to vector<2x8x8xf32>
    "tpu.trace_start"() <{level = 10 : i32, message = "bqk,bkd->bqd"}> : () -> ()
    %cst_34 = arith.constant dense<0.000000e+00> : vector<2x8x8xf32>
    %73 = tpu.matmul %71, %72, %cst_34 {dimension_numbers = #tpu.dot_dimension_numbers<[2], [1], [1], [2], [0, 0, 0, 1, 1, 2], [0], [0]>} : vector<2x8x8xf32>, vector<2x8x8xf32>, vector<2x8x8xf32> -> vector<2x8x8xf32>
    "tpu.trace_stop"() : () -> ()
    %74 = vector.extract_strided_slice %23 {offsets = [0, 0, 24], sizes = [2, 8, 8], strides = [1, 1, 1]} : vector<2x8x32xf32> to vector<2x8x8xf32>
    %cst_35 = arith.constant 0.353553385 : f32
    %75 = vector.broadcast %cst_35 : f32 to vector<2x8x8xf32>
    %76 = arith.mulf %74, %75 : vector<2x8x8xf32>
    %77 = vector.extract_strided_slice %24 {offsets = [0, 0, 24], sizes = [2, 8, 8], strides = [1, 1, 1]} : vector<2x8x32xf32> to vector<2x8x8xf32>
    "tpu.trace_start"() <{level = 10 : i32, message = "bqd,bkd->bqk"}> : () -> ()
    %cst_36 = arith.constant dense<0.000000e+00> : vector<2x8x8xf32>
    %78 = tpu.matmul %76, %77, %cst_36 {dimension_numbers = #tpu.dot_dimension_numbers<[2], [2], [1], [1], [0, 0, 0, 1, 1, 1], [0], [0]>} : vector<2x8x8xf32>, vector<2x8x8xf32>, vector<2x8x8xf32> -> vector<2x8x8xf32>
    "tpu.trace_stop"() : () -> ()
    %cst_37 = arith.constant dense<0xFF800000> : vector<2x8xf32>
    %79 = vector.multi_reduction <maximumf>, %78, %cst_37 [2] : vector<2x8x8xf32> to vector<2x8xf32>
    %80 = vector.shape_cast %79 : vector<2x8xf32> to vector<2x8x1xf32>
    %81 = vector.broadcast %80 : vector<2x8x1xf32> to vector<2x8x8xf32>
    %82 = arith.subf %78, %81 : vector<2x8x8xf32>
    %83 = math.exp %82 : vector<2x8x8xf32>
    %cst_38 = arith.constant dense<0.000000e+00> : vector<2x8xf32>
    %84 = vector.multi_reduction <add>, %83, %cst_38 [2] : vector<2x8x8xf32> to vector<2x8xf32>
    %85 = vector.shape_cast %84 : vector<2x8xf32> to vector<2x8x1xf32>
    %86 = vector.broadcast %85 : vector<2x8x1xf32> to vector<2x8x8xf32>
    %87 = arith.divf %83, %86 : vector<2x8x8xf32>
    %88 = vector.extract_strided_slice %25 {offsets = [0, 0, 24], sizes = [2, 8, 8], strides = [1, 1, 1]} : vector<2x8x32xf32> to vector<2x8x8xf32>
    "tpu.trace_start"() <{level = 10 : i32, message = "bqk,bkd->bqd"}> : () -> ()
    %cst_39 = arith.constant dense<0.000000e+00> : vector<2x8x8xf32>
    %89 = tpu.matmul %87, %88, %cst_39 {dimension_numbers = #tpu.dot_dimension_numbers<[2], [1], [1], [2], [0, 0, 0, 1, 1, 2], [0], [0]>} : vector<2x8x8xf32>, vector<2x8x8xf32>, vector<2x8x8xf32> -> vector<2x8x8xf32>
    "tpu.trace_stop"() : () -> ()
    %90 = tpu.concatenate %41, %57, %73, %89 in 2 : vector<2x8x8xf32>, vector<2x8x8xf32>, vector<2x8x8xf32>, vector<2x8x8xf32> -> vector<2x8x32xf32>
    %91 = vector.shape_cast %90 : vector<2x8x32xf32> to vector<16x32xf32>
    %92 = vector.extract_strided_slice %2 {offsets = [0, 96], sizes = [32, 32], strides = [1, 1]} : vector<32x128xf32> to vector<32x32xf32>
    %cst_40 = arith.constant dense<0.000000e+00> : vector<16x32xf32>
    %93 = tpu.matmul %91, %92, %cst_40 {dimension_numbers = #tpu.dot_dimension_numbers<[1], [0], [0], [1], [0, 0, 1, 1], [], []>} : vector<16x32xf32>, vector<32x32xf32>, vector<16x32xf32> -> vector<16x32xf32>
    %94 = vector.extract_strided_slice %3 {offsets = [0, 96], sizes = [1, 32], strides = [1, 1]} : vector<1x128xf32> to vector<1x32xf32>
    %95 = vector.broadcast %94 : vector<1x32xf32> to vector<16x32xf32>
    %96 = arith.addf %93, %95 : vector<16x32xf32>
    %97 = arith.addf %0, %96 : vector<16x32xf32>
    %98 = vector.extract_strided_slice %8 {offsets = [0, 0], sizes = [1, 32], strides = [1, 1]} : vector<6x32xf32> to vector<1x32xf32>
    %99 = vector.extract_strided_slice %8 {offsets = [1, 0], sizes = [1, 32], strides = [1, 1]} : vector<6x32xf32> to vector<1x32xf32>
    %cst_41 = arith.constant dense<0.000000e+00> : vector<16xf32>
    %100 = vector.multi_reduction <add>, %97, %cst_41 [1] : vector<16x32xf32> to vector<16xf32>
    %101 = vector.shape_cast %100 : vector<16xf32> to vector<16x1xf32>
    %cst_42 = arith.constant 3.200000e+01 : f32
    %102 = vector.broadcast %cst_42 : f32 to vector<16x1xf32>
    %103 = arith.divf %101, %102 : vector<16x1xf32>
    %104 = vector.broadcast %103 : vector<16x1xf32> to vector<16x32xf32>
    %105 = arith.subf %97, %104 : vector<16x32xf32>
    %106 = arith.mulf %105, %105 : vector<16x32xf32>
    %cst_43 = arith.constant dense<0.000000e+00> : vector<16xf32>
    %107 = vector.multi_reduction <add>, %106, %cst_43 [1] : vector<16x32xf32> to vector<16xf32>
    %108 = vector.shape_cast %107 : vector<16xf32> to vector<16x1xf32>
    %cst_44 = arith.constant 3.200000e+01 : f32
    %109 = vector.broadcast %cst_44 : f32 to vector<16x1xf32>
    %110 = arith.divf %108, %109 : vector<16x1xf32>
    %cst_45 = arith.constant 9.99999974E-6 : f32
    %111 = vector.broadcast %cst_45 : f32 to vector<16x1xf32>
    %112 = arith.addf %110, %111 : vector<16x1xf32>
    %113 = math.rsqrt %112 : vector<16x1xf32>
    %114 = vector.broadcast %113 : vector<16x1xf32> to vector<16x32xf32>
    %115 = arith.mulf %105, %114 : vector<16x32xf32>
    %116 = vector.broadcast %98 : vector<1x32xf32> to vector<16x32xf32>
    %117 = arith.mulf %115, %116 : vector<16x32xf32>
    %118 = vector.broadcast %99 : vector<1x32xf32> to vector<16x32xf32>
    %119 = arith.addf %117, %118 : vector<16x32xf32>
    %120 = arith.addf %119, %9 : vector<16x32xf32>
    %121 = vector.extract_strided_slice %4 {offsets = [0, 0], sizes = [32, 32], strides = [1, 1]} : vector<32x128xf32> to vector<32x32xf32>
    %cst_46 = arith.constant dense<0.000000e+00> : vector<16x32xf32>
    %122 = tpu.matmul %120, %121, %cst_46 {dimension_numbers = #tpu.dot_dimension_numbers<[1], [0], [0], [1], [0, 0, 1, 1], [], []>} : vector<16x32xf32>, vector<32x32xf32>, vector<16x32xf32> -> vector<16x32xf32>
    %123 = vector.extract_strided_slice %5 {offsets = [0, 0], sizes = [1, 32], strides = [1, 1]} : vector<1x128xf32> to vector<1x32xf32>
    %124 = vector.broadcast %123 : vector<1x32xf32> to vector<16x32xf32>
    %125 = arith.addf %122, %124 : vector<16x32xf32>
    %c0_47 = arith.constant 0 : index
    %c0_48 = arith.constant 0 : index
    %126 = vector.load %arg3[%c0_47, %c0_48] : memref<32x32xf32, #tpu.memory_space<vmem>>, vector<32x32xf32>
    %127 = arith.addf %1, %126 : vector<32x32xf32>
    %128 = vector.extract_strided_slice %4 {offsets = [0, 32], sizes = [32, 32], strides = [1, 1]} : vector<32x128xf32> to vector<32x32xf32>
    %cst_49 = arith.constant dense<0.000000e+00> : vector<32x32xf32>
    %129 = tpu.matmul %127, %128, %cst_49 {dimension_numbers = #tpu.dot_dimension_numbers<[1], [0], [0], [1], [0, 0, 1, 1], [], []>} : vector<32x32xf32>, vector<32x32xf32>, vector<32x32xf32> -> vector<32x32xf32>
    %130 = vector.extract_strided_slice %5 {offsets = [0, 32], sizes = [1, 32], strides = [1, 1]} : vector<1x128xf32> to vector<1x32xf32>
    %131 = vector.broadcast %130 : vector<1x32xf32> to vector<32x32xf32>
    %132 = arith.addf %129, %131 : vector<32x32xf32>
    %133 = vector.extract_strided_slice %4 {offsets = [0, 64], sizes = [32, 32], strides = [1, 1]} : vector<32x128xf32> to vector<32x32xf32>
    %cst_50 = arith.constant dense<0.000000e+00> : vector<32x32xf32>
    %134 = tpu.matmul %1, %133, %cst_50 {dimension_numbers = #tpu.dot_dimension_numbers<[1], [0], [0], [1], [0, 0, 1, 1], [], []>} : vector<32x32xf32>, vector<32x32xf32>, vector<32x32xf32> -> vector<32x32xf32>
    %135 = vector.extract_strided_slice %5 {offsets = [0, 64], sizes = [1, 32], strides = [1, 1]} : vector<1x128xf32> to vector<1x32xf32>
    %136 = vector.broadcast %135 : vector<1x32xf32> to vector<32x32xf32>
    %137 = arith.addf %134, %136 : vector<32x32xf32>
    %138 = vector.shape_cast %125 : vector<16x32xf32> to vector<2x8x32xf32>
    %139 = vector.shape_cast %132 : vector<32x32xf32> to vector<2x16x32xf32>
    %140 = vector.shape_cast %137 : vector<32x32xf32> to vector<2x16x32xf32>
    %141 = vector.extract_strided_slice %138 {offsets = [0, 0, 0], sizes = [2, 8, 8], strides = [1, 1, 1]} : vector<2x8x32xf32> to vector<2x8x8xf32>
    %cst_51 = arith.constant 0.353553385 : f32
    %142 = vector.broadcast %cst_51 : f32 to vector<2x8x8xf32>
    %143 = arith.mulf %141, %142 : vector<2x8x8xf32>
    %144 = vector.extract_strided_slice %139 {offsets = [0, 0, 0], sizes = [2, 16, 8], strides = [1, 1, 1]} : vector<2x16x32xf32> to vector<2x16x8xf32>
    "tpu.trace_start"() <{level = 10 : i32, message = "bqd,bkd->bqk"}> : () -> ()
    %cst_52 = arith.constant dense<0.000000e+00> : vector<2x8x16xf32>
    %145 = tpu.matmul %143, %144, %cst_52 {dimension_numbers = #tpu.dot_dimension_numbers<[2], [2], [1], [1], [0, 0, 0, 1, 1, 1], [0], [0]>} : vector<2x8x8xf32>, vector<2x16x8xf32>, vector<2x8x16xf32> -> vector<2x8x16xf32>
    "tpu.trace_stop"() : () -> ()
    %cst_53 = arith.constant dense<0xFF800000> : vector<2x8xf32>
    %146 = vector.multi_reduction <maximumf>, %145, %cst_53 [2] : vector<2x8x16xf32> to vector<2x8xf32>
    %147 = vector.shape_cast %146 : vector<2x8xf32> to vector<2x8x1xf32>
    %148 = vector.broadcast %147 : vector<2x8x1xf32> to vector<2x8x16xf32>
    %149 = arith.subf %145, %148 : vector<2x8x16xf32>
    %150 = math.exp %149 : vector<2x8x16xf32>
    %cst_54 = arith.constant dense<0.000000e+00> : vector<2x8xf32>
    %151 = vector.multi_reduction <add>, %150, %cst_54 [2] : vector<2x8x16xf32> to vector<2x8xf32>
    %152 = vector.shape_cast %151 : vector<2x8xf32> to vector<2x8x1xf32>
    %153 = vector.broadcast %152 : vector<2x8x1xf32> to vector<2x8x16xf32>
    %154 = arith.divf %150, %153 : vector<2x8x16xf32>
    %155 = vector.extract_strided_slice %140 {offsets = [0, 0, 0], sizes = [2, 16, 8], strides = [1, 1, 1]} : vector<2x16x32xf32> to vector<2x16x8xf32>
    "tpu.trace_start"() <{level = 10 : i32, message = "bqk,bkd->bqd"}> : () -> ()
    %cst_55 = arith.constant dense<0.000000e+00> : vector<2x8x8xf32>
    %156 = tpu.matmul %154, %155, %cst_55 {dimension_numbers = #tpu.dot_dimension_numbers<[2], [1], [1], [2], [0, 0, 0, 1, 1, 2], [0], [0]>} : vector<2x8x16xf32>, vector<2x16x8xf32>, vector<2x8x8xf32> -> vector<2x8x8xf32>
    "tpu.trace_stop"() : () -> ()
    %157 = vector.extract_strided_slice %138 {offsets = [0, 0, 8], sizes = [2, 8, 8], strides = [1, 1, 1]} : vector<2x8x32xf32> to vector<2x8x8xf32>
    %cst_56 = arith.constant 0.353553385 : f32
    %158 = vector.broadcast %cst_56 : f32 to vector<2x8x8xf32>
    %159 = arith.mulf %157, %158 : vector<2x8x8xf32>
    %160 = vector.extract_strided_slice %139 {offsets = [0, 0, 8], sizes = [2, 16, 8], strides = [1, 1, 1]} : vector<2x16x32xf32> to vector<2x16x8xf32>
    "tpu.trace_start"() <{level = 10 : i32, message = "bqd,bkd->bqk"}> : () -> ()
    %cst_57 = arith.constant dense<0.000000e+00> : vector<2x8x16xf32>
    %161 = tpu.matmul %159, %160, %cst_57 {dimension_numbers = #tpu.dot_dimension_numbers<[2], [2], [1], [1], [0, 0, 0, 1, 1, 1], [0], [0]>} : vector<2x8x8xf32>, vector<2x16x8xf32>, vector<2x8x16xf32> -> vector<2x8x16xf32>
    "tpu.trace_stop"() : () -> ()
    %cst_58 = arith.constant dense<0xFF800000> : vector<2x8xf32>
    %162 = vector.multi_reduction <maximumf>, %161, %cst_58 [2] : vector<2x8x16xf32> to vector<2x8xf32>
    %163 = vector.shape_cast %162 : vector<2x8xf32> to vector<2x8x1xf32>
    %164 = vector.broadcast %163 : vector<2x8x1xf32> to vector<2x8x16xf32>
    %165 = arith.subf %161, %164 : vector<2x8x16xf32>
    %166 = math.exp %165 : vector<2x8x16xf32>
    %cst_59 = arith.constant dense<0.000000e+00> : vector<2x8xf32>
    %167 = vector.multi_reduction <add>, %166, %cst_59 [2] : vector<2x8x16xf32> to vector<2x8xf32>
    %168 = vector.shape_cast %167 : vector<2x8xf32> to vector<2x8x1xf32>
    %169 = vector.broadcast %168 : vector<2x8x1xf32> to vector<2x8x16xf32>
    %170 = arith.divf %166, %169 : vector<2x8x16xf32>
    %171 = vector.extract_strided_slice %140 {offsets = [0, 0, 8], sizes = [2, 16, 8], strides = [1, 1, 1]} : vector<2x16x32xf32> to vector<2x16x8xf32>
    "tpu.trace_start"() <{level = 10 : i32, message = "bqk,bkd->bqd"}> : () -> ()
    %cst_60 = arith.constant dense<0.000000e+00> : vector<2x8x8xf32>
    %172 = tpu.matmul %170, %171, %cst_60 {dimension_numbers = #tpu.dot_dimension_numbers<[2], [1], [1], [2], [0, 0, 0, 1, 1, 2], [0], [0]>} : vector<2x8x16xf32>, vector<2x16x8xf32>, vector<2x8x8xf32> -> vector<2x8x8xf32>
    "tpu.trace_stop"() : () -> ()
    %173 = vector.extract_strided_slice %138 {offsets = [0, 0, 16], sizes = [2, 8, 8], strides = [1, 1, 1]} : vector<2x8x32xf32> to vector<2x8x8xf32>
    %cst_61 = arith.constant 0.353553385 : f32
    %174 = vector.broadcast %cst_61 : f32 to vector<2x8x8xf32>
    %175 = arith.mulf %173, %174 : vector<2x8x8xf32>
    %176 = vector.extract_strided_slice %139 {offsets = [0, 0, 16], sizes = [2, 16, 8], strides = [1, 1, 1]} : vector<2x16x32xf32> to vector<2x16x8xf32>
    "tpu.trace_start"() <{level = 10 : i32, message = "bqd,bkd->bqk"}> : () -> ()
    %cst_62 = arith.constant dense<0.000000e+00> : vector<2x8x16xf32>
    %177 = tpu.matmul %175, %176, %cst_62 {dimension_numbers = #tpu.dot_dimension_numbers<[2], [2], [1], [1], [0, 0, 0, 1, 1, 1], [0], [0]>} : vector<2x8x8xf32>, vector<2x16x8xf32>, vector<2x8x16xf32> -> vector<2x8x16xf32>
    "tpu.trace_stop"() : () -> ()
    %cst_63 = arith.constant dense<0xFF800000> : vector<2x8xf32>
    %178 = vector.multi_reduction <maximumf>, %177, %cst_63 [2] : vector<2x8x16xf32> to vector<2x8xf32>
    %179 = vector.shape_cast %178 : vector<2x8xf32> to vector<2x8x1xf32>
    %180 = vector.broadcast %179 : vector<2x8x1xf32> to vector<2x8x16xf32>
    %181 = arith.subf %177, %180 : vector<2x8x16xf32>
    %182 = math.exp %181 : vector<2x8x16xf32>
    %cst_64 = arith.constant dense<0.000000e+00> : vector<2x8xf32>
    %183 = vector.multi_reduction <add>, %182, %cst_64 [2] : vector<2x8x16xf32> to vector<2x8xf32>
    %184 = vector.shape_cast %183 : vector<2x8xf32> to vector<2x8x1xf32>
    %185 = vector.broadcast %184 : vector<2x8x1xf32> to vector<2x8x16xf32>
    %186 = arith.divf %182, %185 : vector<2x8x16xf32>
    %187 = vector.extract_strided_slice %140 {offsets = [0, 0, 16], sizes = [2, 16, 8], strides = [1, 1, 1]} : vector<2x16x32xf32> to vector<2x16x8xf32>
    "tpu.trace_start"() <{level = 10 : i32, message = "bqk,bkd->bqd"}> : () -> ()
    %cst_65 = arith.constant dense<0.000000e+00> : vector<2x8x8xf32>
    %188 = tpu.matmul %186, %187, %cst_65 {dimension_numbers = #tpu.dot_dimension_numbers<[2], [1], [1], [2], [0, 0, 0, 1, 1, 2], [0], [0]>} : vector<2x8x16xf32>, vector<2x16x8xf32>, vector<2x8x8xf32> -> vector<2x8x8xf32>
    "tpu.trace_stop"() : () -> ()
    %189 = vector.extract_strided_slice %138 {offsets = [0, 0, 24], sizes = [2, 8, 8], strides = [1, 1, 1]} : vector<2x8x32xf32> to vector<2x8x8xf32>
    %cst_66 = arith.constant 0.353553385 : f32
    %190 = vector.broadcast %cst_66 : f32 to vector<2x8x8xf32>
    %191 = arith.mulf %189, %190 : vector<2x8x8xf32>
    %192 = vector.extract_strided_slice %139 {offsets = [0, 0, 24], sizes = [2, 16, 8], strides = [1, 1, 1]} : vector<2x16x32xf32> to vector<2x16x8xf32>
    "tpu.trace_start"() <{level = 10 : i32, message = "bqd,bkd->bqk"}> : () -> ()
    %cst_67 = arith.constant dense<0.000000e+00> : vector<2x8x16xf32>
    %193 = tpu.matmul %191, %192, %cst_67 {dimension_numbers = #tpu.dot_dimension_numbers<[2], [2], [1], [1], [0, 0, 0, 1, 1, 1], [0], [0]>} : vector<2x8x8xf32>, vector<2x16x8xf32>, vector<2x8x16xf32> -> vector<2x8x16xf32>
    "tpu.trace_stop"() : () -> ()
    %cst_68 = arith.constant dense<0xFF800000> : vector<2x8xf32>
    %194 = vector.multi_reduction <maximumf>, %193, %cst_68 [2] : vector<2x8x16xf32> to vector<2x8xf32>
    %195 = vector.shape_cast %194 : vector<2x8xf32> to vector<2x8x1xf32>
    %196 = vector.broadcast %195 : vector<2x8x1xf32> to vector<2x8x16xf32>
    %197 = arith.subf %193, %196 : vector<2x8x16xf32>
    %198 = math.exp %197 : vector<2x8x16xf32>
    %cst_69 = arith.constant dense<0.000000e+00> : vector<2x8xf32>
    %199 = vector.multi_reduction <add>, %198, %cst_69 [2] : vector<2x8x16xf32> to vector<2x8xf32>
    %200 = vector.shape_cast %199 : vector<2x8xf32> to vector<2x8x1xf32>
    %201 = vector.broadcast %200 : vector<2x8x1xf32> to vector<2x8x16xf32>
    %202 = arith.divf %198, %201 : vector<2x8x16xf32>
    %203 = vector.extract_strided_slice %140 {offsets = [0, 0, 24], sizes = [2, 16, 8], strides = [1, 1, 1]} : vector<2x16x32xf32> to vector<2x16x8xf32>
    "tpu.trace_start"() <{level = 10 : i32, message = "bqk,bkd->bqd"}> : () -> ()
    %cst_70 = arith.constant dense<0.000000e+00> : vector<2x8x8xf32>
    %204 = tpu.matmul %202, %203, %cst_70 {dimension_numbers = #tpu.dot_dimension_numbers<[2], [1], [1], [2], [0, 0, 0, 1, 1, 2], [0], [0]>} : vector<2x8x16xf32>, vector<2x16x8xf32>, vector<2x8x8xf32> -> vector<2x8x8xf32>
    "tpu.trace_stop"() : () -> ()
    %205 = tpu.concatenate %156, %172, %188, %204 in 2 : vector<2x8x8xf32>, vector<2x8x8xf32>, vector<2x8x8xf32>, vector<2x8x8xf32> -> vector<2x8x32xf32>
    %206 = vector.shape_cast %205 : vector<2x8x32xf32> to vector<16x32xf32>
    %207 = vector.extract_strided_slice %4 {offsets = [0, 96], sizes = [32, 32], strides = [1, 1]} : vector<32x128xf32> to vector<32x32xf32>
    %cst_71 = arith.constant dense<0.000000e+00> : vector<16x32xf32>
    %208 = tpu.matmul %206, %207, %cst_71 {dimension_numbers = #tpu.dot_dimension_numbers<[1], [0], [0], [1], [0, 0, 1, 1], [], []>} : vector<16x32xf32>, vector<32x32xf32>, vector<16x32xf32> -> vector<16x32xf32>
    %209 = vector.extract_strided_slice %5 {offsets = [0, 96], sizes = [1, 32], strides = [1, 1]} : vector<1x128xf32> to vector<1x32xf32>
    %210 = vector.broadcast %209 : vector<1x32xf32> to vector<16x32xf32>
    %211 = arith.addf %208, %210 : vector<16x32xf32>
    %212 = arith.addf %119, %211 : vector<16x32xf32>
    %213 = vector.extract_strided_slice %8 {offsets = [2, 0], sizes = [1, 32], strides = [1, 1]} : vector<6x32xf32> to vector<1x32xf32>
    %214 = vector.extract_strided_slice %8 {offsets = [3, 0], sizes = [1, 32], strides = [1, 1]} : vector<6x32xf32> to vector<1x32xf32>
    %cst_72 = arith.constant dense<0.000000e+00> : vector<16xf32>
    %215 = vector.multi_reduction <add>, %212, %cst_72 [1] : vector<16x32xf32> to vector<16xf32>
    %216 = vector.shape_cast %215 : vector<16xf32> to vector<16x1xf32>
    %cst_73 = arith.constant 3.200000e+01 : f32
    %217 = vector.broadcast %cst_73 : f32 to vector<16x1xf32>
    %218 = arith.divf %216, %217 : vector<16x1xf32>
    %219 = vector.broadcast %218 : vector<16x1xf32> to vector<16x32xf32>
    %220 = arith.subf %212, %219 : vector<16x32xf32>
    %221 = arith.mulf %220, %220 : vector<16x32xf32>
    %cst_74 = arith.constant dense<0.000000e+00> : vector<16xf32>
    %222 = vector.multi_reduction <add>, %221, %cst_74 [1] : vector<16x32xf32> to vector<16xf32>
    %223 = vector.shape_cast %222 : vector<16xf32> to vector<16x1xf32>
    %cst_75 = arith.constant 3.200000e+01 : f32
    %224 = vector.broadcast %cst_75 : f32 to vector<16x1xf32>
    %225 = arith.divf %223, %224 : vector<16x1xf32>
    %cst_76 = arith.constant 9.99999974E-6 : f32
    %226 = vector.broadcast %cst_76 : f32 to vector<16x1xf32>
    %227 = arith.addf %225, %226 : vector<16x1xf32>
    %228 = math.rsqrt %227 : vector<16x1xf32>
    %229 = vector.broadcast %228 : vector<16x1xf32> to vector<16x32xf32>
    %230 = arith.mulf %220, %229 : vector<16x32xf32>
    %231 = vector.broadcast %213 : vector<1x32xf32> to vector<16x32xf32>
    %232 = arith.mulf %230, %231 : vector<16x32xf32>
    %233 = vector.broadcast %214 : vector<1x32xf32> to vector<16x32xf32>
    %234 = arith.addf %232, %233 : vector<16x32xf32>
    %c0_77 = arith.constant 0 : index
    %c0_78 = arith.constant 0 : index
    %235 = vector.load %arg4[%c0_77, %c0_78] : memref<32x32xf32, #tpu.memory_space<vmem>>, vector<32x32xf32>
    %236 = vector.extract_strided_slice %4 {offsets = [0, 32], sizes = [32, 64], strides = [1, 1]} : vector<32x128xf32> to vector<32x64xf32>
    %cst_79 = arith.constant dense<0.000000e+00> : vector<32x64xf32>
    %237 = tpu.matmul %235, %236, %cst_79 {dimension_numbers = #tpu.dot_dimension_numbers<[1], [0], [0], [1], [0, 0, 1, 1], [], []>} : vector<32x32xf32>, vector<32x64xf32>, vector<32x64xf32> -> vector<32x64xf32>
    %238 = vector.extract_strided_slice %5 {offsets = [0, 32], sizes = [1, 64], strides = [1, 1]} : vector<1x128xf32> to vector<1x64xf32>
    %239 = vector.broadcast %238 : vector<1x64xf32> to vector<32x64xf32>
    %240 = arith.addf %237, %239 : vector<32x64xf32>
    %241 = vector.extract_strided_slice %240 {offsets = [0, 0], sizes = [32, 32], strides = [1, 1]} : vector<32x64xf32> to vector<32x32xf32>
    %242 = vector.extract_strided_slice %240 {offsets = [0, 32], sizes = [32, 32], strides = [1, 1]} : vector<32x64xf32> to vector<32x32xf32>
    %243 = vector.shape_cast %125 : vector<16x32xf32> to vector<2x8x32xf32>
    %244 = vector.shape_cast %241 : vector<32x32xf32> to vector<2x16x32xf32>
    %245 = vector.shape_cast %242 : vector<32x32xf32> to vector<2x16x32xf32>
    %246 = vector.extract_strided_slice %243 {offsets = [0, 0, 0], sizes = [2, 8, 8], strides = [1, 1, 1]} : vector<2x8x32xf32> to vector<2x8x8xf32>
    %cst_80 = arith.constant 0.353553385 : f32
    %247 = vector.broadcast %cst_80 : f32 to vector<2x8x8xf32>
    %248 = arith.mulf %246, %247 : vector<2x8x8xf32>
    %249 = vector.extract_strided_slice %244 {offsets = [0, 0, 0], sizes = [2, 16, 8], strides = [1, 1, 1]} : vector<2x16x32xf32> to vector<2x16x8xf32>
    "tpu.trace_start"() <{level = 10 : i32, message = "bqd,bkd->bqk"}> : () -> ()
    %cst_81 = arith.constant dense<0.000000e+00> : vector<2x8x16xf32>
    %250 = tpu.matmul %248, %249, %cst_81 {dimension_numbers = #tpu.dot_dimension_numbers<[2], [2], [1], [1], [0, 0, 0, 1, 1, 1], [0], [0]>} : vector<2x8x8xf32>, vector<2x16x8xf32>, vector<2x8x16xf32> -> vector<2x8x16xf32>
    "tpu.trace_stop"() : () -> ()
    %cst_82 = arith.constant dense<0xFF800000> : vector<2x8xf32>
    %251 = vector.multi_reduction <maximumf>, %250, %cst_82 [2] : vector<2x8x16xf32> to vector<2x8xf32>
    %252 = vector.shape_cast %251 : vector<2x8xf32> to vector<2x8x1xf32>
    %253 = vector.broadcast %252 : vector<2x8x1xf32> to vector<2x8x16xf32>
    %254 = arith.subf %250, %253 : vector<2x8x16xf32>
    %255 = math.exp %254 : vector<2x8x16xf32>
    %cst_83 = arith.constant dense<0.000000e+00> : vector<2x8xf32>
    %256 = vector.multi_reduction <add>, %255, %cst_83 [2] : vector<2x8x16xf32> to vector<2x8xf32>
    %257 = vector.shape_cast %256 : vector<2x8xf32> to vector<2x8x1xf32>
    %258 = vector.broadcast %257 : vector<2x8x1xf32> to vector<2x8x16xf32>
    %259 = arith.divf %255, %258 : vector<2x8x16xf32>
    %260 = vector.extract_strided_slice %245 {offsets = [0, 0, 0], sizes = [2, 16, 8], strides = [1, 1, 1]} : vector<2x16x32xf32> to vector<2x16x8xf32>
    "tpu.trace_start"() <{level = 10 : i32, message = "bqk,bkd->bqd"}> : () -> ()
    %cst_84 = arith.constant dense<0.000000e+00> : vector<2x8x8xf32>
    %261 = tpu.matmul %259, %260, %cst_84 {dimension_numbers = #tpu.dot_dimension_numbers<[2], [1], [1], [2], [0, 0, 0, 1, 1, 2], [0], [0]>} : vector<2x8x16xf32>, vector<2x16x8xf32>, vector<2x8x8xf32> -> vector<2x8x8xf32>
    "tpu.trace_stop"() : () -> ()
    %262 = vector.extract_strided_slice %243 {offsets = [0, 0, 8], sizes = [2, 8, 8], strides = [1, 1, 1]} : vector<2x8x32xf32> to vector<2x8x8xf32>
    %cst_85 = arith.constant 0.353553385 : f32
    %263 = vector.broadcast %cst_85 : f32 to vector<2x8x8xf32>
    %264 = arith.mulf %262, %263 : vector<2x8x8xf32>
    %265 = vector.extract_strided_slice %244 {offsets = [0, 0, 8], sizes = [2, 16, 8], strides = [1, 1, 1]} : vector<2x16x32xf32> to vector<2x16x8xf32>
    "tpu.trace_start"() <{level = 10 : i32, message = "bqd,bkd->bqk"}> : () -> ()
    %cst_86 = arith.constant dense<0.000000e+00> : vector<2x8x16xf32>
    %266 = tpu.matmul %264, %265, %cst_86 {dimension_numbers = #tpu.dot_dimension_numbers<[2], [2], [1], [1], [0, 0, 0, 1, 1, 1], [0], [0]>} : vector<2x8x8xf32>, vector<2x16x8xf32>, vector<2x8x16xf32> -> vector<2x8x16xf32>
    "tpu.trace_stop"() : () -> ()
    %cst_87 = arith.constant dense<0xFF800000> : vector<2x8xf32>
    %267 = vector.multi_reduction <maximumf>, %266, %cst_87 [2] : vector<2x8x16xf32> to vector<2x8xf32>
    %268 = vector.shape_cast %267 : vector<2x8xf32> to vector<2x8x1xf32>
    %269 = vector.broadcast %268 : vector<2x8x1xf32> to vector<2x8x16xf32>
    %270 = arith.subf %266, %269 : vector<2x8x16xf32>
    %271 = math.exp %270 : vector<2x8x16xf32>
    %cst_88 = arith.constant dense<0.000000e+00> : vector<2x8xf32>
    %272 = vector.multi_reduction <add>, %271, %cst_88 [2] : vector<2x8x16xf32> to vector<2x8xf32>
    %273 = vector.shape_cast %272 : vector<2x8xf32> to vector<2x8x1xf32>
    %274 = vector.broadcast %273 : vector<2x8x1xf32> to vector<2x8x16xf32>
    %275 = arith.divf %271, %274 : vector<2x8x16xf32>
    %276 = vector.extract_strided_slice %245 {offsets = [0, 0, 8], sizes = [2, 16, 8], strides = [1, 1, 1]} : vector<2x16x32xf32> to vector<2x16x8xf32>
    "tpu.trace_start"() <{level = 10 : i32, message = "bqk,bkd->bqd"}> : () -> ()
    %cst_89 = arith.constant dense<0.000000e+00> : vector<2x8x8xf32>
    %277 = tpu.matmul %275, %276, %cst_89 {dimension_numbers = #tpu.dot_dimension_numbers<[2], [1], [1], [2], [0, 0, 0, 1, 1, 2], [0], [0]>} : vector<2x8x16xf32>, vector<2x16x8xf32>, vector<2x8x8xf32> -> vector<2x8x8xf32>
    "tpu.trace_stop"() : () -> ()
    %278 = vector.extract_strided_slice %243 {offsets = [0, 0, 16], sizes = [2, 8, 8], strides = [1, 1, 1]} : vector<2x8x32xf32> to vector<2x8x8xf32>
    %cst_90 = arith.constant 0.353553385 : f32
    %279 = vector.broadcast %cst_90 : f32 to vector<2x8x8xf32>
    %280 = arith.mulf %278, %279 : vector<2x8x8xf32>
    %281 = vector.extract_strided_slice %244 {offsets = [0, 0, 16], sizes = [2, 16, 8], strides = [1, 1, 1]} : vector<2x16x32xf32> to vector<2x16x8xf32>
    "tpu.trace_start"() <{level = 10 : i32, message = "bqd,bkd->bqk"}> : () -> ()
    %cst_91 = arith.constant dense<0.000000e+00> : vector<2x8x16xf32>
    %282 = tpu.matmul %280, %281, %cst_91 {dimension_numbers = #tpu.dot_dimension_numbers<[2], [2], [1], [1], [0, 0, 0, 1, 1, 1], [0], [0]>} : vector<2x8x8xf32>, vector<2x16x8xf32>, vector<2x8x16xf32> -> vector<2x8x16xf32>
    "tpu.trace_stop"() : () -> ()
    %cst_92 = arith.constant dense<0xFF800000> : vector<2x8xf32>
    %283 = vector.multi_reduction <maximumf>, %282, %cst_92 [2] : vector<2x8x16xf32> to vector<2x8xf32>
    %284 = vector.shape_cast %283 : vector<2x8xf32> to vector<2x8x1xf32>
    %285 = vector.broadcast %284 : vector<2x8x1xf32> to vector<2x8x16xf32>
    %286 = arith.subf %282, %285 : vector<2x8x16xf32>
    %287 = math.exp %286 : vector<2x8x16xf32>
    %cst_93 = arith.constant dense<0.000000e+00> : vector<2x8xf32>
    %288 = vector.multi_reduction <add>, %287, %cst_93 [2] : vector<2x8x16xf32> to vector<2x8xf32>
    %289 = vector.shape_cast %288 : vector<2x8xf32> to vector<2x8x1xf32>
    %290 = vector.broadcast %289 : vector<2x8x1xf32> to vector<2x8x16xf32>
    %291 = arith.divf %287, %290 : vector<2x8x16xf32>
    %292 = vector.extract_strided_slice %245 {offsets = [0, 0, 16], sizes = [2, 16, 8], strides = [1, 1, 1]} : vector<2x16x32xf32> to vector<2x16x8xf32>
    "tpu.trace_start"() <{level = 10 : i32, message = "bqk,bkd->bqd"}> : () -> ()
    %cst_94 = arith.constant dense<0.000000e+00> : vector<2x8x8xf32>
    %293 = tpu.matmul %291, %292, %cst_94 {dimension_numbers = #tpu.dot_dimension_numbers<[2], [1], [1], [2], [0, 0, 0, 1, 1, 2], [0], [0]>} : vector<2x8x16xf32>, vector<2x16x8xf32>, vector<2x8x8xf32> -> vector<2x8x8xf32>
    "tpu.trace_stop"() : () -> ()
    %294 = vector.extract_strided_slice %243 {offsets = [0, 0, 24], sizes = [2, 8, 8], strides = [1, 1, 1]} : vector<2x8x32xf32> to vector<2x8x8xf32>
    %cst_95 = arith.constant 0.353553385 : f32
    %295 = vector.broadcast %cst_95 : f32 to vector<2x8x8xf32>
    %296 = arith.mulf %294, %295 : vector<2x8x8xf32>
    %297 = vector.extract_strided_slice %244 {offsets = [0, 0, 24], sizes = [2, 16, 8], strides = [1, 1, 1]} : vector<2x16x32xf32> to vector<2x16x8xf32>
    "tpu.trace_start"() <{level = 10 : i32, message = "bqd,bkd->bqk"}> : () -> ()
    %cst_96 = arith.constant dense<0.000000e+00> : vector<2x8x16xf32>
    %298 = tpu.matmul %296, %297, %cst_96 {dimension_numbers = #tpu.dot_dimension_numbers<[2], [2], [1], [1], [0, 0, 0, 1, 1, 1], [0], [0]>} : vector<2x8x8xf32>, vector<2x16x8xf32>, vector<2x8x16xf32> -> vector<2x8x16xf32>
    "tpu.trace_stop"() : () -> ()
    %cst_97 = arith.constant dense<0xFF800000> : vector<2x8xf32>
    %299 = vector.multi_reduction <maximumf>, %298, %cst_97 [2] : vector<2x8x16xf32> to vector<2x8xf32>
    %300 = vector.shape_cast %299 : vector<2x8xf32> to vector<2x8x1xf32>
    %301 = vector.broadcast %300 : vector<2x8x1xf32> to vector<2x8x16xf32>
    %302 = arith.subf %298, %301 : vector<2x8x16xf32>
    %303 = math.exp %302 : vector<2x8x16xf32>
    %cst_98 = arith.constant dense<0.000000e+00> : vector<2x8xf32>
    %304 = vector.multi_reduction <add>, %303, %cst_98 [2] : vector<2x8x16xf32> to vector<2x8xf32>
    %305 = vector.shape_cast %304 : vector<2x8xf32> to vector<2x8x1xf32>
    %306 = vector.broadcast %305 : vector<2x8x1xf32> to vector<2x8x16xf32>
    %307 = arith.divf %303, %306 : vector<2x8x16xf32>
    %308 = vector.extract_strided_slice %245 {offsets = [0, 0, 24], sizes = [2, 16, 8], strides = [1, 1, 1]} : vector<2x16x32xf32> to vector<2x16x8xf32>
    "tpu.trace_start"() <{level = 10 : i32, message = "bqk,bkd->bqd"}> : () -> ()
    %cst_99 = arith.constant dense<0.000000e+00> : vector<2x8x8xf32>
    %309 = tpu.matmul %307, %308, %cst_99 {dimension_numbers = #tpu.dot_dimension_numbers<[2], [1], [1], [2], [0, 0, 0, 1, 1, 2], [0], [0]>} : vector<2x8x16xf32>, vector<2x16x8xf32>, vector<2x8x8xf32> -> vector<2x8x8xf32>
    "tpu.trace_stop"() : () -> ()
    %310 = tpu.concatenate %261, %277, %293, %309 in 2 : vector<2x8x8xf32>, vector<2x8x8xf32>, vector<2x8x8xf32>, vector<2x8x8xf32> -> vector<2x8x32xf32>
    %311 = vector.shape_cast %310 : vector<2x8x32xf32> to vector<16x32xf32>
    %312 = vector.extract_strided_slice %4 {offsets = [0, 96], sizes = [32, 32], strides = [1, 1]} : vector<32x128xf32> to vector<32x32xf32>
    %cst_100 = arith.constant dense<0.000000e+00> : vector<16x32xf32>
    %313 = tpu.matmul %311, %312, %cst_100 {dimension_numbers = #tpu.dot_dimension_numbers<[1], [0], [0], [1], [0, 0, 1, 1], [], []>} : vector<16x32xf32>, vector<32x32xf32>, vector<16x32xf32> -> vector<16x32xf32>
    %314 = vector.extract_strided_slice %5 {offsets = [0, 96], sizes = [1, 32], strides = [1, 1]} : vector<1x128xf32> to vector<1x32xf32>
    %315 = vector.broadcast %314 : vector<1x32xf32> to vector<16x32xf32>
    %316 = arith.addf %313, %315 : vector<16x32xf32>
    %317 = arith.addf %119, %316 : vector<16x32xf32>
    %318 = vector.extract_strided_slice %8 {offsets = [2, 0], sizes = [1, 32], strides = [1, 1]} : vector<6x32xf32> to vector<1x32xf32>
    %319 = vector.extract_strided_slice %8 {offsets = [3, 0], sizes = [1, 32], strides = [1, 1]} : vector<6x32xf32> to vector<1x32xf32>
    %cst_101 = arith.constant dense<0.000000e+00> : vector<16xf32>
    %320 = vector.multi_reduction <add>, %317, %cst_101 [1] : vector<16x32xf32> to vector<16xf32>
    %321 = vector.shape_cast %320 : vector<16xf32> to vector<16x1xf32>
    %cst_102 = arith.constant 3.200000e+01 : f32
    %322 = vector.broadcast %cst_102 : f32 to vector<16x1xf32>
    %323 = arith.divf %321, %322 : vector<16x1xf32>
    %324 = vector.broadcast %323 : vector<16x1xf32> to vector<16x32xf32>
    %325 = arith.subf %317, %324 : vector<16x32xf32>
    %326 = arith.mulf %325, %325 : vector<16x32xf32>
    %cst_103 = arith.constant dense<0.000000e+00> : vector<16xf32>
    %327 = vector.multi_reduction <add>, %326, %cst_103 [1] : vector<16x32xf32> to vector<16xf32>
    %328 = vector.shape_cast %327 : vector<16xf32> to vector<16x1xf32>
    %cst_104 = arith.constant 3.200000e+01 : f32
    %329 = vector.broadcast %cst_104 : f32 to vector<16x1xf32>
    %330 = arith.divf %328, %329 : vector<16x1xf32>
    %cst_105 = arith.constant 9.99999974E-6 : f32
    %331 = vector.broadcast %cst_105 : f32 to vector<16x1xf32>
    %332 = arith.addf %330, %331 : vector<16x1xf32>
    %333 = math.rsqrt %332 : vector<16x1xf32>
    %334 = vector.broadcast %333 : vector<16x1xf32> to vector<16x32xf32>
    %335 = arith.mulf %325, %334 : vector<16x32xf32>
    %336 = vector.broadcast %318 : vector<1x32xf32> to vector<16x32xf32>
    %337 = arith.mulf %335, %336 : vector<16x32xf32>
    %338 = vector.broadcast %319 : vector<1x32xf32> to vector<16x32xf32>
    %339 = arith.addf %337, %338 : vector<16x32xf32>
    %340 = arith.addf %234, %339 : vector<16x32xf32>
    %341 = vector.extract_strided_slice %6 {offsets = [0, 0], sizes = [32, 64], strides = [1, 1]} : vector<33x64xf32> to vector<32x64xf32>
    %cst_106 = arith.constant dense<0.000000e+00> : vector<16x64xf32>
    %342 = tpu.matmul %340, %341, %cst_106 {dimension_numbers = #tpu.dot_dimension_numbers<[1], [0], [0], [1], [0, 0, 1, 1], [], []>} : vector<16x32xf32>, vector<32x64xf32>, vector<16x64xf32> -> vector<16x64xf32>
    %343 = vector.extract_strided_slice %6 {offsets = [32, 0], sizes = [1, 64], strides = [1, 1]} : vector<33x64xf32> to vector<1x64xf32>
    %344 = vector.broadcast %343 : vector<1x64xf32> to vector<16x64xf32>
    %345 = arith.addf %342, %344 : vector<16x64xf32>
    %cst_107 = arith.constant 0.000000e+00 : f32
    %346 = vector.broadcast %cst_107 : f32 to vector<16x64xf32>
    %347 = arith.maximumf %345, %346 : vector<16x64xf32>
    %348 = vector.extract_strided_slice %7 {offsets = [0, 0], sizes = [64, 32], strides = [1, 1]} : vector<65x32xf32> to vector<64x32xf32>
    %cst_108 = arith.constant dense<0.000000e+00> : vector<16x32xf32>
    %349 = tpu.matmul %347, %348, %cst_108 {dimension_numbers = #tpu.dot_dimension_numbers<[1], [0], [0], [1], [0, 0, 1, 1], [], []>} : vector<16x64xf32>, vector<64x32xf32>, vector<16x32xf32> -> vector<16x32xf32>
    %350 = vector.extract_strided_slice %7 {offsets = [64, 0], sizes = [1, 32], strides = [1, 1]} : vector<65x32xf32> to vector<1x32xf32>
    %351 = vector.broadcast %350 : vector<1x32xf32> to vector<16x32xf32>
    %352 = arith.addf %349, %351 : vector<16x32xf32>
    %353 = arith.addf %340, %352 : vector<16x32xf32>
    %354 = vector.extract_strided_slice %8 {offsets = [4, 0], sizes = [1, 32], strides = [1, 1]} : vector<6x32xf32> to vector<1x32xf32>
    %355 = vector.extract_strided_slice %8 {offsets = [5, 0], sizes = [1, 32], strides = [1, 1]} : vector<6x32xf32> to vector<1x32xf32>
    %cst_109 = arith.constant dense<0.000000e+00> : vector<16xf32>
    %356 = vector.multi_reduction <add>, %353, %cst_109 [1] : vector<16x32xf32> to vector<16xf32>
    %357 = vector.shape_cast %356 : vector<16xf32> to vector<16x1xf32>
    %cst_110 = arith.constant 3.200000e+01 : f32
    %358 = vector.broadcast %cst_110 : f32 to vector<16x1xf32>
    %359 = arith.divf %357, %358 : vector<16x1xf32>
    %360 = vector.broadcast %359 : vector<16x1xf32> to vector<16x32xf32>
    %361 = arith.subf %353, %360 : vector<16x32xf32>
    %362 = arith.mulf %361, %361 : vector<16x32xf32>
    %cst_111 = arith.constant dense<0.000000e+00> : vector<16xf32>
    %363 = vector.multi_reduction <add>, %362, %cst_111 [1] : vector<16x32xf32> to vector<16xf32>
    %364 = vector.shape_cast %363 : vector<16xf32> to vector<16x1xf32>
    %cst_112 = arith.constant 3.200000e+01 : f32
    %365 = vector.broadcast %cst_112 : f32 to vector<16x1xf32>
    %366 = arith.divf %364, %365 : vector<16x1xf32>
    %cst_113 = arith.constant 9.99999974E-6 : f32
    %367 = vector.broadcast %cst_113 : f32 to vector<16x1xf32>
    %368 = arith.addf %366, %367 : vector<16x1xf32>
    %369 = math.rsqrt %368 : vector<16x1xf32>
    %370 = vector.broadcast %369 : vector<16x1xf32> to vector<16x32xf32>
    %371 = arith.mulf %361, %370 : vector<16x32xf32>
    %372 = vector.broadcast %354 : vector<1x32xf32> to vector<16x32xf32>
    %373 = arith.mulf %371, %372 : vector<16x32xf32>
    %374 = vector.broadcast %355 : vector<1x32xf32> to vector<16x32xf32>
    %375 = arith.addf %373, %374 : vector<16x32xf32>
    %c0_114 = arith.constant 0 : index
    %c0_115 = arith.constant 0 : index
    %376 = vector.load %arg12[%c0_114, %c0_115] : memref<16x32xf32, #tpu.memory_space<vmem>>, vector<16x32xf32>
    tpu.vector_store %arg12[%c0_114, %c0_115], %375 {strides = array<i32>} : memref<16x32xf32, #tpu.memory_space<vmem>>, vector<16x32xf32>,
    return
  }
}

</mosaic_0001>

<llo_original>
// kernel: transformer_decoder_layer.1
$region0: #{transformer_decoder_layer.1}
  #allocation0 [shape = 'u32[]', space=smem, size = 0x4, offset = 0x4, fixed_abs, tag = 'smem constant byte address 0x4 - core index']
  #allocation1 [shape = 'u32[144,128]{1,0:T(1,128)}', space=vmem, size = 0x12000, scoped, tag = 'internal scratch']
  %s0 = inlined_call_operand.vmem [shape: f32[16,32], index: 0, kind: input, shape index: {}]
  %s1 = inlined_call_operand.vmem [shape: f32[32,32], index: 1, kind: input, shape index: {}]
  %s2 = inlined_call_operand.vmem [shape: f32[16,32], index: 2, kind: input, shape index: {}]
  %s3 = inlined_call_operand.vmem [shape: f32[32,32], index: 3, kind: input, shape index: {}]
  %s4 = inlined_call_operand.vmem [shape: f32[32,32], index: 4, kind: input, shape index: {}]
  %s5 = inlined_call_operand.vmem [shape: f32[32,128], index: 5, kind: input, shape index: {}]
  %s6 = inlined_call_operand.vmem [shape: f32[1,128], index: 6, kind: input, shape index: {}]
  %s7 = inlined_call_operand.vmem [shape: f32[32,128], index: 7, kind: input, shape index: {}]
  %s8 = inlined_call_operand.vmem [shape: f32[1,128], index: 8, kind: input, shape index: {}]
  %s9 = inlined_call_operand.vmem [shape: f32[33,64], index: 9, kind: input, shape index: {}]
  %s10 = inlined_call_operand.vmem [shape: f32[65,32], index: 10, kind: input, shape index: {}]
  %s11 = inlined_call_operand.vmem [shape: f32[6,32], index: 11, kind: input, shape index: {}]
  %s12 = inlined_call_operand.vmem [shape: f32[16,32], index: 12, kind: output, shape index: {}]
  %s13 = sld [smem:[#allocation0]]
  $region58: #{transformer_decoder_layer.1} parent=0
    _
  %s15 = ssub.s32 1, %s13
  %s16 = scalar_select 0, %s15, %s13
  // Predicated region
  $region2: #{transformer_decoder_layer.1} parent=0 // pred_check
    _
  $region3: #{transformer_decoder_layer.1} parent=0 // pred_check_branch
    %18 = sbr.rel (0) target = $region5
  $region4: #{transformer_decoder_layer.1} parent=0 // pred_region
    _
  $region5: #{transformer_decoder_layer.1} parent=0 // pred_fallthru
    _
  // Predicated region
  $region6: #{transformer_decoder_layer.1} parent=0 // pred_check
    _
  $region7: #{transformer_decoder_layer.1} parent=0 // pred_check_branch
    %20 = sbr.rel (0) target = $region9
  $region8: #{transformer_decoder_layer.1} parent=0 // pred_region
    _
  $region9: #{transformer_decoder_layer.1} parent=0 // pred_fallthru
    _
  // Predicated region
  $region10: #{transformer_decoder_layer.1} parent=0 // pred_check
    _
  $region11: #{transformer_decoder_layer.1} parent=0 // pred_check_branch
    %22 = sbr.rel (0) target = $region13
  $region12: #{transformer_decoder_layer.1} parent=0 // pred_region
    _
  $region13: #{transformer_decoder_layer.1} parent=0 // pred_fallthru
    _
  // Predicated region
  $region14: #{transformer_decoder_layer.1} parent=0 // pred_check
    _
  $region15: #{transformer_decoder_layer.1} parent=0 // pred_check_branch
    %24 = sbr.rel (0) target = $region17
  $region16: #{transformer_decoder_layer.1} parent=0 // pred_region
    _
  $region17: #{transformer_decoder_layer.1} parent=0 // pred_fallthru
    _
  // Predicated region
  $region18: #{transformer_decoder_layer.1} parent=0 // pred_check
    _
  $region19: #{transformer_decoder_layer.1} parent=0 // pred_check_branch
    %26 = sbr.rel (0) target = $region21
  $region20: #{transformer_decoder_layer.1} parent=0 // pred_region
    _
  $region21: #{transformer_decoder_layer.1} parent=0 // pred_fallthru
    _
  // Predicated region
  $region22: #{transformer_decoder_layer.1} parent=0 // pred_check
    _
  $region23: #{transformer_decoder_layer.1} parent=0 // pred_check_branch
    %28 = sbr.rel (0) target = $region25
  $region24: #{transformer_decoder_layer.1} parent=0 // pred_region
    _
  $region25: #{transformer_decoder_layer.1} parent=0 // pred_fallthru
    _
  // Predicated region
  $region26: #{transformer_decoder_layer.1} parent=0 // pred_check
    _
  $region27: #{transformer_decoder_layer.1} parent=0 // pred_check_branch
    %30 = sbr.rel (0) target = $region29
  $region28: #{transformer_decoder_layer.1} parent=0 // pred_region
    _
  $region29: #{transformer_decoder_layer.1} parent=0 // pred_fallthru
    _
  // Predicated region
  $region30: #{transformer_decoder_layer.1} parent=0 // pred_check
    _
  $region31: #{transformer_decoder_layer.1} parent=0 // pred_check_branch
    %32 = sbr.rel (0) target = $region33
  $region32: #{transformer_decoder_layer.1} parent=0 // pred_region
    _
  $region33: #{transformer_decoder_layer.1} parent=0 // pred_fallthru
    _
  // Predicated region
  $region34: #{transformer_decoder_layer.1} parent=0 // pred_check
    _
  $region35: #{transformer_decoder_layer.1} parent=0 // pred_check_branch
    %34 = sbr.rel (0) target = $region37
  $region36: #{transformer_decoder_layer.1} parent=0 // pred_region
    _
  $region37: #{transformer_decoder_layer.1} parent=0 // pred_fallthru
    _
  // Predicated region
  $region38: #{transformer_decoder_layer.1} parent=0 // pred_check
    _
  $region39: #{transformer_decoder_layer.1} parent=0 // pred_check_branch
    %36 = sbr.rel (0) target = $region41
  $region40: #{transformer_decoder_layer.1} parent=0 // pred_region
    _
  $region41: #{transformer_decoder_layer.1} parent=0 // pred_fallthru
    _
  // Predicated region
  $region42: #{transformer_decoder_layer.1} parent=0 // pred_check
    _
  $region43: #{transformer_decoder_layer.1} parent=0 // pred_check_branch
    %38 = sbr.rel (0) target = $region45
  $region44: #{transformer_decoder_layer.1} parent=0 // pred_region
    _
  $region45: #{transformer_decoder_layer.1} parent=0 // pred_fallthru
    _
  // Predicated region
  $region46: #{transformer_decoder_layer.1} parent=0 // pred_check
    _
  $region47: #{transformer_decoder_layer.1} parent=0 // pred_check_branch
    %40 = sbr.rel (0) target = $region49
  $region48: #{transformer_decoder_layer.1} parent=0 // pred_region
    _
  $region49: #{transformer_decoder_layer.1} parent=0 // pred_fallthru
    _
  %v41 = vld [vmem:[%s0] sm:$0xff]
  %v42 = vld [vmem:[%s0 + $0x8] sm:$0xff]
  %v43 = vld [vmem:[%s1] sm:$0xff]
  %v44 = vld [vmem:[%s1 + $0x8] sm:$0xff]
  %v45 = vld [vmem:[%s1 + $0x10] sm:$0xff]
  %v46 = vld [vmem:[%s1 + $0x18] sm:$0xff]
  %v47 = vld [vmem:[%s5] sm:$0xff]
  %v48 = vld [vmem:[%s5 + $0x8] sm:$0xff]
  %v49 = vld [vmem:[%s5 + $0x10] sm:$0xff]
  %v50 = vld [vmem:[%s5 + $0x18] sm:$0xff]
  %v51 = vld [vmem:[%s6] sm:$0x1]
  %v52 = vld [vmem:[%s7] sm:$0xff]
  %v53 = vld [vmem:[%s7 + $0x8] sm:$0xff]
  %v54 = vld [vmem:[%s7 + $0x10] sm:$0xff]
  %v55 = vld [vmem:[%s7 + $0x18] sm:$0xff]
  %v56 = vld [vmem:[%s8] sm:$0x1]
  %v57 = vld [vmem:[%s9] sm:$0xff]
  %v58 = vld [vmem:[%s9 + $0x8] sm:$0xff]
  %v59 = vld [vmem:[%s9 + $0x10] sm:$0xff]
  %v60 = vld [vmem:[%s9 + $0x18] sm:$0xff]
  %v61 = vld [vmem:[%s9 + $0x20] sm:$0x1]
  %v62 = vld [vmem:[%s10] sm:$0xff]
  %v63 = vld [vmem:[%s10 + $0x8] sm:$0xff]
  %v64 = vld [vmem:[%s10 + $0x10] sm:$0xff]
  %v65 = vld [vmem:[%s10 + $0x18] sm:$0xff]
  %v66 = vld [vmem:[%s10 + $0x20] sm:$0xff]
  %v67 = vld [vmem:[%s10 + $0x28] sm:$0xff]
  %v68 = vld [vmem:[%s10 + $0x30] sm:$0xff]
  %v69 = vld [vmem:[%s10 + $0x38] sm:$0xff]
  %v70 = vld [vmem:[%s10 + $0x40] sm:$0x1]
  %v71 = vld [vmem:[%s11] sm:$0x3f]
  %v72 = vld [vmem:[%s2] sm:$0xff]
  %v73 = vld [vmem:[%s2 + $0x8] sm:$0xff]
  %v74 = vadd.f32 %v41, %v72
  %v75 = vadd.f32 %v42, %v73
  %v77 = vlaneseq
  %v78 = vshrl.u32 %v77, 7
  %v79 = vsub.s32 0, %v78
  %v80 = vrot.slane %v51, %v79
  %vm82 = vcmask 261120
  %v84 = vsel %vm82, %v74, 0
  %v87 = vsel %vm82, %v75, 0
  %89 = vmatprep.subr.mxu0 0.0
  %90 = vmatpush1.msra.mxu0 %v47
  %91 = vmatprep.subr.mxu0 0.0
  %92 = vmatpush1.msra.mxu0 %v48
  %93 = vmatprep.subr.mxu0 0.0
  %94 = vmatpush1.msra.mxu0 %v49
  %95 = vmatprep.subr.mxu0 0.0
  %96 = vmatpush1.msra.mxu0 %v50
  %97 = vmatprep.subr.mxu0 0.0
  %98 = vmatpush1.msra.mxu0 0.0
  %99 = vmatprep.subr.mxu0 0.0
  %100 = vmatpush1.msra.mxu0 0.0
  %101 = vmatprep.subr.mxu0 0.0
  %102 = vmatpush1.msra.mxu0 0.0
  %103 = vmatprep.subr.mxu0 0.0
  %104 = vmatpush1.msra.mxu0 0.0
  %105 = vmatprep.subr.mxu0 0.0
  %106 = vmatpush1.msra.mxu0 0.0
  %107 = vmatprep.subr.mxu0 0.0
  %108 = vmatpush1.msra.mxu0 0.0
  %109 = vmatprep.subr.mxu0 0.0
  %110 = vmatpush1.msra.mxu0 0.0
  %111 = vmatprep.subr.mxu0 0.0
  %112 = vmatpush1.msra.mxu0 0.0
  %113 = vmatprep.subr.mxu0 0.0
  %114 = vmatpush1.msra.mxu0 0.0
  %115 = vmatprep.subr.mxu0 0.0
  %116 = vmatpush1.msra.mxu0 0.0
  %117 = vmatprep.subr.mxu0 0.0
  %118 = vmatpush1.msra.mxu0 0.0
  %119 = vmatprep.subr.mxu0 0.0
  %120 = vmatpush1.msra.mxu0 0.0
  %121 = vmatprep.subr.mxu0 0.0
  %122 = vmatpush1.msra.mxu0 0.0
  %123 = vmatprep.subr.mxu0 0.0
  %124 = vmatpush1.msra.mxu0 0.0
  %125 = vmatprep.subr.mxu0 0.0
  %126 = vmatpush1.msra.mxu0 0.0
  %127 = vmatprep.subr.mxu0 0.0
  %128 = vmatpush1.msra.mxu0 0.0
  %129 = vmatprep.subr.mxu0 0.0
  %130 = vmatpush1.msra.mxu0 0.0
  %131 = vmatprep.subr.mxu0 0.0
  %132 = vmatpush1.msra.mxu0 0.0
  %133 = vmatprep.subr.mxu0 0.0
  %134 = vmatpush1.msra.mxu0 0.0
  %135 = vmatprep.subr.mxu0 0.0
  %136 = vmatpush1.msra.mxu0 0.0
  %137 = vmatprep.subr.mxu0 0.0
  %138 = vmatpush1.msra.mxu0 0.0
  %139 = vmatprep.subr.mxu0 0.0
  %140 = vmatpush1.msra.mxu0 0.0
  %141 = vmatprep.subr.mxu0 0.0
  %142 = vmatpush1.msra.mxu0 0.0
  %143 = vmatprep.subr.mxu0 0.0
  %144 = vmatpush1.msra.mxu0 0.0
  %145 = vmatprep.subr.mxu0 0.0
  %146 = vmatpush1.msra.mxu0 0.0
  %147 = vmatprep.subr.mxu0 0.0
  %148 = vmatpush1.msra.mxu0 0.0
  %149 = vmatprep.subr.mxu0 0.0
  %150 = vmatpush1.msra.mxu0 0.0
  %151 = vmatprep.subr.mxu0 0.0
  %152 = vmatpush1.msra.mxu0 0.0
  %153 = vmatprep.mubr.f32.mxu0 0.0
  %154 = vmatmul.mubr.f32.gmra.mrb[0].mxu0 %v84
  %v155 = vpop.f32.mrb[0].mxu0
  %v156 = vadd.f32 %v80, %v155
  %v157 = vpop.f32.mrb[0].mxu0
  %158 = vmatprep.mubr.f32.mxu0 0.0
  %159 = vmatmul.mubr.f32.gmra.mrb[0].mxu0 %v87
  %v160 = vpop.f32.mrb[0].mxu0
  %v161 = vadd.f32 %v80, %v160
  %v162 = vpop.f32.mrb[0].mxu0
  %163 = vdwg.mxu0
  %168 = vrot.lane.b32.xlu0 %v47, 64
  %v169 = vpop.permute.xlu0 %168
  %170 = vrot.lane.b32.xlu0 %v48, 64
  %v171 = vpop.permute.xlu0 %170
  %172 = vrot.lane.b32.xlu0 %v49, 64
  %v173 = vpop.permute.xlu0 %172
  %174 = vrot.lane.b32.xlu0 %v50, 64
  %v175 = vpop.permute.xlu0 %174
  %180 = vrot.lane.b32.xlu0 %v80, 64
  %v181 = vpop.permute.xlu0 %180
  %v184 = vsel %vm82, %v41, 0
  %v187 = vsel %vm82, %v42, 0
  %189 = vmatprep.subr.mxu0 0.0
  %190 = vmatpush1.msra.mxu0 %v169
  %191 = vmatprep.subr.mxu0 0.0
  %192 = vmatpush1.msra.mxu0 %v171
  %193 = vmatprep.subr.mxu0 0.0
  %194 = vmatpush1.msra.mxu0 %v173
  %195 = vmatprep.subr.mxu0 0.0
  %196 = vmatpush1.msra.mxu0 %v175
  %197 = vmatprep.subr.mxu0 0.0
  %198 = vmatpush1.msra.mxu0 0.0
  %199 = vmatprep.subr.mxu0 0.0
  %200 = vmatpush1.msra.mxu0 0.0
  %201 = vmatprep.subr.mxu0 0.0
  %202 = vmatpush1.msra.mxu0 0.0
  %203 = vmatprep.subr.mxu0 0.0
  %204 = vmatpush1.msra.mxu0 0.0
  %205 = vmatprep.subr.mxu0 0.0
  %206 = vmatpush1.msra.mxu0 0.0
  %207 = vmatprep.subr.mxu0 0.0
  %208 = vmatpush1.msra.mxu0 0.0
  %209 = vmatprep.subr.mxu0 0.0
  %210 = vmatpush1.msra.mxu0 0.0
  %211 = vmatprep.subr.mxu0 0.0
  %212 = vmatpush1.msra.mxu0 0.0
  %213 = vmatprep.subr.mxu0 0.0
  %214 = vmatpush1.msra.mxu0 0.0
  %215 = vmatprep.subr.mxu0 0.0
  %216 = vmatpush1.msra.mxu0 0.0
  %217 = vmatprep.subr.mxu0 0.0
  %218 = vmatpush1.msra.mxu0 0.0
  %219 = vmatprep.subr.mxu0 0.0
  %220 = vmatpush1.msra.mxu0 0.0
  %221 = vmatprep.subr.mxu0 0.0
  %222 = vmatpush1.msra.mxu0 0.0
  %223 = vmatprep.subr.mxu0 0.0
  %224 = vmatpush1.msra.mxu0 0.0
  %225 = vmatprep.subr.mxu0 0.0
  %226 = vmatpush1.msra.mxu0 0.0
  %227 = vmatprep.subr.mxu0 0.0
  %228 = vmatpush1.msra.mxu0 0.0
  %229 = vmatprep.subr.mxu0 0.0
  %230 = vmatpush1.msra.mxu0 0.0
  %231 = vmatprep.subr.mxu0 0.0
  %232 = vmatpush1.msra.mxu0 0.0
  %233 = vmatprep.subr.mxu0 0.0
  %234 = vmatpush1.msra.mxu0 0.0
  %235 = vmatprep.subr.mxu0 0.0
  %236 = vmatpush1.msra.mxu0 0.0
  %237 = vmatprep.subr.mxu0 0.0
  %238 = vmatpush1.msra.mxu0 0.0
  %239 = vmatprep.subr.mxu0 0.0
  %240 = vmatpush1.msra.mxu0 0.0
  %241 = vmatprep.subr.mxu0 0.0
  %242 = vmatpush1.msra.mxu0 0.0
  %243 = vmatprep.subr.mxu0 0.0
  %244 = vmatpush1.msra.mxu0 0.0
  %245 = vmatprep.subr.mxu0 0.0
  %246 = vmatpush1.msra.mxu0 0.0
  %247 = vmatprep.subr.mxu0 0.0
  %248 = vmatpush1.msra.mxu0 0.0
  %249 = vmatprep.subr.mxu0 0.0
  %250 = vmatpush1.msra.mxu0 0.0
  %251 = vmatprep.subr.mxu0 0.0
  %252 = vmatpush1.msra.mxu0 0.0
  %253 = vmatprep.mubr.f32.mxu0 0.0
  %254 = vmatmul.mubr.f32.gmra.mrb[0].mxu0 %v184
  %v255 = vpop.f32.mrb[0].mxu0
  %v256 = vadd.f32 %v181, %v255
  %v257 = vpop.f32.mrb[0].mxu0
  %258 = vmatprep.mubr.f32.mxu0 0.0
  %259 = vmatmul.mubr.f32.gmra.mrb[0].mxu0 %v187
  %v260 = vpop.f32.mrb[0].mxu0
  %v261 = vadd.f32 %v181, %v260
  %v262 = vpop.f32.mrb[0].mxu0
  %263 = vdwg.mxu0
  %v264 = vmul.f32 %v156, 0.35355338
  %v265 = vmul.f32 %v161, 0.35355338
  %267 = vrot.lane.b32.xlu0 %v156, 96
  %v268 = vpop.permute.xlu0 %267
  %vm269 = vcmask 64512
  %v271 = vsel %vm269, %v264, 0
  %v273 = vsel %vm269, %v268, 0
  %275 = vmatprep.subr.mxu0 0.0
  %276 = vmatpush1.xpose.msra.mxu0 %v273
  %277 = vmatprep.subr.mxu0 0.0
  %278 = vmatpush1.xpose.msra.mxu0 0.0
  %279 = vmatprep.subr.mxu0 0.0
  %280 = vmatpush1.xpose.msra.mxu0 0.0
  %281 = vmatprep.subr.mxu0 0.0
  %282 = vmatpush1.xpose.msra.mxu0 0.0
  %283 = vmatprep.subr.mxu0 0.0
  %284 = vmatpush1.xpose.msra.mxu0 0.0
  %285 = vmatprep.subr.mxu0 0.0
  %286 = vmatpush1.xpose.msra.mxu0 0.0
  %287 = vmatprep.subr.mxu0 0.0
  %288 = vmatpush1.xpose.msra.mxu0 0.0
  %289 = vmatprep.subr.mxu0 0.0
  %290 = vmatpush1.xpose.msra.mxu0 0.0
  %291 = vmatprep.subr.mxu0 0.0
  %292 = vmatpush1.xpose.msra.mxu0 0.0
  %293 = vmatprep.subr.mxu0 0.0
  %294 = vmatpush1.xpose.msra.mxu0 0.0
  %295 = vmatprep.subr.mxu0 0.0
  %296 = vmatpush1.xpose.msra.mxu0 0.0
  %297 = vmatprep.subr.mxu0 0.0
  %298 = vmatpush1.xpose.msra.mxu0 0.0
  %299 = vmatprep.subr.mxu0 0.0
  %300 = vmatpush1.xpose.msra.mxu0 0.0
  %301 = vmatprep.subr.mxu0 0.0
  %302 = vmatpush1.xpose.msra.mxu0 0.0
  %303 = vmatprep.subr.mxu0 0.0
  %304 = vmatpush1.xpose.msra.mxu0 0.0
  %305 = vmatprep.subr.mxu0 0.0
  %306 = vmatpush1.xpose.msra.mxu0 0.0
  %307 = vmatprep.subr.mxu0 0.0
  %308 = vmatpush1.xpose.msra.mxu0 0.0
  %309 = vmatprep.subr.mxu0 0.0
  %310 = vmatpush1.xpose.msra.mxu0 0.0
  %311 = vmatprep.subr.mxu0 0.0
  %312 = vmatpush1.xpose.msra.mxu0 0.0
  %313 = vmatprep.subr.mxu0 0.0
  %314 = vmatpush1.xpose.msra.mxu0 0.0
  %315 = vmatprep.subr.mxu0 0.0
  %316 = vmatpush1.xpose.msra.mxu0 0.0
  %317 = vmatprep.subr.mxu0 0.0
  %318 = vmatpush1.xpose.msra.mxu0 0.0
  %319 = vmatprep.subr.mxu0 0.0
  %320 = vmatpush1.xpose.msra.mxu0 0.0
  %321 = vmatprep.subr.mxu0 0.0
  %322 = vmatpush1.xpose.msra.mxu0 0.0
  %323 = vmatprep.subr.mxu0 0.0
  %324 = vmatpush1.xpose.msra.mxu0 0.0
  %325 = vmatprep.subr.mxu0 0.0
  %326 = vmatpush1.xpose.msra.mxu0 0.0
  %327 = vmatprep.subr.mxu0 0.0
  %328 = vmatpush1.xpose.msra.mxu0 0.0
  %329 = vmatprep.subr.mxu0 0.0
  %330 = vmatpush1.xpose.msra.mxu0 0.0
  %331 = vmatprep.subr.mxu0 0.0
  %332 = vmatpush1.xpose.msra.mxu0 0.0
  %333 = vmatprep.subr.mxu0 0.0
  %334 = vmatpush1.xpose.msra.mxu0 0.0
  %335 = vmatprep.subr.mxu0 0.0
  %336 = vmatpush1.xpose.msra.mxu0 0.0
  %337 = vmatprep.subr.mxu0 0.0
  %338 = vmatpush1.xpose.msra.mxu0 0.0
  %339 = vmatprep.mubr.f32.mxu0 0.0
  %340 = vmatmul.mubr.f32.gmra.mrb[0].mxu0 %v271
  %v341 = vpop.f32.mrb[0].mxu0
  %v342 = vadd.f32 0.0, %v341
  %v343 = vpop.f32.mrb[0].mxu0
  %344 = vdwg.mxu0
  %346 = vrot.lane.b32.xlu0 %v161, 96
  %v347 = vpop.permute.xlu0 %346
  %v349 = vsel %vm269, %v265, 0
  %v351 = vsel %vm269, %v347, 0
  %353 = vmatprep.subr.mxu0 0.0
  %354 = vmatpush1.xpose.msra.mxu0 %v351
  %355 = vmatprep.subr.mxu0 0.0
  %356 = vmatpush1.xpose.msra.mxu0 0.0
  %357 = vmatprep.subr.mxu0 0.0
  %358 = vmatpush1.xpose.msra.mxu0 0.0
  %359 = vmatprep.subr.mxu0 0.0
  %360 = vmatpush1.xpose.msra.mxu0 0.0
  %361 = vmatprep.subr.mxu0 0.0
  %362 = vmatpush1.xpose.msra.mxu0 0.0
  %363 = vmatprep.subr.mxu0 0.0
  %364 = vmatpush1.xpose.msra.mxu0 0.0
  %365 = vmatprep.subr.mxu0 0.0
  %366 = vmatpush1.xpose.msra.mxu0 0.0
  %367 = vmatprep.subr.mxu0 0.0
  %368 = vmatpush1.xpose.msra.mxu0 0.0
  %369 = vmatprep.subr.mxu0 0.0
  %370 = vmatpush1.xpose.msra.mxu0 0.0
  %371 = vmatprep.subr.mxu0 0.0
  %372 = vmatpush1.xpose.msra.mxu0 0.0
  %373 = vmatprep.subr.mxu0 0.0
  %374 = vmatpush1.xpose.msra.mxu0 0.0
  %375 = vmatprep.subr.mxu0 0.0
  %376 = vmatpush1.xpose.msra.mxu0 0.0
  %377 = vmatprep.subr.mxu0 0.0
  %378 = vmatpush1.xpose.msra.mxu0 0.0
  %379 = vmatprep.subr.mxu0 0.0
  %380 = vmatpush1.xpose.msra.mxu0 0.0
  %381 = vmatprep.subr.mxu0 0.0
  %382 = vmatpush1.xpose.msra.mxu0 0.0
  %383 = vmatprep.subr.mxu0 0.0
  %384 = vmatpush1.xpose.msra.mxu0 0.0
  %385 = vmatprep.subr.mxu0 0.0
  %386 = vmatpush1.xpose.msra.mxu0 0.0
  %387 = vmatprep.subr.mxu0 0.0
  %388 = vmatpush1.xpose.msra.mxu0 0.0
  %389 = vmatprep.subr.mxu0 0.0
  %390 = vmatpush1.xpose.msra.mxu0 0.0
  %391 = vmatprep.subr.mxu0 0.0
  %392 = vmatpush1.xpose.msra.mxu0 0.0
  %393 = vmatprep.subr.mxu0 0.0
  %394 = vmatpush1.xpose.msra.mxu0 0.0
  %395 = vmatprep.subr.mxu0 0.0
  %396 = vmatpush1.xpose.msra.mxu0 0.0
  %397 = vmatprep.subr.mxu0 0.0
  %398 = vmatpush1.xpose.msra.mxu0 0.0
  %399 = vmatprep.subr.mxu0 0.0
  %400 = vmatpush1.xpose.msra.mxu0 0.0
  %401 = vmatprep.subr.mxu0 0.0
  %402 = vmatpush1.xpose.msra.mxu0 0.0
  %403 = vmatprep.subr.mxu0 0.0
  %404 = vmatpush1.xpose.msra.mxu0 0.0
  %405 = vmatprep.subr.mxu0 0.0
  %406 = vmatpush1.xpose.msra.mxu0 0.0
  %407 = vmatprep.subr.mxu0 0.0
  %408 = vmatpush1.xpose.msra.mxu0 0.0
  %409 = vmatprep.subr.mxu0 0.0
  %410 = vmatpush1.xpose.msra.mxu0 0.0
  %411 = vmatprep.subr.mxu0 0.0
  %412 = vmatpush1.xpose.msra.mxu0 0.0
  %413 = vmatprep.subr.mxu0 0.0
  %414 = vmatpush1.xpose.msra.mxu0 0.0
  %415 = vmatprep.subr.mxu0 0.0
  %416 = vmatpush1.xpose.msra.mxu0 0.0
  %417 = vmatprep.mubr.f32.mxu0 0.0
  %418 = vmatmul.mubr.f32.gmra.mrb[0].mxu0 %v349
  %v419 = vpop.f32.mrb[0].mxu0
  %v420 = vadd.f32 0.0, %v419
  %v421 = vpop.f32.mrb[0].mxu0
  %422 = vdwg.mxu0
  %v423 = vsel %vm269, %v342, -inf
  %424 = vmax.xlane.f32.xlu0 %v423
  %v425 = vpop.xlane.xlu0 %424
  %v426 = vsel %vm269, %v420, -inf
  %427 = vmax.xlane.f32.xlu0 %v426
  %v428 = vpop.xlane.xlu0 %427
  %v429 = vsub.f32 %v342, %v425
  %v430 = vsub.f32 %v420, %v428
  %v431 = vmul.f32 %v429, 1.442695
  %v432 = vpow.pop %v431
  %v433 = vmul.f32 %v430, 1.442695
  %v434 = vpow.pop %v433
  %v435 = vsel %vm269, %v432, 0.0
  %436 = vadd.xlane.f32.xlu0 %v435
  %v437 = vpop.xlane.xlu0 %436
  %v438 = vsel %vm269, %v434, 0.0
  %439 = vadd.xlane.f32.xlu0 %v438
  %v440 = vpop.xlane.xlu0 %439
  %v441 = vrcp.pop %v437
  %v442 = vmul.f32 %v432, %v441
  %v443 = vrcp.pop %v440
  %v444 = vmul.f32 %v434, %v443
  %v446 = vsel %vm269, %v442, 0
  %448 = vmatprep.subr.mxu0 0.0
  %449 = vmatpush1.msra.mxu0 %v256
  %450 = vmatprep.subr.mxu0 0.0
  %451 = vmatpush1.msra.mxu0 0.0
  %452 = vmatprep.subr.mxu0 0.0
  %453 = vmatpush1.msra.mxu0 0.0
  %454 = vmatprep.subr.mxu0 0.0
  %455 = vmatpush1.msra.mxu0 0.0
  %456 = vmatprep.subr.mxu0 0.0
  %457 = vmatpush1.msra.mxu0 0.0
  %458 = vmatprep.subr.mxu0 0.0
  %459 = vmatpush1.msra.mxu0 0.0
  %460 = vmatprep.subr.mxu0 0.0
  %461 = vmatpush1.msra.mxu0 0.0
  %462 = vmatprep.subr.mxu0 0.0
  %463 = vmatpush1.msra.mxu0 0.0
  %464 = vmatprep.subr.mxu0 0.0
  %465 = vmatpush1.msra.mxu0 0.0
  %466 = vmatprep.subr.mxu0 0.0
  %467 = vmatpush1.msra.mxu0 0.0
  %468 = vmatprep.subr.mxu0 0.0
  %469 = vmatpush1.msra.mxu0 0.0
  %470 = vmatprep.subr.mxu0 0.0
  %471 = vmatpush1.msra.mxu0 0.0
  %472 = vmatprep.subr.mxu0 0.0
  %473 = vmatpush1.msra.mxu0 0.0
  %474 = vmatprep.subr.mxu0 0.0
  %475 = vmatpush1.msra.mxu0 0.0
  %476 = vmatprep.subr.mxu0 0.0
  %477 = vmatpush1.msra.mxu0 0.0
  %478 = vmatprep.subr.mxu0 0.0
  %479 = vmatpush1.msra.mxu0 0.0
  %480 = vmatprep.subr.mxu0 0.0
  %481 = vmatpush1.msra.mxu0 0.0
  %482 = vmatprep.subr.mxu0 0.0
  %483 = vmatpush1.msra.mxu0 0.0
  %484 = vmatprep.subr.mxu0 0.0
  %485 = vmatpush1.msra.mxu0 0.0
  %486 = vmatprep.subr.mxu0 0.0
  %487 = vmatpush1.msra.mxu0 0.0
  %488 = vmatprep.subr.mxu0 0.0
  %489 = vmatpush1.msra.mxu0 0.0
  %490 = vmatprep.subr.mxu0 0.0
  %491 = vmatpush1.msra.mxu0 0.0
  %492 = vmatprep.subr.mxu0 0.0
  %493 = vmatpush1.msra.mxu0 0.0
  %494 = vmatprep.subr.mxu0 0.0
  %495 = vmatpush1.msra.mxu0 0.0
  %496 = vmatprep.subr.mxu0 0.0
  %497 = vmatpush1.msra.mxu0 0.0
  %498 = vmatprep.subr.mxu0 0.0
  %499 = vmatpush1.msra.mxu0 0.0
  %500 = vmatprep.subr.mxu0 0.0
  %501 = vmatpush1.msra.mxu0 0.0
  %502 = vmatprep.subr.mxu0 0.0
  %503 = vmatpush1.msra.mxu0 0.0
  %504 = vmatprep.subr.mxu0 0.0
  %505 = vmatpush1.msra.mxu0 0.0
  %506 = vmatprep.subr.mxu0 0.0
  %507 = vmatpush1.msra.mxu0 0.0
  %508 = vmatprep.subr.mxu0 0.0
  %509 = vmatpush1.msra.mxu0 0.0
  %510 = vmatprep.subr.mxu0 0.0
  %511 = vmatpush1.msra.mxu0 0.0
  %512 = vmatprep.mubr.f32.mxu0 0.0
  %513 = vmatmul.mubr.f32.gmra.mrb[0].mxu0 %v446
  %v514 = vpop.f32.mrb[0].mxu0
  %v515 = vadd.f32 0.0, %v514
  %v516 = vpop.f32.mrb[0].mxu0
  %517 = vdwg.mxu0
  %v519 = vsel %vm269, %v444, 0
  %521 = vmatprep.subr.mxu0 0.0
  %522 = vmatpush1.msra.mxu0 %v261
  %523 = vmatprep.subr.mxu0 0.0
  %524 = vmatpush1.msra.mxu0 0.0
  %525 = vmatprep.subr.mxu0 0.0
  %526 = vmatpush1.msra.mxu0 0.0
  %527 = vmatprep.subr.mxu0 0.0
  %528 = vmatpush1.msra.mxu0 0.0
  %529 = vmatprep.subr.mxu0 0.0
  %530 = vmatpush1.msra.mxu0 0.0
  %531 = vmatprep.subr.mxu0 0.0
  %532 = vmatpush1.msra.mxu0 0.0
  %533 = vmatprep.subr.mxu0 0.0
  %534 = vmatpush1.msra.mxu0 0.0
  %535 = vmatprep.subr.mxu0 0.0
  %536 = vmatpush1.msra.mxu0 0.0
  %537 = vmatprep.subr.mxu0 0.0
  %538 = vmatpush1.msra.mxu0 0.0
  %539 = vmatprep.subr.mxu0 0.0
  %540 = vmatpush1.msra.mxu0 0.0
  %541 = vmatprep.subr.mxu0 0.0
  %542 = vmatpush1.msra.mxu0 0.0
  %543 = vmatprep.subr.mxu0 0.0
  %544 = vmatpush1.msra.mxu0 0.0
  %545 = vmatprep.subr.mxu0 0.0
  %546 = vmatpush1.msra.mxu0 0.0
  %547 = vmatprep.subr.mxu0 0.0
  %548 = vmatpush1.msra.mxu0 0.0
  %549 = vmatprep.subr.mxu0 0.0
  %550 = vmatpush1.msra.mxu0 0.0
  %551 = vmatprep.subr.mxu0 0.0
  %552 = vmatpush1.msra.mxu0 0.0
  %553 = vmatprep.subr.mxu0 0.0
  %554 = vmatpush1.msra.mxu0 0.0
  %555 = vmatprep.subr.mxu0 0.0
  %556 = vmatpush1.msra.mxu0 0.0
  %557 = vmatprep.subr.mxu0 0.0
  %558 = vmatpush1.msra.mxu0 0.0
  %559 = vmatprep.subr.mxu0 0.0
  %560 = vmatpush1.msra.mxu0 0.0
  %561 = vmatprep.subr.mxu0 0.0
  %562 = vmatpush1.msra.mxu0 0.0
  %563 = vmatprep.subr.mxu0 0.0
  %564 = vmatpush1.msra.mxu0 0.0
  %565 = vmatprep.subr.mxu0 0.0
  %566 = vmatpush1.msra.mxu0 0.0
  %567 = vmatprep.subr.mxu0 0.0
  %568 = vmatpush1.msra.mxu0 0.0
  %569 = vmatprep.subr.mxu0 0.0
  %570 = vmatpush1.msra.mxu0 0.0
  %571 = vmatprep.subr.mxu0 0.0
  %572 = vmatpush1.msra.mxu0 0.0
  %573 = vmatprep.subr.mxu0 0.0
  %574 = vmatpush1.msra.mxu0 0.0
  %575 = vmatprep.subr.mxu0 0.0
  %576 = vmatpush1.msra.mxu0 0.0
  %577 = vmatprep.subr.mxu0 0.0
  %578 = vmatpush1.msra.mxu0 0.0
  %579 = vmatprep.subr.mxu0 0.0
  %580 = vmatpush1.msra.mxu0 0.0
  %581 = vmatprep.subr.mxu0 0.0
  %582 = vmatpush1.msra.mxu0 0.0
  %583 = vmatprep.subr.mxu0 0.0
  %584 = vmatpush1.msra.mxu0 0.0
  %585 = vmatprep.mubr.f32.mxu0 0.0
  %586 = vmatmul.mubr.f32.gmra.mrb[0].mxu0 %v519
  %v587 = vpop.f32.mrb[0].mxu0
  %v588 = vadd.f32 0.0, %v587
  %v589 = vpop.f32.mrb[0].mxu0
  %590 = vdwg.mxu0
  %591 = vrot.lane.b32.xlu0 %v264, 120
  %v592 = vpop.permute.xlu0 %591
  %593 = vrot.lane.b32.xlu0 %v156, 88
  %v594 = vpop.permute.xlu0 %593
  %v595 = vsel %vm269, %v592, 0
  %v597 = vsel %vm269, %v594, 0
  %599 = vmatprep.subr.mxu0 0.0
  %600 = vmatpush1.xpose.msra.mxu0 %v597
  %601 = vmatprep.subr.mxu0 0.0
  %602 = vmatpush1.xpose.msra.mxu0 0.0
  %603 = vmatprep.subr.mxu0 0.0
  %604 = vmatpush1.xpose.msra.mxu0 0.0
  %605 = vmatprep.subr.mxu0 0.0
  %606 = vmatpush1.xpose.msra.mxu0 0.0
  %607 = vmatprep.subr.mxu0 0.0
  %608 = vmatpush1.xpose.msra.mxu0 0.0
  %609 = vmatprep.subr.mxu0 0.0
  %610 = vmatpush1.xpose.msra.mxu0 0.0
  %611 = vmatprep.subr.mxu0 0.0
  %612 = vmatpush1.xpose.msra.mxu0 0.0
  %613 = vmatprep.subr.mxu0 0.0
  %614 = vmatpush1.xpose.msra.mxu0 0.0
  %615 = vmatprep.subr.mxu0 0.0
  %616 = vmatpush1.xpose.msra.mxu0 0.0
  %617 = vmatprep.subr.mxu0 0.0
  %618 = vmatpush1.xpose.msra.mxu0 0.0
  %619 = vmatprep.subr.mxu0 0.0
  %620 = vmatpush1.xpose.msra.mxu0 0.0
  %621 = vmatprep.subr.mxu0 0.0
  %622 = vmatpush1.xpose.msra.mxu0 0.0
  %623 = vmatprep.subr.mxu0 0.0
  %624 = vmatpush1.xpose.msra.mxu0 0.0
  %625 = vmatprep.subr.mxu0 0.0
  %626 = vmatpush1.xpose.msra.mxu0 0.0
  %627 = vmatprep.subr.mxu0 0.0
  %628 = vmatpush1.xpose.msra.mxu0 0.0
  %629 = vmatprep.subr.mxu0 0.0
  %630 = vmatpush1.xpose.msra.mxu0 0.0
  %631 = vmatprep.subr.mxu0 0.0
  %632 = vmatpush1.xpose.msra.mxu0 0.0
  %633 = vmatprep.subr.mxu0 0.0
  %634 = vmatpush1.xpose.msra.mxu0 0.0
  %635 = vmatprep.subr.mxu0 0.0
  %636 = vmatpush1.xpose.msra.mxu0 0.0
  %637 = vmatprep.subr.mxu0 0.0
  %638 = vmatpush1.xpose.msra.mxu0 0.0
  %639 = vmatprep.subr.mxu0 0.0
  %640 = vmatpush1.xpose.msra.mxu0 0.0
  %641 = vmatprep.subr.mxu0 0.0
  %642 = vmatpush1.xpose.msra.mxu0 0.0
  %643 = vmatprep.subr.mxu0 0.0
  %644 = vmatpush1.xpose.msra.mxu0 0.0
  %645 = vmatprep.subr.mxu0 0.0
  %646 = vmatpush1.xpose.msra.mxu0 0.0
  %647 = vmatprep.subr.mxu0 0.0
  %648 = vmatpush1.xpose.msra.mxu0 0.0
  %649 = vmatprep.subr.mxu0 0.0
  %650 = vmatpush1.xpose.msra.mxu0 0.0
  %651 = vmatprep.subr.mxu0 0.0
  %652 = vmatpush1.xpose.msra.mxu0 0.0
  %653 = vmatprep.subr.mxu0 0.0
  %654 = vmatpush1.xpose.msra.mxu0 0.0
  %655 = vmatprep.subr.mxu0 0.0
  %656 = vmatpush1.xpose.msra.mxu0 0.0
  %657 = vmatprep.subr.mxu0 0.0
  %658 = vmatpush1.xpose.msra.mxu0 0.0
  %659 = vmatprep.subr.mxu0 0.0
  %660 = vmatpush1.xpose.msra.mxu0 0.0
  %661 = vmatprep.subr.mxu0 0.0
  %662 = vmatpush1.xpose.msra.mxu0 0.0
  %663 = vmatprep.mubr.f32.mxu0 0.0
  %664 = vmatmul.mubr.f32.gmra.mrb[0].mxu0 %v595
  %v665 = vpop.f32.mrb[0].mxu0
  %v666 = vadd.f32 0.0, %v665
  %v667 = vpop.f32.mrb[0].mxu0
  %668 = vdwg.mxu0
  %669 = vrot.lane.b32.xlu0 %v265, 120
  %v670 = vpop.permute.xlu0 %669
  %671 = vrot.lane.b32.xlu0 %v161, 88
  %v672 = vpop.permute.xlu0 %671
  %v673 = vsel %vm269, %v670, 0
  %v675 = vsel %vm269, %v672, 0
  %677 = vmatprep.subr.mxu0 0.0
  %678 = vmatpush1.xpose.msra.mxu0 %v675
  %679 = vmatprep.subr.mxu0 0.0
  %680 = vmatpush1.xpose.msra.mxu0 0.0
  %681 = vmatprep.subr.mxu0 0.0
  %682 = vmatpush1.xpose.msra.mxu0 0.0
  %683 = vmatprep.subr.mxu0 0.0
  %684 = vmatpush1.xpose.msra.mxu0 0.0
  %685 = vmatprep.subr.mxu0 0.0
  %686 = vmatpush1.xpose.msra.mxu0 0.0
  %687 = vmatprep.subr.mxu0 0.0
  %688 = vmatpush1.xpose.msra.mxu0 0.0
  %689 = vmatprep.subr.mxu0 0.0
  %690 = vmatpush1.xpose.msra.mxu0 0.0
  %691 = vmatprep.subr.mxu0 0.0
  %692 = vmatpush1.xpose.msra.mxu0 0.0
  %693 = vmatprep.subr.mxu0 0.0
  %694 = vmatpush1.xpose.msra.mxu0 0.0
  %695 = vmatprep.subr.mxu0 0.0
  %696 = vmatpush1.xpose.msra.mxu0 0.0
  %697 = vmatprep.subr.mxu0 0.0
  %698 = vmatpush1.xpose.msra.mxu0 0.0
  %699 = vmatprep.subr.mxu0 0.0
  %700 = vmatpush1.xpose.msra.mxu0 0.0
  %701 = vmatprep.subr.mxu0 0.0
  %702 = vmatpush1.xpose.msra.mxu0 0.0
  %703 = vmatprep.subr.mxu0 0.0
  %704 = vmatpush1.xpose.msra.mxu0 0.0
  %705 = vmatprep.subr.mxu0 0.0
  %706 = vmatpush1.xpose.msra.mxu0 0.0
  %707 = vmatprep.subr.mxu0 0.0
  %708 = vmatpush1.xpose.msra.mxu0 0.0
  %709 = vmatprep.subr.mxu0 0.0
  %710 = vmatpush1.xpose.msra.mxu0 0.0
  %711 = vmatprep.subr.mxu0 0.0
  %712 = vmatpush1.xpose.msra.mxu0 0.0
  %713 = vmatprep.subr.mxu0 0.0
  %714 = vmatpush1.xpose.msra.mxu0 0.0
  %715 = vmatprep.subr.mxu0 0.0
  %716 = vmatpush1.xpose.msra.mxu0 0.0
  %717 = vmatprep.subr.mxu0 0.0
  %718 = vmatpush1.xpose.msra.mxu0 0.0
  %719 = vmatprep.subr.mxu0 0.0
  %720 = vmatpush1.xpose.msra.mxu0 0.0
  %721 = vmatprep.subr.mxu0 0.0
  %722 = vmatpush1.xpose.msra.mxu0 0.0
  %723 = vmatprep.subr.mxu0 0.0
  %724 = vmatpush1.xpose.msra.mxu0 0.0
  %725 = vmatprep.subr.mxu0 0.0
  %726 = vmatpush1.xpose.msra.mxu0 0.0
  %727 = vmatprep.subr.mxu0 0.0
  %728 = vmatpush1.xpose.msra.mxu0 0.0
  %729 = vmatprep.subr.mxu0 0.0
  %730 = vmatpush1.xpose.msra.mxu0 0.0
  %731 = vmatprep.subr.mxu0 0.0
  %732 = vmatpush1.xpose.msra.mxu0 0.0
  %733 = vmatprep.subr.mxu0 0.0
  %734 = vmatpush1.xpose.msra.mxu0 0.0
  %735 = vmatprep.subr.mxu0 0.0
  %736 = vmatpush1.xpose.msra.mxu0 0.0
  %737 = vmatprep.subr.mxu0 0.0
  %738 = vmatpush1.xpose.msra.mxu0 0.0
  %739 = vmatprep.subr.mxu0 0.0
  %740 = vmatpush1.xpose.msra.mxu0 0.0
  %741 = vmatprep.mubr.f32.mxu0 0.0
  %742 = vmatmul.mubr.f32.gmra.mrb[0].mxu0 %v673
  %v743 = vpop.f32.mrb[0].mxu0
  %v744 = vadd.f32 0.0, %v743
  %v745 = vpop.f32.mrb[0].mxu0
  %746 = vdwg.mxu0
  %v747 = vsel %vm269, %v666, -inf
  %748 = vmax.xlane.f32.xlu0 %v747
  %v749 = vpop.xlane.xlu0 %748
  %v750 = vsel %vm269, %v744, -inf
  %751 = vmax.xlane.f32.xlu0 %v750
  %v752 = vpop.xlane.xlu0 %751
  %v753 = vsub.f32 %v666, %v749
  %v754 = vsub.f32 %v744, %v752
  %v755 = vmul.f32 %v753, 1.442695
  %v756 = vpow.pop %v755
  %v757 = vmul.f32 %v754, 1.442695
  %v758 = vpow.pop %v757
  %v759 = vsel %vm269, %v756, 0.0
  %760 = vadd.xlane.f32.xlu0 %v759
  %v761 = vpop.xlane.xlu0 %760
  %v762 = vsel %vm269, %v758, 0.0
  %763 = vadd.xlane.f32.xlu0 %v762
  %v764 = vpop.xlane.xlu0 %763
  %v765 = vrcp.pop %v761
  %v766 = vmul.f32 %v756, %v765
  %v767 = vrcp.pop %v764
  %v768 = vmul.f32 %v758, %v767
  %770 = vrot.lane.b32.xlu0 %v256, 120
  %v771 = vpop.permute.xlu0 %770
  %v774 = vsel %vm269, %v766, 0
  %776 = vmatprep.subr.mxu0 0.0
  %777 = vmatpush1.msra.mxu0 %v771
  %778 = vmatprep.subr.mxu0 0.0
  %779 = vmatpush1.msra.mxu0 0.0
  %780 = vmatprep.subr.mxu0 0.0
  %781 = vmatpush1.msra.mxu0 0.0
  %782 = vmatprep.subr.mxu0 0.0
  %783 = vmatpush1.msra.mxu0 0.0
  %784 = vmatprep.subr.mxu0 0.0
  %785 = vmatpush1.msra.mxu0 0.0
  %786 = vmatprep.subr.mxu0 0.0
  %787 = vmatpush1.msra.mxu0 0.0
  %788 = vmatprep.subr.mxu0 0.0
  %789 = vmatpush1.msra.mxu0 0.0
  %790 = vmatprep.subr.mxu0 0.0
  %791 = vmatpush1.msra.mxu0 0.0
  %792 = vmatprep.subr.mxu0 0.0
  %793 = vmatpush1.msra.mxu0 0.0
  %794 = vmatprep.subr.mxu0 0.0
  %795 = vmatpush1.msra.mxu0 0.0
  %796 = vmatprep.subr.mxu0 0.0
  %797 = vmatpush1.msra.mxu0 0.0
  %798 = vmatprep.subr.mxu0 0.0
  %799 = vmatpush1.msra.mxu0 0.0
  %800 = vmatprep.subr.mxu0 0.0
  %801 = vmatpush1.msra.mxu0 0.0
  %802 = vmatprep.subr.mxu0 0.0
  %803 = vmatpush1.msra.mxu0 0.0
  %804 = vmatprep.subr.mxu0 0.0
  %805 = vmatpush1.msra.mxu0 0.0
  %806 = vmatprep.subr.mxu0 0.0
  %807 = vmatpush1.msra.mxu0 0.0
  %808 = vmatprep.subr.mxu0 0.0
  %809 = vmatpush1.msra.mxu0 0.0
  %810 = vmatprep.subr.mxu0 0.0
  %811 = vmatpush1.msra.mxu0 0.0
  %812 = vmatprep.subr.mxu0 0.0
  %813 = vmatpush1.msra.mxu0 0.0
  %814 = vmatprep.subr.mxu0 0.0
  %815 = vmatpush1.msra.mxu0 0.0
  %816 = vmatprep.subr.mxu0 0.0
  %817 = vmatpush1.msra.mxu0 0.0
  %818 = vmatprep.subr.mxu0 0.0
  %819 = vmatpush1.msra.mxu0 0.0
  %820 = vmatprep.subr.mxu0 0.0
  %821 = vmatpush1.msra.mxu0 0.0
  %822 = vmatprep.subr.mxu0 0.0
  %823 = vmatpush1.msra.mxu0 0.0
  %824 = vmatprep.subr.mxu0 0.0
  %825 = vmatpush1.msra.mxu0 0.0
  %826 = vmatprep.subr.mxu0 0.0
  %827 = vmatpush1.msra.mxu0 0.0
  %828 = vmatprep.subr.mxu0 0.0
  %829 = vmatpush1.msra.mxu0 0.0
  %830 = vmatprep.subr.mxu0 0.0
  %831 = vmatpush1.msra.mxu0 0.0
  %832 = vmatprep.subr.mxu0 0.0
  %833 = vmatpush1.msra.mxu0 0.0
  %834 = vmatprep.subr.mxu0 0.0
  %835 = vmatpush1.msra.mxu0 0.0
  %836 = vmatprep.subr.mxu0 0.0
  %837 = vmatpush1.msra.mxu0 0.0
  %838 = vmatprep.subr.mxu0 0.0
  %839 = vmatpush1.msra.mxu0 0.0
  %840 = vmatprep.mubr.f32.mxu0 0.0
  %841 = vmatmul.mubr.f32.gmra.mrb[0].mxu0 %v774
  %v842 = vpop.f32.mrb[0].mxu0
  %v843 = vadd.f32 0.0, %v842
  %v844 = vpop.f32.mrb[0].mxu0
  %845 = vdwg.mxu0
  %847 = vrot.lane.b32.xlu0 %v261, 120
  %v848 = vpop.permute.xlu0 %847
  %v851 = vsel %vm269, %v768, 0
  %853 = vmatprep.subr.mxu0 0.0
  %854 = vmatpush1.msra.mxu0 %v848
  %855 = vmatprep.subr.mxu0 0.0
  %856 = vmatpush1.msra.mxu0 0.0
  %857 = vmatprep.subr.mxu0 0.0
  %858 = vmatpush1.msra.mxu0 0.0
  %859 = vmatprep.subr.mxu0 0.0
  %860 = vmatpush1.msra.mxu0 0.0
  %861 = vmatprep.subr.mxu0 0.0
  %862 = vmatpush1.msra.mxu0 0.0
  %863 = vmatprep.subr.mxu0 0.0
  %864 = vmatpush1.msra.mxu0 0.0
  %865 = vmatprep.subr.mxu0 0.0
  %866 = vmatpush1.msra.mxu0 0.0
  %867 = vmatprep.subr.mxu0 0.0
  %868 = vmatpush1.msra.mxu0 0.0
  %869 = vmatprep.subr.mxu0 0.0
  %870 = vmatpush1.msra.mxu0 0.0
  %871 = vmatprep.subr.mxu0 0.0
  %872 = vmatpush1.msra.mxu0 0.0
  %873 = vmatprep.subr.mxu0 0.0
  %874 = vmatpush1.msra.mxu0 0.0
  %875 = vmatprep.subr.mxu0 0.0
  %876 = vmatpush1.msra.mxu0 0.0
  %877 = vmatprep.subr.mxu0 0.0
  %878 = vmatpush1.msra.mxu0 0.0
  %879 = vmatprep.subr.mxu0 0.0
  %880 = vmatpush1.msra.mxu0 0.0
  %881 = vmatprep.subr.mxu0 0.0
  %882 = vmatpush1.msra.mxu0 0.0
  %883 = vmatprep.subr.mxu0 0.0
  %884 = vmatpush1.msra.mxu0 0.0
  %885 = vmatprep.subr.mxu0 0.0
  %886 = vmatpush1.msra.mxu0 0.0
  %887 = vmatprep.subr.mxu0 0.0
  %888 = vmatpush1.msra.mxu0 0.0
  %889 = vmatprep.subr.mxu0 0.0
  %890 = vmatpush1.msra.mxu0 0.0
  %891 = vmatprep.subr.mxu0 0.0
  %892 = vmatpush1.msra.mxu0 0.0
  %893 = vmatprep.subr.mxu0 0.0
  %894 = vmatpush1.msra.mxu0 0.0
  %895 = vmatprep.subr.mxu0 0.0
  %896 = vmatpush1.msra.mxu0 0.0
  %897 = vmatprep.subr.mxu0 0.0
  %898 = vmatpush1.msra.mxu0 0.0
  %899 = vmatprep.subr.mxu0 0.0
  %900 = vmatpush1.msra.mxu0 0.0
  %901 = vmatprep.subr.mxu0 0.0
  %902 = vmatpush1.msra.mxu0 0.0
  %903 = vmatprep.subr.mxu0 0.0
  %904 = vmatpush1.msra.mxu0 0.0
  %905 = vmatprep.subr.mxu0 0.0
  %906 = vmatpush1.msra.mxu0 0.0
  %907 = vmatprep.subr.mxu0 0.0
  %908 = vmatpush1.msra.mxu0 0.0
  %909 = vmatprep.subr.mxu0 0.0
  %910 = vmatpush1.msra.mxu0 0.0
  %911 = vmatprep.subr.mxu0 0.0
  %912 = vmatpush1.msra.mxu0 0.0
  %913 = vmatprep.subr.mxu0 0.0
  %914 = vmatpush1.msra.mxu0 0.0
  %915 = vmatprep.subr.mxu0 0.0
  %916 = vmatpush1.msra.mxu0 0.0
  %917 = vmatprep.mubr.f32.mxu0 0.0
  %918 = vmatmul.mubr.f32.gmra.mrb[0].mxu0 %v851
  %v919 = vpop.f32.mrb[0].mxu0
  %v920 = vadd.f32 0.0, %v919
  %v921 = vpop.f32.mrb[0].mxu0
  %922 = vdwg.mxu0
  %923 = vrot.lane.b32.xlu0 %v264, 112
  %v924 = vpop.permute.xlu0 %923
  %925 = vrot.lane.b32.xlu0 %v156, 80
  %v926 = vpop.permute.xlu0 %925
  %v927 = vsel %vm269, %v924, 0
  %v929 = vsel %vm269, %v926, 0
  %931 = vmatprep.subr.mxu0 0.0
  %932 = vmatpush1.xpose.msra.mxu0 %v929
  %933 = vmatprep.subr.mxu0 0.0
  %934 = vmatpush1.xpose.msra.mxu0 0.0
  %935 = vmatprep.subr.mxu0 0.0
  %936 = vmatpush1.xpose.msra.mxu0 0.0
  %937 = vmatprep.subr.mxu0 0.0
  %938 = vmatpush1.xpose.msra.mxu0 0.0
  %939 = vmatprep.subr.mxu0 0.0
  %940 = vmatpush1.xpose.msra.mxu0 0.0
  %941 = vmatprep.subr.mxu0 0.0
  %942 = vmatpush1.xpose.msra.mxu0 0.0
  %943 = vmatprep.subr.mxu0 0.0
  %944 = vmatpush1.xpose.msra.mxu0 0.0
  %945 = vmatprep.subr.mxu0 0.0
  %946 = vmatpush1.xpose.msra.mxu0 0.0
  %947 = vmatprep.subr.mxu0 0.0
  %948 = vmatpush1.xpose.msra.mxu0 0.0
  %949 = vmatprep.subr.mxu0 0.0
  %950 = vmatpush1.xpose.msra.mxu0 0.0
  %951 = vmatprep.subr.mxu0 0.0
  %952 = vmatpush1.xpose.msra.mxu0 0.0
  %953 = vmatprep.subr.mxu0 0.0
  %954 = vmatpush1.xpose.msra.mxu0 0.0
  %955 = vmatprep.subr.mxu0 0.0
  %956 = vmatpush1.xpose.msra.mxu0 0.0
  %957 = vmatprep.subr.mxu0 0.0
  %958 = vmatpush1.xpose.msra.mxu0 0.0
  %959 = vmatprep.subr.mxu0 0.0
  %960 = vmatpush1.xpose.msra.mxu0 0.0
  %961 = vmatprep.subr.mxu0 0.0
  %962 = vmatpush1.xpose.msra.mxu0 0.0
  %963 = vmatprep.subr.mxu0 0.0
  %964 = vmatpush1.xpose.msra.mxu0 0.0
  %965 = vmatprep.subr.mxu0 0.0
  %966 = vmatpush1.xpose.msra.mxu0 0.0
  %967 = vmatprep.subr.mxu0 0.0
  %968 = vmatpush1.xpose.msra.mxu0 0.0
  %969 = vmatprep.subr.mxu0 0.0
  %970 = vmatpush1.xpose.msra.mxu0 0.0
  %971 = vmatprep.subr.mxu0 0.0
  %972 = vmatpush1.xpose.msra.mxu0 0.0
  %973 = vmatprep.subr.mxu0 0.0
  %974 = vmatpush1.xpose.msra.mxu0 0.0
  %975 = vmatprep.subr.mxu0 0.0
  %976 = vmatpush1.xpose.msra.mxu0 0.0
  %977 = vmatprep.subr.mxu0 0.0
  %978 = vmatpush1.xpose.msra.mxu0 0.0
  %979 = vmatprep.subr.mxu0 0.0
  %980 = vmatpush1.xpose.msra.mxu0 0.0
  %981 = vmatprep.subr.mxu0 0.0
  %982 = vmatpush1.xpose.msra.mxu0 0.0
  %983 = vmatprep.subr.mxu0 0.0
  %984 = vmatpush1.xpose.msra.mxu0 0.0
  %985 = vmatprep.subr.mxu0 0.0
  %986 = vmatpush1.xpose.msra.mxu0 0.0
  %987 = vmatprep.subr.mxu0 0.0
  %988 = vmatpush1.xpose.msra.mxu0 0.0
  %989 = vmatprep.subr.mxu0 0.0
  %990 = vmatpush1.xpose.msra.mxu0 0.0
  %991 = vmatprep.subr.mxu0 0.0
  %992 = vmatpush1.xpose.msra.mxu0 0.0
  %993 = vmatprep.subr.mxu0 0.0
  %994 = vmatpush1.xpose.msra.mxu0 0.0
  %995 = vmatprep.mubr.f32.mxu0 0.0
  %996 = vmatmul.mubr.f32.gmra.mrb[0].mxu0 %v927
  %v997 = vpop.f32.mrb[0].mxu0
  %v998 = vadd.f32 0.0, %v997
  %v999 = vpop.f32.mrb[0].mxu0
  %1000 = vdwg.mxu0
  %1001 = vrot.lane.b32.xlu0 %v265, 112
  %v1002 = vpop.permute.xlu0 %1001
  %1003 = vrot.lane.b32.xlu0 %v161, 80
  %v1004 = vpop.permute.xlu0 %1003
  %v1005 = vsel %vm269, %v1002, 0
  %v1007 = vsel %vm269, %v1004, 0
  %1009 = vmatprep.subr.mxu0 0.0
  %1010 = vmatpush1.xpose.msra.mxu0 %v1007
  %1011 = vmatprep.subr.mxu0 0.0
  %1012 = vmatpush1.xpose.msra.mxu0 0.0
  %1013 = vmatprep.subr.mxu0 0.0
  %1014 = vmatpush1.xpose.msra.mxu0 0.0
  %1015 = vmatprep.subr.mxu0 0.0
  %1016 = vmatpush1.xpose.msra.mxu0 0.0
  %1017 = vmatprep.subr.mxu0 0.0
  %1018 = vmatpush1.xpose.msra.mxu0 0.0
  %1019 = vmatprep.subr.mxu0 0.0
  %1020 = vmatpush1.xpose.msra.mxu0 0.0
  %1021 = vmatprep.subr.mxu0 0.0
  %1022 = vmatpush1.xpose.msra.mxu0 0.0
  %1023 = vmatprep.subr.mxu0 0.0
  %1024 = vmatpush1.xpose.msra.mxu0 0.0
  %1025 = vmatprep.subr.mxu0 0.0
  %1026 = vmatpush1.xpose.msra.mxu0 0.0
  %1027 = vmatprep.subr.mxu0 0.0
  %1028 = vmatpush1.xpose.msra.mxu0 0.0
  %1029 = vmatprep.subr.mxu0 0.0
  %1030 = vmatpush1.xpose.msra.mxu0 0.0
  %1031 = vmatprep.subr.mxu0 0.0
  %1032 = vmatpush1.xpose.msra.mxu0 0.0
  %1033 = vmatprep.subr.mxu0 0.0
  %1034 = vmatpush1.xpose.msra.mxu0 0.0
  %1035 = vmatprep.subr.mxu0 0.0
  %1036 = vmatpush1.xpose.msra.mxu0 0.0
  %1037 = vmatprep.subr.mxu0 0.0
  %1038 = vmatpush1.xpose.msra.mxu0 0.0
  %1039 = vmatprep.subr.mxu0 0.0
  %1040 = vmatpush1.xpose.msra.mxu0 0.0
  %1041 = vmatprep.subr.mxu0 0.0
  %1042 = vmatpush1.xpose.msra.mxu0 0.0
  %1043 = vmatprep.subr.mxu0 0.0
  %1044 = vmatpush1.xpose.msra.mxu0 0.0
  %1045 = vmatprep.subr.mxu0 0.0
  %1046 = vmatpush1.xpose.msra.mxu0 0.0
  %1047 = vmatprep.subr.mxu0 0.0
  %1048 = vmatpush1.xpose.msra.mxu0 0.0
  %1049 = vmatprep.subr.mxu0 0.0
  %1050 = vmatpush1.xpose.msra.mxu0 0.0
  %1051 = vmatprep.subr.mxu0 0.0
  %1052 = vmatpush1.xpose.msra.mxu0 0.0
  %1053 = vmatprep.subr.mxu0 0.0
  %1054 = vmatpush1.xpose.msra.mxu0 0.0
  %1055 = vmatprep.subr.mxu0 0.0
  %1056 = vmatpush1.xpose.msra.mxu0 0.0
  %1057 = vmatprep.subr.mxu0 0.0
  %1058 = vmatpush1.xpose.msra.mxu0 0.0
  %1059 = vmatprep.subr.mxu0 0.0
  %1060 = vmatpush1.xpose.msra.mxu0 0.0
  %1061 = vmatprep.subr.mxu0 0.0
  %1062 = vmatpush1.xpose.msra.mxu0 0.0
  %1063 = vmatprep.subr.mxu0 0.0
  %1064 = vmatpush1.xpose.msra.mxu0 0.0
  %1065 = vmatprep.subr.mxu0 0.0
  %1066 = vmatpush1.xpose.msra.mxu0 0.0
  %1067 = vmatprep.subr.mxu0 0.0
  %1068 = vmatpush1.xpose.msra.mxu0 0.0
  %1069 = vmatprep.subr.mxu0 0.0
  %1070 = vmatpush1.xpose.msra.mxu0 0.0
  %1071 = vmatprep.subr.mxu0 0.0
  %1072 = vmatpush1.xpose.msra.mxu0 0.0
  %1073 = vmatprep.mubr.f32.mxu0 0.0
  %1074 = vmatmul.mubr.f32.gmra.mrb[0].mxu0 %v1005
  %v1075 = vpop.f32.mrb[0].mxu0
  %v1076 = vadd.f32 0.0, %v1075
  %v1077 = vpop.f32.mrb[0].mxu0
  %1078 = vdwg.mxu0
  %v1079 = vsel %vm269, %v998, -inf
  %1080 = vmax.xlane.f32.xlu0 %v1079
  %v1081 = vpop.xlane.xlu0 %1080
  %v1082 = vsel %vm269, %v1076, -inf
  %1083 = vmax.xlane.f32.xlu0 %v1082
  %v1084 = vpop.xlane.xlu0 %1083
  %v1085 = vsub.f32 %v998, %v1081
  %v1086 = vsub.f32 %v1076, %v1084
  %v1087 = vmul.f32 %v1085, 1.442695
  %v1088 = vpow.pop %v1087
  %v1089 = vmul.f32 %v1086, 1.442695
  %v1090 = vpow.pop %v1089
  %v1091 = vsel %vm269, %v1088, 0.0
  %1092 = vadd.xlane.f32.xlu0 %v1091
  %v1093 = vpop.xlane.xlu0 %1092
  %v1094 = vsel %vm269, %v1090, 0.0
  %1095 = vadd.xlane.f32.xlu0 %v1094
  %v1096 = vpop.xlane.xlu0 %1095
  %v1097 = vrcp.pop %v1093
  %v1098 = vmul.f32 %v1088, %v1097
  %v1099 = vrcp.pop %v1096
  %v1100 = vmul.f32 %v1090, %v1099
  %1101 = vrot.lane.b32.xlu0 %v256, 112
  %v1102 = vpop.permute.xlu0 %1101
  %v1105 = vsel %vm269, %v1098, 0
  %1107 = vmatprep.subr.mxu0 0.0
  %1108 = vmatpush1.msra.mxu0 %v1102
  %1109 = vmatprep.subr.mxu0 0.0
  %1110 = vmatpush1.msra.mxu0 0.0
  %1111 = vmatprep.subr.mxu0 0.0
  %1112 = vmatpush1.msra.mxu0 0.0
  %1113 = vmatprep.subr.mxu0 0.0
  %1114 = vmatpush1.msra.mxu0 0.0
  %1115 = vmatprep.subr.mxu0 0.0
  %1116 = vmatpush1.msra.mxu0 0.0
  %1117 = vmatprep.subr.mxu0 0.0
  %1118 = vmatpush1.msra.mxu0 0.0
  %1119 = vmatprep.subr.mxu0 0.0
  %1120 = vmatpush1.msra.mxu0 0.0
  %1121 = vmatprep.subr.mxu0 0.0
  %1122 = vmatpush1.msra.mxu0 0.0
  %1123 = vmatprep.subr.mxu0 0.0
  %1124 = vmatpush1.msra.mxu0 0.0
  %1125 = vmatprep.subr.mxu0 0.0
  %1126 = vmatpush1.msra.mxu0 0.0
  %1127 = vmatprep.subr.mxu0 0.0
  %1128 = vmatpush1.msra.mxu0 0.0
  %1129 = vmatprep.subr.mxu0 0.0
  %1130 = vmatpush1.msra.mxu0 0.0
  %1131 = vmatprep.subr.mxu0 0.0
  %1132 = vmatpush1.msra.mxu0 0.0
  %1133 = vmatprep.subr.mxu0 0.0
  %1134 = vmatpush1.msra.mxu0 0.0
  %1135 = vmatprep.subr.mxu0 0.0
  %1136 = vmatpush1.msra.mxu0 0.0
  %1137 = vmatprep.subr.mxu0 0.0
  %1138 = vmatpush1.msra.mxu0 0.0
  %1139 = vmatprep.subr.mxu0 0.0
  %1140 = vmatpush1.msra.mxu0 0.0
  %1141 = vmatprep.subr.mxu0 0.0
  %1142 = vmatpush1.msra.mxu0 0.0
  %1143 = vmatprep.subr.mxu0 0.0
  %1144 = vmatpush1.msra.mxu0 0.0
  %1145 = vmatprep.subr.mxu0 0.0
  %1146 = vmatpush1.msra.mxu0 0.0
  %1147 = vmatprep.subr.mxu0 0.0
  %1148 = vmatpush1.msra.mxu0 0.0
  %1149 = vmatprep.subr.mxu0 0.0
  %1150 = vmatpush1.msra.mxu0 0.0
  %1151 = vmatprep.subr.mxu0 0.0
  %1152 = vmatpush1.msra.mxu0 0.0
  %1153 = vmatprep.subr.mxu0 0.0
  %1154 = vmatpush1.msra.mxu0 0.0
  %1155 = vmatprep.subr.mxu0 0.0
  %1156 = vmatpush1.msra.mxu0 0.0
  %1157 = vmatprep.subr.mxu0 0.0
  %1158 = vmatpush1.msra.mxu0 0.0
  %1159 = vmatprep.subr.mxu0 0.0
  %1160 = vmatpush1.msra.mxu0 0.0
  %1161 = vmatprep.subr.mxu0 0.0
  %1162 = vmatpush1.msra.mxu0 0.0
  %1163 = vmatprep.subr.mxu0 0.0
  %1164 = vmatpush1.msra.mxu0 0.0
  %1165 = vmatprep.subr.mxu0 0.0
  %1166 = vmatpush1.msra.mxu0 0.0
  %1167 = vmatprep.subr.mxu0 0.0
  %1168 = vmatpush1.msra.mxu0 0.0
  %1169 = vmatprep.subr.mxu0 0.0
  %1170 = vmatpush1.msra.mxu0 0.0
  %1171 = vmatprep.mubr.f32.mxu0 0.0
  %1172 = vmatmul.mubr.f32.gmra.mrb[0].mxu0 %v1105
  %v1173 = vpop.f32.mrb[0].mxu0
  %v1174 = vadd.f32 0.0, %v1173
  %v1175 = vpop.f32.mrb[0].mxu0
  %1176 = vdwg.mxu0
  %1177 = vrot.lane.b32.xlu0 %v261, 112
  %v1178 = vpop.permute.xlu0 %1177
  %v1181 = vsel %vm269, %v1100, 0
  %1183 = vmatprep.subr.mxu0 0.0
  %1184 = vmatpush1.msra.mxu0 %v1178
  %1185 = vmatprep.subr.mxu0 0.0
  %1186 = vmatpush1.msra.mxu0 0.0
  %1187 = vmatprep.subr.mxu0 0.0
  %1188 = vmatpush1.msra.mxu0 0.0
  %1189 = vmatprep.subr.mxu0 0.0
  %1190 = vmatpush1.msra.mxu0 0.0
  %1191 = vmatprep.subr.mxu0 0.0
  %1192 = vmatpush1.msra.mxu0 0.0
  %1193 = vmatprep.subr.mxu0 0.0
  %1194 = vmatpush1.msra.mxu0 0.0
  %1195 = vmatprep.subr.mxu0 0.0
  %1196 = vmatpush1.msra.mxu0 0.0
  %1197 = vmatprep.subr.mxu0 0.0
  %1198 = vmatpush1.msra.mxu0 0.0
  %1199 = vmatprep.subr.mxu0 0.0
  %1200 = vmatpush1.msra.mxu0 0.0
  %1201 = vmatprep.subr.mxu0 0.0
  %1202 = vmatpush1.msra.mxu0 0.0
  %1203 = vmatprep.subr.mxu0 0.0
  %1204 = vmatpush1.msra.mxu0 0.0
  %1205 = vmatprep.subr.mxu0 0.0
  %1206 = vmatpush1.msra.mxu0 0.0
  %1207 = vmatprep.subr.mxu0 0.0
  %1208 = vmatpush1.msra.mxu0 0.0
  %1209 = vmatprep.subr.mxu0 0.0
  %1210 = vmatpush1.msra.mxu0 0.0
  %1211 = vmatprep.subr.mxu0 0.0
  %1212 = vmatpush1.msra.mxu0 0.0
  %1213 = vmatprep.subr.mxu0 0.0
  %1214 = vmatpush1.msra.mxu0 0.0
  %1215 = vmatprep.subr.mxu0 0.0
  %1216 = vmatpush1.msra.mxu0 0.0
  %1217 = vmatprep.subr.mxu0 0.0
  %1218 = vmatpush1.msra.mxu0 0.0
  %1219 = vmatprep.subr.mxu0 0.0
  %1220 = vmatpush1.msra.mxu0 0.0
  %1221 = vmatprep.subr.mxu0 0.0
  %1222 = vmatpush1.msra.mxu0 0.0
  %1223 = vmatprep.subr.mxu0 0.0
  %1224 = vmatpush1.msra.mxu0 0.0
  %1225 = vmatprep.subr.mxu0 0.0
  %1226 = vmatpush1.msra.mxu0 0.0
  %1227 = vmatprep.subr.mxu0 0.0
  %1228 = vmatpush1.msra.mxu0 0.0
  %1229 = vmatprep.subr.mxu0 0.0
  %1230 = vmatpush1.msra.mxu0 0.0
  %1231 = vmatprep.subr.mxu0 0.0
  %1232 = vmatpush1.msra.mxu0 0.0
  %1233 = vmatprep.subr.mxu0 0.0
  %1234 = vmatpush1.msra.mxu0 0.0
  %1235 = vmatprep.subr.mxu0 0.0
  %1236 = vmatpush1.msra.mxu0 0.0
  %1237 = vmatprep.subr.mxu0 0.0
  %1238 = vmatpush1.msra.mxu0 0.0
  %1239 = vmatprep.subr.mxu0 0.0
  %1240 = vmatpush1.msra.mxu0 0.0
  %1241 = vmatprep.subr.mxu0 0.0
  %1242 = vmatpush1.msra.mxu0 0.0
  %1243 = vmatprep.subr.mxu0 0.0
  %1244 = vmatpush1.msra.mxu0 0.0
  %1245 = vmatprep.subr.mxu0 0.0
  %1246 = vmatpush1.msra.mxu0 0.0
  %1247 = vmatprep.mubr.f32.mxu0 0.0
  %1248 = vmatmul.mubr.f32.gmra.mrb[0].mxu0 %v1181
  %v1249 = vpop.f32.mrb[0].mxu0
  %v1250 = vadd.f32 0.0, %v1249
  %v1251 = vpop.f32.mrb[0].mxu0
  %1252 = vdwg.mxu0
  %1253 = vrot.lane.b32.xlu0 %v264, 104
  %v1254 = vpop.permute.xlu0 %1253
  %1255 = vrot.lane.b32.xlu0 %v156, 72
  %v1256 = vpop.permute.xlu0 %1255
  %v1257 = vsel %vm269, %v1254, 0
  %v1259 = vsel %vm269, %v1256, 0
  %1261 = vmatprep.subr.mxu0 0.0
  %1262 = vmatpush1.xpose.msra.mxu0 %v1259
  %1263 = vmatprep.subr.mxu0 0.0
  %1264 = vmatpush1.xpose.msra.mxu0 0.0
  %1265 = vmatprep.subr.mxu0 0.0
  %1266 = vmatpush1.xpose.msra.mxu0 0.0
  %1267 = vmatprep.subr.mxu0 0.0
  %1268 = vmatpush1.xpose.msra.mxu0 0.0
  %1269 = vmatprep.subr.mxu0 0.0
  %1270 = vmatpush1.xpose.msra.mxu0 0.0
  %1271 = vmatprep.subr.mxu0 0.0
  %1272 = vmatpush1.xpose.msra.mxu0 0.0
  %1273 = vmatprep.subr.mxu0 0.0
  %1274 = vmatpush1.xpose.msra.mxu0 0.0
  %1275 = vmatprep.subr.mxu0 0.0
  %1276 = vmatpush1.xpose.msra.mxu0 0.0
  %1277 = vmatprep.subr.mxu0 0.0
  %1278 = vmatpush1.xpose.msra.mxu0 0.0
  %1279 = vmatprep.subr.mxu0 0.0
  %1280 = vmatpush1.xpose.msra.mxu0 0.0
  %1281 = vmatprep.subr.mxu0 0.0
  %1282 = vmatpush1.xpose.msra.mxu0 0.0
  %1283 = vmatprep.subr.mxu0 0.0
  %1284 = vmatpush1.xpose.msra.mxu0 0.0
  %1285 = vmatprep.subr.mxu0 0.0
  %1286 = vmatpush1.xpose.msra.mxu0 0.0
  %1287 = vmatprep.subr.mxu0 0.0
  %1288 = vmatpush1.xpose.msra.mxu0 0.0
  %1289 = vmatprep.subr.mxu0 0.0
  %1290 = vmatpush1.xpose.msra.mxu0 0.0
  %1291 = vmatprep.subr.mxu0 0.0
  %1292 = vmatpush1.xpose.msra.mxu0 0.0
  %1293 = vmatprep.subr.mxu0 0.0
  %1294 = vmatpush1.xpose.msra.mxu0 0.0
  %1295 = vmatprep.subr.mxu0 0.0
  %1296 = vmatpush1.xpose.msra.mxu0 0.0
  %1297 = vmatprep.subr.mxu0 0.0
  %1298 = vmatpush1.xpose.msra.mxu0 0.0
  %1299 = vmatprep.subr.mxu0 0.0
  %1300 = vmatpush1.xpose.msra.mxu0 0.0
  %1301 = vmatprep.subr.mxu0 0.0
  %1302 = vmatpush1.xpose.msra.mxu0 0.0
  %1303 = vmatprep.subr.mxu0 0.0
  %1304 = vmatpush1.xpose.msra.mxu0 0.0
  %1305 = vmatprep.subr.mxu0 0.0
  %1306 = vmatpush1.xpose.msra.mxu0 0.0
  %1307 = vmatprep.subr.mxu0 0.0
  %1308 = vmatpush1.xpose.msra.mxu0 0.0
  %1309 = vmatprep.subr.mxu0 0.0
  %1310 = vmatpush1.xpose.msra.mxu0 0.0
  %1311 = vmatprep.subr.mxu0 0.0
  %1312 = vmatpush1.xpose.msra.mxu0 0.0
  %1313 = vmatprep.subr.mxu0 0.0
  %1314 = vmatpush1.xpose.msra.mxu0 0.0
  %1315 = vmatprep.subr.mxu0 0.0
  %1316 = vmatpush1.xpose.msra.mxu0 0.0
  %1317 = vmatprep.subr.mxu0 0.0
  %1318 = vmatpush1.xpose.msra.mxu0 0.0
  %1319 = vmatprep.subr.mxu0 0.0
  %1320 = vmatpush1.xpose.msra.mxu0 0.0
  %1321 = vmatprep.subr.mxu0 0.0
  %1322 = vmatpush1.xpose.msra.mxu0 0.0
  %1323 = vmatprep.subr.mxu0 0.0
  %1324 = vmatpush1.xpose.msra.mxu0 0.0
  %1325 = vmatprep.mubr.f32.mxu0 0.0
  %1326 = vmatmul.mubr.f32.gmra.mrb[0].mxu0 %v1257
  %v1327 = vpop.f32.mrb[0].mxu0
  %v1328 = vadd.f32 0.0, %v1327
  %v1329 = vpop.f32.mrb[0].mxu0
  %1330 = vdwg.mxu0
  %1331 = vrot.lane.b32.xlu0 %v265, 104
  %v1332 = vpop.permute.xlu0 %1331
  %1333 = vrot.lane.b32.xlu0 %v161, 72
  %v1334 = vpop.permute.xlu0 %1333
  %v1335 = vsel %vm269, %v1332, 0
  %v1337 = vsel %vm269, %v1334, 0
  %1339 = vmatprep.subr.mxu0 0.0
  %1340 = vmatpush1.xpose.msra.mxu0 %v1337
  %1341 = vmatprep.subr.mxu0 0.0
  %1342 = vmatpush1.xpose.msra.mxu0 0.0
  %1343 = vmatprep.subr.mxu0 0.0
  %1344 = vmatpush1.xpose.msra.mxu0 0.0
  %1345 = vmatprep.subr.mxu0 0.0
  %1346 = vmatpush1.xpose.msra.mxu0 0.0
  %1347 = vmatprep.subr.mxu0 0.0
  %1348 = vmatpush1.xpose.msra.mxu0 0.0
  %1349 = vmatprep.subr.mxu0 0.0
  %1350 = vmatpush1.xpose.msra.mxu0 0.0
  %1351 = vmatprep.subr.mxu0 0.0
  %1352 = vmatpush1.xpose.msra.mxu0 0.0
  %1353 = vmatprep.subr.mxu0 0.0
  %1354 = vmatpush1.xpose.msra.mxu0 0.0
  %1355 = vmatprep.subr.mxu0 0.0
  %1356 = vmatpush1.xpose.msra.mxu0 0.0
  %1357 = vmatprep.subr.mxu0 0.0
  %1358 = vmatpush1.xpose.msra.mxu0 0.0
  %1359 = vmatprep.subr.mxu0 0.0
  %1360 = vmatpush1.xpose.msra.mxu0 0.0
  %1361 = vmatprep.subr.mxu0 0.0
  %1362 = vmatpush1.xpose.msra.mxu0 0.0
  %1363 = vmatprep.subr.mxu0 0.0
  %1364 = vmatpush1.xpose.msra.mxu0 0.0
  %1365 = vmatprep.subr.mxu0 0.0
  %1366 = vmatpush1.xpose.msra.mxu0 0.0
  %1367 = vmatprep.subr.mxu0 0.0
  %1368 = vmatpush1.xpose.msra.mxu0 0.0
  %1369 = vmatprep.subr.mxu0 0.0
  %1370 = vmatpush1.xpose.msra.mxu0 0.0
  %1371 = vmatprep.subr.mxu0 0.0
  %1372 = vmatpush1.xpose.msra.mxu0 0.0
  %1373 = vmatprep.subr.mxu0 0.0
  %1374 = vmatpush1.xpose.msra.mxu0 0.0
  %1375 = vmatprep.subr.mxu0 0.0
  %1376 = vmatpush1.xpose.msra.mxu0 0.0
  %1377 = vmatprep.subr.mxu0 0.0
  %1378 = vmatpush1.xpose.msra.mxu0 0.0
  %1379 = vmatprep.subr.mxu0 0.0
  %1380 = vmatpush1.xpose.msra.mxu0 0.0
  %1381 = vmatprep.subr.mxu0 0.0
  %1382 = vmatpush1.xpose.msra.mxu0 0.0
  %1383 = vmatprep.subr.mxu0 0.0
  %1384 = vmatpush1.xpose.msra.mxu0 0.0
  %1385 = vmatprep.subr.mxu0 0.0
  %1386 = vmatpush1.xpose.msra.mxu0 0.0
  %1387 = vmatprep.subr.mxu0 0.0
  %1388 = vmatpush1.xpose.msra.mxu0 0.0
  %1389 = vmatprep.subr.mxu0 0.0
  %1390 = vmatpush1.xpose.msra.mxu0 0.0
  %1391 = vmatprep.subr.mxu0 0.0
  %1392 = vmatpush1.xpose.msra.mxu0 0.0
  %1393 = vmatprep.subr.mxu0 0.0
  %1394 = vmatpush1.xpose.msra.mxu0 0.0
  %1395 = vmatprep.subr.mxu0 0.0
  %1396 = vmatpush1.xpose.msra.mxu0 0.0
  %1397 = vmatprep.subr.mxu0 0.0
  %1398 = vmatpush1.xpose.msra.mxu0 0.0
  %1399 = vmatprep.subr.mxu0 0.0
  %1400 = vmatpush1.xpose.msra.mxu0 0.0
  %1401 = vmatprep.subr.mxu0 0.0
  %1402 = vmatpush1.xpose.msra.mxu0 0.0
  %1403 = vmatprep.mubr.f32.mxu0 0.0
  %1404 = vmatmul.mubr.f32.gmra.mrb[0].mxu0 %v1335
  %v1405 = vpop.f32.mrb[0].mxu0
  %v1406 = vadd.f32 0.0, %v1405
  %v1407 = vpop.f32.mrb[0].mxu0
  %1408 = vdwg.mxu0
  %v1409 = vsel %vm269, %v1328, -inf
  %1410 = vmax.xlane.f32.xlu0 %v1409
  %v1411 = vpop.xlane.xlu0 %1410
  %v1412 = vsel %vm269, %v1406, -inf
  %1413 = vmax.xlane.f32.xlu0 %v1412
  %v1414 = vpop.xlane.xlu0 %1413
  %v1415 = vsub.f32 %v1328, %v1411
  %v1416 = vsub.f32 %v1406, %v1414
  %v1417 = vmul.f32 %v1415, 1.442695
  %v1418 = vpow.pop %v1417
  %v1419 = vmul.f32 %v1416, 1.442695
  %v1420 = vpow.pop %v1419
  %v1421 = vsel %vm269, %v1418, 0.0
  %1422 = vadd.xlane.f32.xlu0 %v1421
  %v1423 = vpop.xlane.xlu0 %1422
  %v1424 = vsel %vm269, %v1420, 0.0
  %1425 = vadd.xlane.f32.xlu0 %v1424
  %v1426 = vpop.xlane.xlu0 %1425
  %v1427 = vrcp.pop %v1423
  %v1428 = vmul.f32 %v1418, %v1427
  %v1429 = vrcp.pop %v1426
  %v1430 = vmul.f32 %v1420, %v1429
  %1431 = vrot.lane.b32.xlu0 %v256, 104
  %v1432 = vpop.permute.xlu0 %1431
  %v1435 = vsel %vm269, %v1428, 0
  %1437 = vmatprep.subr.mxu0 0.0
  %1438 = vmatpush1.msra.mxu0 %v1432
  %1439 = vmatprep.subr.mxu0 0.0
  %1440 = vmatpush1.msra.mxu0 0.0
  %1441 = vmatprep.subr.mxu0 0.0
  %1442 = vmatpush1.msra.mxu0 0.0
  %1443 = vmatprep.subr.mxu0 0.0
  %1444 = vmatpush1.msra.mxu0 0.0
  %1445 = vmatprep.subr.mxu0 0.0
  %1446 = vmatpush1.msra.mxu0 0.0
  %1447 = vmatprep.subr.mxu0 0.0
  %1448 = vmatpush1.msra.mxu0 0.0
  %1449 = vmatprep.subr.mxu0 0.0
  %1450 = vmatpush1.msra.mxu0 0.0
  %1451 = vmatprep.subr.mxu0 0.0
  %1452 = vmatpush1.msra.mxu0 0.0
  %1453 = vmatprep.subr.mxu0 0.0
  %1454 = vmatpush1.msra.mxu0 0.0
  %1455 = vmatprep.subr.mxu0 0.0
  %1456 = vmatpush1.msra.mxu0 0.0
  %1457 = vmatprep.subr.mxu0 0.0
  %1458 = vmatpush1.msra.mxu0 0.0
  %1459 = vmatprep.subr.mxu0 0.0
  %1460 = vmatpush1.msra.mxu0 0.0
  %1461 = vmatprep.subr.mxu0 0.0
  %1462 = vmatpush1.msra.mxu0 0.0
  %1463 = vmatprep.subr.mxu0 0.0
  %1464 = vmatpush1.msra.mxu0 0.0
  %1465 = vmatprep.subr.mxu0 0.0
  %1466 = vmatpush1.msra.mxu0 0.0
  %1467 = vmatprep.subr.mxu0 0.0
  %1468 = vmatpush1.msra.mxu0 0.0
  %1469 = vmatprep.subr.mxu0 0.0
  %1470 = vmatpush1.msra.mxu0 0.0
  %1471 = vmatprep.subr.mxu0 0.0
  %1472 = vmatpush1.msra.mxu0 0.0
  %1473 = vmatprep.subr.mxu0 0.0
  %1474 = vmatpush1.msra.mxu0 0.0
  %1475 = vmatprep.subr.mxu0 0.0
  %1476 = vmatpush1.msra.mxu0 0.0
  %1477 = vmatprep.subr.mxu0 0.0
  %1478 = vmatpush1.msra.mxu0 0.0
  %1479 = vmatprep.subr.mxu0 0.0
  %1480 = vmatpush1.msra.mxu0 0.0
  %1481 = vmatprep.subr.mxu0 0.0
  %1482 = vmatpush1.msra.mxu0 0.0
  %1483 = vmatprep.subr.mxu0 0.0
  %1484 = vmatpush1.msra.mxu0 0.0
  %1485 = vmatprep.subr.mxu0 0.0
  %1486 = vmatpush1.msra.mxu0 0.0
  %1487 = vmatprep.subr.mxu0 0.0
  %1488 = vmatpush1.msra.mxu0 0.0
  %1489 = vmatprep.subr.mxu0 0.0
  %1490 = vmatpush1.msra.mxu0 0.0
  %1491 = vmatprep.subr.mxu0 0.0
  %1492 = vmatpush1.msra.mxu0 0.0
  %1493 = vmatprep.subr.mxu0 0.0
  %1494 = vmatpush1.msra.mxu0 0.0
  %1495 = vmatprep.subr.mxu0 0.0
  %1496 = vmatpush1.msra.mxu0 0.0
  %1497 = vmatprep.subr.mxu0 0.0
  %1498 = vmatpush1.msra.mxu0 0.0
  %1499 = vmatprep.subr.mxu0 0.0
  %1500 = vmatpush1.msra.mxu0 0.0
  %1501 = vmatprep.mubr.f32.mxu0 0.0
  %1502 = vmatmul.mubr.f32.gmra.mrb[0].mxu0 %v1435
  %v1503 = vpop.f32.mrb[0].mxu0
  %v1504 = vadd.f32 0.0, %v1503
  %v1505 = vpop.f32.mrb[0].mxu0
  %1506 = vdwg.mxu0
  %1507 = vrot.lane.b32.xlu0 %v261, 104
  %v1508 = vpop.permute.xlu0 %1507
  %v1511 = vsel %vm269, %v1430, 0
  %1513 = vmatprep.subr.mxu0 0.0
  %1514 = vmatpush1.msra.mxu0 %v1508
  %1515 = vmatprep.subr.mxu0 0.0
  %1516 = vmatpush1.msra.mxu0 0.0
  %1517 = vmatprep.subr.mxu0 0.0
  %1518 = vmatpush1.msra.mxu0 0.0
  %1519 = vmatprep.subr.mxu0 0.0
  %1520 = vmatpush1.msra.mxu0 0.0
  %1521 = vmatprep.subr.mxu0 0.0
  %1522 = vmatpush1.msra.mxu0 0.0
  %1523 = vmatprep.subr.mxu0 0.0
  %1524 = vmatpush1.msra.mxu0 0.0
  %1525 = vmatprep.subr.mxu0 0.0
  %1526 = vmatpush1.msra.mxu0 0.0
  %1527 = vmatprep.subr.mxu0 0.0
  %1528 = vmatpush1.msra.mxu0 0.0
  %1529 = vmatprep.subr.mxu0 0.0
  %1530 = vmatpush1.msra.mxu0 0.0
  %1531 = vmatprep.subr.mxu0 0.0
  %1532 = vmatpush1.msra.mxu0 0.0
  %1533 = vmatprep.subr.mxu0 0.0
  %1534 = vmatpush1.msra.mxu0 0.0
  %1535 = vmatprep.subr.mxu0 0.0
  %1536 = vmatpush1.msra.mxu0 0.0
  %1537 = vmatprep.subr.mxu0 0.0
  %1538 = vmatpush1.msra.mxu0 0.0
  %1539 = vmatprep.subr.mxu0 0.0
  %1540 = vmatpush1.msra.mxu0 0.0
  %1541 = vmatprep.subr.mxu0 0.0
  %1542 = vmatpush1.msra.mxu0 0.0
  %1543 = vmatprep.subr.mxu0 0.0
  %1544 = vmatpush1.msra.mxu0 0.0
  %1545 = vmatprep.subr.mxu0 0.0
  %1546 = vmatpush1.msra.mxu0 0.0
  %1547 = vmatprep.subr.mxu0 0.0
  %1548 = vmatpush1.msra.mxu0 0.0
  %1549 = vmatprep.subr.mxu0 0.0
  %1550 = vmatpush1.msra.mxu0 0.0
  %1551 = vmatprep.subr.mxu0 0.0
  %1552 = vmatpush1.msra.mxu0 0.0
  %1553 = vmatprep.subr.mxu0 0.0
  %1554 = vmatpush1.msra.mxu0 0.0
  %1555 = vmatprep.subr.mxu0 0.0
  %1556 = vmatpush1.msra.mxu0 0.0
  %1557 = vmatprep.subr.mxu0 0.0
  %1558 = vmatpush1.msra.mxu0 0.0
  %1559 = vmatprep.subr.mxu0 0.0
  %1560 = vmatpush1.msra.mxu0 0.0
  %1561 = vmatprep.subr.mxu0 0.0
  %1562 = vmatpush1.msra.mxu0 0.0
  %1563 = vmatprep.subr.mxu0 0.0
  %1564 = vmatpush1.msra.mxu0 0.0
  %1565 = vmatprep.subr.mxu0 0.0
  %1566 = vmatpush1.msra.mxu0 0.0
  %1567 = vmatprep.subr.mxu0 0.0
  %1568 = vmatpush1.msra.mxu0 0.0
  %1569 = vmatprep.subr.mxu0 0.0
  %1570 = vmatpush1.msra.mxu0 0.0
  %1571 = vmatprep.subr.mxu0 0.0
  %1572 = vmatpush1.msra.mxu0 0.0
  %1573 = vmatprep.subr.mxu0 0.0
  %1574 = vmatpush1.msra.mxu0 0.0
  %1575 = vmatprep.subr.mxu0 0.0
  %1576 = vmatpush1.msra.mxu0 0.0
  %1577 = vmatprep.mubr.f32.mxu0 0.0
  %1578 = vmatmul.mubr.f32.gmra.mrb[0].mxu0 %v1511
  %v1579 = vpop.f32.mrb[0].mxu0
  %v1580 = vadd.f32 0.0, %v1579
  %v1581 = vpop.f32.mrb[0].mxu0
  %1582 = vdwg.mxu0
  %1585 = vrot.lane.b32.xlu0 %v843, 8
  %v1586 = vpop.permute.xlu0 %1585
  %1587 = vrot.lane.b32.xlu0 %v920, 8
  %v1588 = vpop.permute.xlu0 %1587
  %1593 = vrot.lane.b32.xlu0 %v1174, 16
  %v1594 = vpop.permute.xlu0 %1593
  %1595 = vrot.lane.b32.xlu0 %v1250, 16
  %v1596 = vpop.permute.xlu0 %1595
  %1601 = vrot.lane.b32.xlu0 %v1504, 24
  %v1602 = vpop.permute.xlu0 %1601
  %1603 = vrot.lane.b32.xlu0 %v1580, 24
  %v1604 = vpop.permute.xlu0 %1603
  %v1607 = vsel %vm269, %v515, %v1586
  %v1608 = vsel %vm269, %v588, %v1588
  %vm1609 = vcmask 130048
  %v1610 = vsel %vm1609, %v1607, %v1594
  %v1611 = vsel %vm1609, %v1608, %v1596
  %vm1612 = vcmask 195584
  %v1613 = vsel %vm1612, %v1610, %v1602
  %v1614 = vsel %vm1612, %v1611, %v1604
  %1615 = vrot.lane.b32.xlu0 %v47, 32
  %v1616 = vpop.permute.xlu0 %1615
  %1617 = vrot.lane.b32.xlu0 %v48, 32
  %v1618 = vpop.permute.xlu0 %1617
  %1619 = vrot.lane.b32.xlu0 %v49, 32
  %v1620 = vpop.permute.xlu0 %1619
  %1621 = vrot.lane.b32.xlu0 %v50, 32
  %v1622 = vpop.permute.xlu0 %1621
  %1627 = vrot.lane.b32.xlu0 %v80, 32
  %v1628 = vpop.permute.xlu0 %1627
  %v1631 = vsel %vm82, %v1613, 0
  %v1634 = vsel %vm82, %v1614, 0
  %1636 = vmatprep.subr.mxu0 0.0
  %1637 = vmatpush1.msra.mxu0 %v1616
  %1638 = vmatprep.subr.mxu0 0.0
  %1639 = vmatpush1.msra.mxu0 %v1618
  %1640 = vmatprep.subr.mxu0 0.0
  %1641 = vmatpush1.msra.mxu0 %v1620
  %1642 = vmatprep.subr.mxu0 0.0
  %1643 = vmatpush1.msra.mxu0 %v1622
  %1644 = vmatprep.subr.mxu0 0.0
  %1645 = vmatpush1.msra.mxu0 0.0
  %1646 = vmatprep.subr.mxu0 0.0
  %1647 = vmatpush1.msra.mxu0 0.0
  %1648 = vmatprep.subr.mxu0 0.0
  %1649 = vmatpush1.msra.mxu0 0.0
  %1650 = vmatprep.subr.mxu0 0.0
  %1651 = vmatpush1.msra.mxu0 0.0
  %1652 = vmatprep.subr.mxu0 0.0
  %1653 = vmatpush1.msra.mxu0 0.0
  %1654 = vmatprep.subr.mxu0 0.0
  %1655 = vmatpush1.msra.mxu0 0.0
  %1656 = vmatprep.subr.mxu0 0.0
  %1657 = vmatpush1.msra.mxu0 0.0
  %1658 = vmatprep.subr.mxu0 0.0
  %1659 = vmatpush1.msra.mxu0 0.0
  %1660 = vmatprep.subr.mxu0 0.0
  %1661 = vmatpush1.msra.mxu0 0.0
  %1662 = vmatprep.subr.mxu0 0.0
  %1663 = vmatpush1.msra.mxu0 0.0
  %1664 = vmatprep.subr.mxu0 0.0
  %1665 = vmatpush1.msra.mxu0 0.0
  %1666 = vmatprep.subr.mxu0 0.0
  %1667 = vmatpush1.msra.mxu0 0.0
  %1668 = vmatprep.subr.mxu0 0.0
  %1669 = vmatpush1.msra.mxu0 0.0
  %1670 = vmatprep.subr.mxu0 0.0
  %1671 = vmatpush1.msra.mxu0 0.0
  %1672 = vmatprep.subr.mxu0 0.0
  %1673 = vmatpush1.msra.mxu0 0.0
  %1674 = vmatprep.subr.mxu0 0.0
  %1675 = vmatpush1.msra.mxu0 0.0
  %1676 = vmatprep.subr.mxu0 0.0
  %1677 = vmatpush1.msra.mxu0 0.0
  %1678 = vmatprep.subr.mxu0 0.0
  %1679 = vmatpush1.msra.mxu0 0.0
  %1680 = vmatprep.subr.mxu0 0.0
  %1681 = vmatpush1.msra.mxu0 0.0
  %1682 = vmatprep.subr.mxu0 0.0
  %1683 = vmatpush1.msra.mxu0 0.0
  %1684 = vmatprep.subr.mxu0 0.0
  %1685 = vmatpush1.msra.mxu0 0.0
  %1686 = vmatprep.subr.mxu0 0.0
  %1687 = vmatpush1.msra.mxu0 0.0
  %1688 = vmatprep.subr.mxu0 0.0
  %1689 = vmatpush1.msra.mxu0 0.0
  %1690 = vmatprep.subr.mxu0 0.0
  %1691 = vmatpush1.msra.mxu0 0.0
  %1692 = vmatprep.subr.mxu0 0.0
  %1693 = vmatpush1.msra.mxu0 0.0
  %1694 = vmatprep.subr.mxu0 0.0
  %1695 = vmatpush1.msra.mxu0 0.0
  %1696 = vmatprep.subr.mxu0 0.0
  %1697 = vmatpush1.msra.mxu0 0.0
  %1698 = vmatprep.subr.mxu0 0.0
  %1699 = vmatpush1.msra.mxu0 0.0
  %1700 = vmatprep.mubr.f32.mxu0 0.0
  %1701 = vmatmul.mubr.f32.gmra.mrb[0].mxu0 %v1631
  %v1702 = vpop.f32.mrb[0].mxu0
  %v1703 = vadd.f32 %v1628, %v1702
  %v1704 = vpop.f32.mrb[0].mxu0
  %1705 = vmatprep.mubr.f32.mxu0 0.0
  %1706 = vmatmul.mubr.f32.gmra.mrb[0].mxu0 %v1634
  %v1707 = vpop.f32.mrb[0].mxu0
  %v1708 = vadd.f32 %v1628, %v1707
  %v1709 = vpop.f32.mrb[0].mxu0
  %1710 = vdwg.mxu0
  %v1711 = vadd.f32 %v41, %v1703
  %v1712 = vadd.f32 %v42, %v1708
  %v1713 = vsel %vm82, %v1711, 0.0
  %1714 = vadd.xlane.f32.xlu0 %v1713
  %v1715 = vpop.xlane.xlu0 %1714
  %v1716 = vsel %vm82, %v1712, 0.0
  %1717 = vadd.xlane.f32.xlu0 %v1716
  %v1718 = vpop.xlane.xlu0 %1717
  %v1719 = vrcp.pop 32.0
  %v1720 = vmul.f32 %v1715, %v1719
  %v1721 = vmul.f32 %v1718, %v1719
  %v1722 = vsub.f32 %v1711, %v1720
  %v1723 = vsub.f32 %v1712, %v1721
  %v1724 = vmul.f32 %v1722, %v1722
  %v1725 = vmul.f32 %v1723, %v1723
  %v1726 = vsel %vm82, %v1724, 0.0
  %1727 = vadd.xlane.f32.xlu0 %v1726
  %v1728 = vpop.xlane.xlu0 %1727
  %v1729 = vsel %vm82, %v1725, 0.0
  %1730 = vadd.xlane.f32.xlu0 %v1729
  %v1731 = vpop.xlane.xlu0 %1730
  %v1732 = vmul.f32 %v1728, %v1719
  %v1733 = vmul.f32 %v1731, %v1719
  %v1734 = vadd.f32 %v1732, 1e-05
  %v1735 = vadd.f32 %v1733, 1e-05
  %v1736 = vrsqrt.pop %v1734
  %v1737 = vrsqrt.pop %v1735
  %v1738 = vmul.f32 %v1722, %v1736
  %v1739 = vmul.f32 %v1723, %v1737
  %v1740 = vlaneseq
  %v1741 = vshrl.u32 %v1740, 7
  %v1742 = vsub.s32 0, %v1741
  %v1743 = vrot.slane %v71, %v1742
  %v1744 = vmul.f32 %v1738, %v1743
  %v1745 = vmul.f32 %v1739, %v1743
  %v1746 = vlaneseq
  %v1747 = vshrl.u32 %v1746, 7
  %v1748 = vsub.s32 1, %v1747
  %v1749 = vrot.slane %v71, %v1748
  %v1750 = vadd.f32 %v1744, %v1749
  %v1751 = vadd.f32 %v1745, %v1749
  %v1752 = vadd.f32 %v1750, %v72
  %v1753 = vadd.f32 %v1751, %v73
  %v1755 = vlaneseq
  %v1756 = vshrl.u32 %v1755, 7
  %v1757 = vsub.s32 0, %v1756
  %v1758 = vrot.slane %v56, %v1757
  %v1761 = vsel %vm82, %v1752, 0
  %v1764 = vsel %vm82, %v1753, 0
  %1766 = vmatprep.subr.mxu0 0.0
  %1767 = vmatpush1.msra.mxu0 %v52
  %1768 = vmatprep.subr.mxu0 0.0
  %1769 = vmatpush1.msra.mxu0 %v53
  %1770 = vmatprep.subr.mxu0 0.0
  %1771 = vmatpush1.msra.mxu0 %v54
  %1772 = vmatprep.subr.mxu0 0.0
  %1773 = vmatpush1.msra.mxu0 %v55
  %1774 = vmatprep.subr.mxu0 0.0
  %1775 = vmatpush1.msra.mxu0 0.0
  %1776 = vmatprep.subr.mxu0 0.0
  %1777 = vmatpush1.msra.mxu0 0.0
  %1778 = vmatprep.subr.mxu0 0.0
  %1779 = vmatpush1.msra.mxu0 0.0
  %1780 = vmatprep.subr.mxu0 0.0
  %1781 = vmatpush1.msra.mxu0 0.0
  %1782 = vmatprep.subr.mxu0 0.0
  %1783 = vmatpush1.msra.mxu0 0.0
  %1784 = vmatprep.subr.mxu0 0.0
  %1785 = vmatpush1.msra.mxu0 0.0
  %1786 = vmatprep.subr.mxu0 0.0
  %1787 = vmatpush1.msra.mxu0 0.0
  %1788 = vmatprep.subr.mxu0 0.0
  %1789 = vmatpush1.msra.mxu0 0.0
  %1790 = vmatprep.subr.mxu0 0.0
  %1791 = vmatpush1.msra.mxu0 0.0
  %1792 = vmatprep.subr.mxu0 0.0
  %1793 = vmatpush1.msra.mxu0 0.0
  %1794 = vmatprep.subr.mxu0 0.0
  %1795 = vmatpush1.msra.mxu0 0.0
  %1796 = vmatprep.subr.mxu0 0.0
  %1797 = vmatpush1.msra.mxu0 0.0
  %1798 = vmatprep.subr.mxu0 0.0
  %1799 = vmatpush1.msra.mxu0 0.0
  %1800 = vmatprep.subr.mxu0 0.0
  %1801 = vmatpush1.msra.mxu0 0.0
  %1802 = vmatprep.subr.mxu0 0.0
  %1803 = vmatpush1.msra.mxu0 0.0
  %1804 = vmatprep.subr.mxu0 0.0
  %1805 = vmatpush1.msra.mxu0 0.0
  %1806 = vmatprep.subr.mxu0 0.0
  %1807 = vmatpush1.msra.mxu0 0.0
  %1808 = vmatprep.subr.mxu0 0.0
  %1809 = vmatpush1.msra.mxu0 0.0
  %1810 = vmatprep.subr.mxu0 0.0
  %1811 = vmatpush1.msra.mxu0 0.0
  %1812 = vmatprep.subr.mxu0 0.0
  %1813 = vmatpush1.msra.mxu0 0.0
  %1814 = vmatprep.subr.mxu0 0.0
  %1815 = vmatpush1.msra.mxu0 0.0
  %1816 = vmatprep.subr.mxu0 0.0
  %1817 = vmatpush1.msra.mxu0 0.0
  %1818 = vmatprep.subr.mxu0 0.0
  %1819 = vmatpush1.msra.mxu0 0.0
  %1820 = vmatprep.subr.mxu0 0.0
  %1821 = vmatpush1.msra.mxu0 0.0
  %1822 = vmatprep.subr.mxu0 0.0
  %1823 = vmatpush1.msra.mxu0 0.0
  %1824 = vmatprep.subr.mxu0 0.0
  %1825 = vmatpush1.msra.mxu0 0.0
  %1826 = vmatprep.subr.mxu0 0.0
  %1827 = vmatpush1.msra.mxu0 0.0
  %1828 = vmatprep.subr.mxu0 0.0
  %1829 = vmatpush1.msra.mxu0 0.0
  %1830 = vmatprep.mubr.f32.mxu0 0.0
  %1831 = vmatmul.mubr.f32.gmra.mrb[0].mxu0 %v1761
  %v1832 = vpop.f32.mrb[0].mxu0
  %v1833 = vadd.f32 %v1758, %v1832
  %v1834 = vpop.f32.mrb[0].mxu0
  %1835 = vmatprep.mubr.f32.mxu0 0.0
  %1836 = vmatmul.mubr.f32.gmra.mrb[0].mxu0 %v1764
  %v1837 = vpop.f32.mrb[0].mxu0
  %v1838 = vadd.f32 %v1758, %v1837
  %v1839 = vpop.f32.mrb[0].mxu0
  %1840 = vdwg.mxu0
  %v1841 = vld [vmem:[%s3] sm:$0xff]
  %v1842 = vld [vmem:[%s3 + $0x8] sm:$0xff]
  %v1843 = vld [vmem:[%s3 + $0x10] sm:$0xff]
  %v1844 = vld [vmem:[%s3 + $0x18] sm:$0xff]
  %v1845 = vadd.f32 %v43, %v1841
  %v1846 = vadd.f32 %v44, %v1842
  %v1847 = vadd.f32 %v45, %v1843
  %v1848 = vadd.f32 %v46, %v1844
  %1853 = vrot.lane.b32.xlu0 %v52, 96
  %v1854 = vpop.permute.xlu0 %1853
  %1855 = vrot.lane.b32.xlu0 %v53, 96
  %v1856 = vpop.permute.xlu0 %1855
  %1857 = vrot.lane.b32.xlu0 %v54, 96
  %v1858 = vpop.permute.xlu0 %1857
  %1859 = vrot.lane.b32.xlu0 %v55, 96
  %v1860 = vpop.permute.xlu0 %1859
  %1865 = vrot.lane.b32.xlu0 %v1758, 96
  %v1866 = vpop.permute.xlu0 %1865
  %v1869 = vsel %vm82, %v1845, 0
  %v1872 = vsel %vm82, %v1846, 0
  %v1875 = vsel %vm82, %v1847, 0
  %v1878 = vsel %vm82, %v1848, 0
  %1880 = vmatprep.subr.mxu0 0.0
  %1881 = vmatpush1.msra.mxu0 %v1854
  %1882 = vmatprep.subr.mxu0 0.0
  %1883 = vmatpush1.msra.mxu0 %v1856
  %1884 = vmatprep.subr.mxu0 0.0
  %1885 = vmatpush1.msra.mxu0 %v1858
  %1886 = vmatprep.subr.mxu0 0.0
  %1887 = vmatpush1.msra.mxu0 %v1860
  %1888 = vmatprep.subr.mxu0 0.0
  %1889 = vmatpush1.msra.mxu0 0.0
  %1890 = vmatprep.subr.mxu0 0.0
  %1891 = vmatpush1.msra.mxu0 0.0
  %1892 = vmatprep.subr.mxu0 0.0
  %1893 = vmatpush1.msra.mxu0 0.0
  %1894 = vmatprep.subr.mxu0 0.0
  %1895 = vmatpush1.msra.mxu0 0.0
  %1896 = vmatprep.subr.mxu0 0.0
  %1897 = vmatpush1.msra.mxu0 0.0
  %1898 = vmatprep.subr.mxu0 0.0
  %1899 = vmatpush1.msra.mxu0 0.0
  %1900 = vmatprep.subr.mxu0 0.0
  %1901 = vmatpush1.msra.mxu0 0.0
  %1902 = vmatprep.subr.mxu0 0.0
  %1903 = vmatpush1.msra.mxu0 0.0
  %1904 = vmatprep.subr.mxu0 0.0
  %1905 = vmatpush1.msra.mxu0 0.0
  %1906 = vmatprep.subr.mxu0 0.0
  %1907 = vmatpush1.msra.mxu0 0.0
  %1908 = vmatprep.subr.mxu0 0.0
  %1909 = vmatpush1.msra.mxu0 0.0
  %1910 = vmatprep.subr.mxu0 0.0
  %1911 = vmatpush1.msra.mxu0 0.0
  %1912 = vmatprep.subr.mxu0 0.0
  %1913 = vmatpush1.msra.mxu0 0.0
  %1914 = vmatprep.subr.mxu0 0.0
  %1915 = vmatpush1.msra.mxu0 0.0
  %1916 = vmatprep.subr.mxu0 0.0
  %1917 = vmatpush1.msra.mxu0 0.0
  %1918 = vmatprep.subr.mxu0 0.0
  %1919 = vmatpush1.msra.mxu0 0.0
  %1920 = vmatprep.subr.mxu0 0.0
  %1921 = vmatpush1.msra.mxu0 0.0
  %1922 = vmatprep.subr.mxu0 0.0
  %1923 = vmatpush1.msra.mxu0 0.0
  %1924 = vmatprep.subr.mxu0 0.0
  %1925 = vmatpush1.msra.mxu0 0.0
  %1926 = vmatprep.subr.mxu0 0.0
  %1927 = vmatpush1.msra.mxu0 0.0
  %1928 = vmatprep.subr.mxu0 0.0
  %1929 = vmatpush1.msra.mxu0 0.0
  %1930 = vmatprep.subr.mxu0 0.0
  %1931 = vmatpush1.msra.mxu0 0.0
  %1932 = vmatprep.subr.mxu0 0.0
  %1933 = vmatpush1.msra.mxu0 0.0
  %1934 = vmatprep.subr.mxu0 0.0
  %1935 = vmatpush1.msra.mxu0 0.0
  %1936 = vmatprep.subr.mxu0 0.0
  %1937 = vmatpush1.msra.mxu0 0.0
  %1938 = vmatprep.subr.mxu0 0.0
  %1939 = vmatpush1.msra.mxu0 0.0
  %1940 = vmatprep.subr.mxu0 0.0
  %1941 = vmatpush1.msra.mxu0 0.0
  %1942 = vmatprep.subr.mxu0 0.0
  %1943 = vmatpush1.msra.mxu0 0.0
  %1944 = vmatprep.mubr.f32.mxu0 0.0
  %1945 = vmatmul.mubr.f32.gmra.mrb[0].mxu0 %v1869
  %v1946 = vpop.f32.mrb[0].mxu0
  %v1947 = vadd.f32 %v1866, %v1946
  %v1948 = vpop.f32.mrb[0].mxu0
  %1949 = vmatprep.mubr.f32.mxu0 0.0
  %1950 = vmatmul.mubr.f32.gmra.mrb[0].mxu0 %v1872
  %v1951 = vpop.f32.mrb[0].mxu0
  %v1952 = vadd.f32 %v1866, %v1951
  %v1953 = vpop.f32.mrb[0].mxu0
  %1954 = vmatprep.mubr.f32.mxu0 0.0
  %1955 = vmatmul.mubr.f32.gmra.mrb[0].mxu0 %v1875
  %v1956 = vpop.f32.mrb[0].mxu0
  %v1957 = vadd.f32 %v1866, %v1956
  %v1958 = vpop.f32.mrb[0].mxu0
  %1959 = vmatprep.mubr.f32.mxu0 0.0
  %1960 = vmatmul.mubr.f32.gmra.mrb[0].mxu0 %v1878
  %v1961 = vpop.f32.mrb[0].mxu0
  %v1962 = vadd.f32 %v1866, %v1961
  %v1963 = vpop.f32.mrb[0].mxu0
  %1964 = vdwg.mxu0
  %1965 = vrot.lane.b32.xlu0 %v52, 64
  %v1966 = vpop.permute.xlu0 %1965
  %1967 = vrot.lane.b32.xlu0 %v53, 64
  %v1968 = vpop.permute.xlu0 %1967
  %1969 = vrot.lane.b32.xlu0 %v54, 64
  %v1970 = vpop.permute.xlu0 %1969
  %1971 = vrot.lane.b32.xlu0 %v55, 64
  %v1972 = vpop.permute.xlu0 %1971
  %1977 = vrot.lane.b32.xlu0 %v1758, 64
  %v1978 = vpop.permute.xlu0 %1977
  %v1981 = vsel %vm82, %v43, 0
  %v1984 = vsel %vm82, %v44, 0
  %v1987 = vsel %vm82, %v45, 0
  %v1990 = vsel %vm82, %v46, 0
  %1992 = vmatprep.subr.mxu0 0.0
  %1993 = vmatpush1.msra.mxu0 %v1966
  %1994 = vmatprep.subr.mxu0 0.0
  %1995 = vmatpush1.msra.mxu0 %v1968
  %1996 = vmatprep.subr.mxu0 0.0
  %1997 = vmatpush1.msra.mxu0 %v1970
  %1998 = vmatprep.subr.mxu0 0.0
  %1999 = vmatpush1.msra.mxu0 %v1972
  %2000 = vmatprep.subr.mxu0 0.0
  %2001 = vmatpush1.msra.mxu0 0.0
  %2002 = vmatprep.subr.mxu0 0.0
  %2003 = vmatpush1.msra.mxu0 0.0
  %2004 = vmatprep.subr.mxu0 0.0
  %2005 = vmatpush1.msra.mxu0 0.0
  %2006 = vmatprep.subr.mxu0 0.0
  %2007 = vmatpush1.msra.mxu0 0.0
  %2008 = vmatprep.subr.mxu0 0.0
  %2009 = vmatpush1.msra.mxu0 0.0
  %2010 = vmatprep.subr.mxu0 0.0
  %2011 = vmatpush1.msra.mxu0 0.0
  %2012 = vmatprep.subr.mxu0 0.0
  %2013 = vmatpush1.msra.mxu0 0.0
  %2014 = vmatprep.subr.mxu0 0.0
  %2015 = vmatpush1.msra.mxu0 0.0
  %2016 = vmatprep.subr.mxu0 0.0
  %2017 = vmatpush1.msra.mxu0 0.0
  %2018 = vmatprep.subr.mxu0 0.0
  %2019 = vmatpush1.msra.mxu0 0.0
  %2020 = vmatprep.subr.mxu0 0.0
  %2021 = vmatpush1.msra.mxu0 0.0
  %2022 = vmatprep.subr.mxu0 0.0
  %2023 = vmatpush1.msra.mxu0 0.0
  %2024 = vmatprep.subr.mxu0 0.0
  %2025 = vmatpush1.msra.mxu0 0.0
  %2026 = vmatprep.subr.mxu0 0.0
  %2027 = vmatpush1.msra.mxu0 0.0
  %2028 = vmatprep.subr.mxu0 0.0
  %2029 = vmatpush1.msra.mxu0 0.0
  %2030 = vmatprep.subr.mxu0 0.0
  %2031 = vmatpush1.msra.mxu0 0.0
  %2032 = vmatprep.subr.mxu0 0.0
  %2033 = vmatpush1.msra.mxu0 0.0
  %2034 = vmatprep.subr.mxu0 0.0
  %2035 = vmatpush1.msra.mxu0 0.0
  %2036 = vmatprep.subr.mxu0 0.0
  %2037 = vmatpush1.msra.mxu0 0.0
  %2038 = vmatprep.subr.mxu0 0.0
  %2039 = vmatpush1.msra.mxu0 0.0
  %2040 = vmatprep.subr.mxu0 0.0
  %2041 = vmatpush1.msra.mxu0 0.0
  %2042 = vmatprep.subr.mxu0 0.0
  %2043 = vmatpush1.msra.mxu0 0.0
  %2044 = vmatprep.subr.mxu0 0.0
  %2045 = vmatpush1.msra.mxu0 0.0
  %2046 = vmatprep.subr.mxu0 0.0
  %2047 = vmatpush1.msra.mxu0 0.0
  %2048 = vmatprep.subr.mxu0 0.0
  %2049 = vmatpush1.msra.mxu0 0.0
  %2050 = vmatprep.subr.mxu0 0.0
  %2051 = vmatpush1.msra.mxu0 0.0
  %2052 = vmatprep.subr.mxu0 0.0
  %2053 = vmatpush1.msra.mxu0 0.0
  %2054 = vmatprep.subr.mxu0 0.0
  %2055 = vmatpush1.msra.mxu0 0.0
  %2056 = vmatprep.mubr.f32.mxu0 0.0
  %2057 = vmatmul.mubr.f32.gmra.mrb[0].mxu0 %v1981
  %v2058 = vpop.f32.mrb[0].mxu0
  %v2059 = vadd.f32 %v1978, %v2058
  %v2060 = vpop.f32.mrb[0].mxu0
  %2061 = vmatprep.mubr.f32.mxu0 0.0
  %2062 = vmatmul.mubr.f32.gmra.mrb[0].mxu0 %v1984
  %v2063 = vpop.f32.mrb[0].mxu0
  %v2064 = vadd.f32 %v1978, %v2063
  %v2065 = vpop.f32.mrb[0].mxu0
  %2066 = vmatprep.mubr.f32.mxu0 0.0
  %2067 = vmatmul.mubr.f32.gmra.mrb[0].mxu0 %v1987
  %v2068 = vpop.f32.mrb[0].mxu0
  %v2069 = vadd.f32 %v1978, %v2068
  %v2070 = vpop.f32.mrb[0].mxu0
  %2071 = vmatprep.mubr.f32.mxu0 0.0
  %2072 = vmatmul.mubr.f32.gmra.mrb[0].mxu0 %v1990
  %v2073 = vpop.f32.mrb[0].mxu0
  %v2074 = vadd.f32 %v1978, %v2073
  %v2075 = vpop.f32.mrb[0].mxu0
  %2076 = vdwg.mxu0
  %v2077 = vmul.f32 %v1833, 0.35355338
  %v2078 = vmul.f32 %v1838, 0.35355338
  %v2080 = vsel %vm269, %v2077, 0
  %v2083 = vsel %vm269, %v1947, 0
  %v2086 = vsel %vm269, %v1952, 0
  %2088 = vmatprep.subr.mxu0 0.0
  %2089 = vmatpush1.xpose.msra.mxu0 %v2083
  %2090 = vmatprep.subr.mxu0 0.0
  %2091 = vmatpush1.xpose.msra.mxu0 %v2086
  %2092 = vmatprep.subr.mxu0 0.0
  %2093 = vmatpush1.xpose.msra.mxu0 0.0
  %2094 = vmatprep.subr.mxu0 0.0
  %2095 = vmatpush1.xpose.msra.mxu0 0.0
  %2096 = vmatprep.subr.mxu0 0.0
  %2097 = vmatpush1.xpose.msra.mxu0 0.0
  %2098 = vmatprep.subr.mxu0 0.0
  %2099 = vmatpush1.xpose.msra.mxu0 0.0
  %2100 = vmatprep.subr.mxu0 0.0
  %2101 = vmatpush1.xpose.msra.mxu0 0.0
  %2102 = vmatprep.subr.mxu0 0.0
  %2103 = vmatpush1.xpose.msra.mxu0 0.0
  %2104 = vmatprep.subr.mxu0 0.0
  %2105 = vmatpush1.xpose.msra.mxu0 0.0
  %2106 = vmatprep.subr.mxu0 0.0
  %2107 = vmatpush1.xpose.msra.mxu0 0.0
  %2108 = vmatprep.subr.mxu0 0.0
  %2109 = vmatpush1.xpose.msra.mxu0 0.0
  %2110 = vmatprep.subr.mxu0 0.0
  %2111 = vmatpush1.xpose.msra.mxu0 0.0
  %2112 = vmatprep.subr.mxu0 0.0
  %2113 = vmatpush1.xpose.msra.mxu0 0.0
  %2114 = vmatprep.subr.mxu0 0.0
  %2115 = vmatpush1.xpose.msra.mxu0 0.0
  %2116 = vmatprep.subr.mxu0 0.0
  %2117 = vmatpush1.xpose.msra.mxu0 0.0
  %2118 = vmatprep.subr.mxu0 0.0
  %2119 = vmatpush1.xpose.msra.mxu0 0.0
  %2120 = vmatprep.subr.mxu0 0.0
  %2121 = vmatpush1.xpose.msra.mxu0 0.0
  %2122 = vmatprep.subr.mxu0 0.0
  %2123 = vmatpush1.xpose.msra.mxu0 0.0
  %2124 = vmatprep.subr.mxu0 0.0
  %2125 = vmatpush1.xpose.msra.mxu0 0.0
  %2126 = vmatprep.subr.mxu0 0.0
  %2127 = vmatpush1.xpose.msra.mxu0 0.0
  %2128 = vmatprep.subr.mxu0 0.0
  %2129 = vmatpush1.xpose.msra.mxu0 0.0
  %2130 = vmatprep.subr.mxu0 0.0
  %2131 = vmatpush1.xpose.msra.mxu0 0.0
  %2132 = vmatprep.subr.mxu0 0.0
  %2133 = vmatpush1.xpose.msra.mxu0 0.0
  %2134 = vmatprep.subr.mxu0 0.0
  %2135 = vmatpush1.xpose.msra.mxu0 0.0
  %2136 = vmatprep.subr.mxu0 0.0
  %2137 = vmatpush1.xpose.msra.mxu0 0.0
  %2138 = vmatprep.subr.mxu0 0.0
  %2139 = vmatpush1.xpose.msra.mxu0 0.0
  %2140 = vmatprep.subr.mxu0 0.0
  %2141 = vmatpush1.xpose.msra.mxu0 0.0
  %2142 = vmatprep.subr.mxu0 0.0
  %2143 = vmatpush1.xpose.msra.mxu0 0.0
  %2144 = vmatprep.subr.mxu0 0.0
  %2145 = vmatpush1.xpose.msra.mxu0 0.0
  %2146 = vmatprep.subr.mxu0 0.0
  %2147 = vmatpush1.xpose.msra.mxu0 0.0
  %2148 = vmatprep.subr.mxu0 0.0
  %2149 = vmatpush1.xpose.msra.mxu0 0.0
  %2150 = vmatprep.subr.mxu0 0.0
  %2151 = vmatpush1.xpose.msra.mxu0 0.0
  %2152 = vmatprep.mubr.f32.mxu0 0.0
  %2153 = vmatmul.mubr.f32.gmra.mrb[0].mxu0 %v2080
  %v2154 = vpop.f32.mrb[0].mxu0
  %v2155 = vadd.f32 0.0, %v2154
  %v2156 = vpop.f32.mrb[0].mxu0
  %2157 = vdwg.mxu0
  %v2159 = vsel %vm269, %v2078, 0
  %v2162 = vsel %vm269, %v1957, 0
  %v2165 = vsel %vm269, %v1962, 0
  %2167 = vmatprep.subr.mxu0 0.0
  %2168 = vmatpush1.xpose.msra.mxu0 %v2162
  %2169 = vmatprep.subr.mxu0 0.0
  %2170 = vmatpush1.xpose.msra.mxu0 %v2165
  %2171 = vmatprep.subr.mxu0 0.0
  %2172 = vmatpush1.xpose.msra.mxu0 0.0
  %2173 = vmatprep.subr.mxu0 0.0
  %2174 = vmatpush1.xpose.msra.mxu0 0.0
  %2175 = vmatprep.subr.mxu0 0.0
  %2176 = vmatpush1.xpose.msra.mxu0 0.0
  %2177 = vmatprep.subr.mxu0 0.0
  %2178 = vmatpush1.xpose.msra.mxu0 0.0
  %2179 = vmatprep.subr.mxu0 0.0
  %2180 = vmatpush1.xpose.msra.mxu0 0.0
  %2181 = vmatprep.subr.mxu0 0.0
  %2182 = vmatpush1.xpose.msra.mxu0 0.0
  %2183 = vmatprep.subr.mxu0 0.0
  %2184 = vmatpush1.xpose.msra.mxu0 0.0
  %2185 = vmatprep.subr.mxu0 0.0
  %2186 = vmatpush1.xpose.msra.mxu0 0.0
  %2187 = vmatprep.subr.mxu0 0.0
  %2188 = vmatpush1.xpose.msra.mxu0 0.0
  %2189 = vmatprep.subr.mxu0 0.0
  %2190 = vmatpush1.xpose.msra.mxu0 0.0
  %2191 = vmatprep.subr.mxu0 0.0
  %2192 = vmatpush1.xpose.msra.mxu0 0.0
  %2193 = vmatprep.subr.mxu0 0.0
  %2194 = vmatpush1.xpose.msra.mxu0 0.0
  %2195 = vmatprep.subr.mxu0 0.0
  %2196 = vmatpush1.xpose.msra.mxu0 0.0
  %2197 = vmatprep.subr.mxu0 0.0
  %2198 = vmatpush1.xpose.msra.mxu0 0.0
  %2199 = vmatprep.subr.mxu0 0.0
  %2200 = vmatpush1.xpose.msra.mxu0 0.0
  %2201 = vmatprep.subr.mxu0 0.0
  %2202 = vmatpush1.xpose.msra.mxu0 0.0
  %2203 = vmatprep.subr.mxu0 0.0
  %2204 = vmatpush1.xpose.msra.mxu0 0.0
  %2205 = vmatprep.subr.mxu0 0.0
  %2206 = vmatpush1.xpose.msra.mxu0 0.0
  %2207 = vmatprep.subr.mxu0 0.0
  %2208 = vmatpush1.xpose.msra.mxu0 0.0
  %2209 = vmatprep.subr.mxu0 0.0
  %2210 = vmatpush1.xpose.msra.mxu0 0.0
  %2211 = vmatprep.subr.mxu0 0.0
  %2212 = vmatpush1.xpose.msra.mxu0 0.0
  %2213 = vmatprep.subr.mxu0 0.0
  %2214 = vmatpush1.xpose.msra.mxu0 0.0
  %2215 = vmatprep.subr.mxu0 0.0
  %2216 = vmatpush1.xpose.msra.mxu0 0.0
  %2217 = vmatprep.subr.mxu0 0.0
  %2218 = vmatpush1.xpose.msra.mxu0 0.0
  %2219 = vmatprep.subr.mxu0 0.0
  %2220 = vmatpush1.xpose.msra.mxu0 0.0
  %2221 = vmatprep.subr.mxu0 0.0
  %2222 = vmatpush1.xpose.msra.mxu0 0.0
  %2223 = vmatprep.subr.mxu0 0.0
  %2224 = vmatpush1.xpose.msra.mxu0 0.0
  %2225 = vmatprep.subr.mxu0 0.0
  %2226 = vmatpush1.xpose.msra.mxu0 0.0
  %2227 = vmatprep.subr.mxu0 0.0
  %2228 = vmatpush1.xpose.msra.mxu0 0.0
  %2229 = vmatprep.subr.mxu0 0.0
  %2230 = vmatpush1.xpose.msra.mxu0 0.0
  %2231 = vmatprep.mubr.f32.mxu0 0.0
  %2232 = vmatmul.mubr.f32.gmra.mrb[0].mxu0 %v2159
  %v2233 = vpop.f32.mrb[0].mxu0
  %v2234 = vadd.f32 0.0, %v2233
  %v2235 = vpop.f32.mrb[0].mxu0
  %2236 = vdwg.mxu0
  %v2237 = vsel %vm1609, %v2155, -inf
  %2238 = vmax.xlane.f32.xlu0 %v2237
  %v2239 = vpop.xlane.xlu0 %2238
  %v2240 = vsel %vm1609, %v2234, -inf
  %2241 = vmax.xlane.f32.xlu0 %v2240
  %v2242 = vpop.xlane.xlu0 %2241
  %v2243 = vsub.f32 %v2155, %v2239
  %v2244 = vsub.f32 %v2234, %v2242
  %v2245 = vmul.f32 %v2243, 1.442695
  %v2246 = vpow.pop %v2245
  %v2247 = vmul.f32 %v2244, 1.442695
  %v2248 = vpow.pop %v2247
  %v2249 = vsel %vm1609, %v2246, 0.0
  %2250 = vadd.xlane.f32.xlu0 %v2249
  %v2251 = vpop.xlane.xlu0 %2250
  %v2252 = vsel %vm1609, %v2248, 0.0
  %2253 = vadd.xlane.f32.xlu0 %v2252
  %v2254 = vpop.xlane.xlu0 %2253
  %v2255 = vrcp.pop %v2251
  %v2256 = vmul.f32 %v2246, %v2255
  %v2257 = vrcp.pop %v2254
  %v2258 = vmul.f32 %v2248, %v2257
  %v2260 = vsel %vm1609, %v2256, 0
  %2262 = vmatprep.subr.mxu0 0.0
  %2263 = vmatpush1.msra.mxu0 %v2059
  %2264 = vmatprep.subr.mxu0 0.0
  %2265 = vmatpush1.msra.mxu0 %v2064
  %2266 = vmatprep.subr.mxu0 0.0
  %2267 = vmatpush1.msra.mxu0 0.0
  %2268 = vmatprep.subr.mxu0 0.0
  %2269 = vmatpush1.msra.mxu0 0.0
  %2270 = vmatprep.subr.mxu0 0.0
  %2271 = vmatpush1.msra.mxu0 0.0
  %2272 = vmatprep.subr.mxu0 0.0
  %2273 = vmatpush1.msra.mxu0 0.0
  %2274 = vmatprep.subr.mxu0 0.0
  %2275 = vmatpush1.msra.mxu0 0.0
  %2276 = vmatprep.subr.mxu0 0.0
  %2277 = vmatpush1.msra.mxu0 0.0
  %2278 = vmatprep.subr.mxu0 0.0
  %2279 = vmatpush1.msra.mxu0 0.0
  %2280 = vmatprep.subr.mxu0 0.0
  %2281 = vmatpush1.msra.mxu0 0.0
  %2282 = vmatprep.subr.mxu0 0.0
  %2283 = vmatpush1.msra.mxu0 0.0
  %2284 = vmatprep.subr.mxu0 0.0
  %2285 = vmatpush1.msra.mxu0 0.0
  %2286 = vmatprep.subr.mxu0 0.0
  %2287 = vmatpush1.msra.mxu0 0.0
  %2288 = vmatprep.subr.mxu0 0.0
  %2289 = vmatpush1.msra.mxu0 0.0
  %2290 = vmatprep.subr.mxu0 0.0
  %2291 = vmatpush1.msra.mxu0 0.0
  %2292 = vmatprep.subr.mxu0 0.0
  %2293 = vmatpush1.msra.mxu0 0.0
  %2294 = vmatprep.subr.mxu0 0.0
  %2295 = vmatpush1.msra.mxu0 0.0
  %2296 = vmatprep.subr.mxu0 0.0
  %2297 = vmatpush1.msra.mxu0 0.0
  %2298 = vmatprep.subr.mxu0 0.0
  %2299 = vmatpush1.msra.mxu0 0.0
  %2300 = vmatprep.subr.mxu0 0.0
  %2301 = vmatpush1.msra.mxu0 0.0
  %2302 = vmatprep.subr.mxu0 0.0
  %2303 = vmatpush1.msra.mxu0 0.0
  %2304 = vmatprep.subr.mxu0 0.0
  %2305 = vmatpush1.msra.mxu0 0.0
  %2306 = vmatprep.subr.mxu0 0.0
  %2307 = vmatpush1.msra.mxu0 0.0
  %2308 = vmatprep.subr.mxu0 0.0
  %2309 = vmatpush1.msra.mxu0 0.0
  %2310 = vmatprep.subr.mxu0 0.0
  %2311 = vmatpush1.msra.mxu0 0.0
  %2312 = vmatprep.subr.mxu0 0.0
  %2313 = vmatpush1.msra.mxu0 0.0
  %2314 = vmatprep.subr.mxu0 0.0
  %2315 = vmatpush1.msra.mxu0 0.0
  %2316 = vmatprep.subr.mxu0 0.0
  %2317 = vmatpush1.msra.mxu0 0.0
  %2318 = vmatprep.subr.mxu0 0.0
  %2319 = vmatpush1.msra.mxu0 0.0
  %2320 = vmatprep.subr.mxu0 0.0
  %2321 = vmatpush1.msra.mxu0 0.0
  %2322 = vmatprep.subr.mxu0 0.0
  %2323 = vmatpush1.msra.mxu0 0.0
  %2324 = vmatprep.subr.mxu0 0.0
  %2325 = vmatpush1.msra.mxu0 0.0
  %2326 = vmatprep.mubr.f32.mxu0 0.0
  %2327 = vmatmul.mubr.f32.gmra.mrb[0].mxu0 %v2260
  %v2328 = vpop.f32.mrb[0].mxu0
  %v2329 = vadd.f32 0.0, %v2328
  %v2330 = vpop.f32.mrb[0].mxu0
  %2331 = vdwg.mxu0
  %v2333 = vsel %vm1609, %v2258, 0
  %2335 = vmatprep.subr.mxu0 0.0
  %2336 = vmatpush1.msra.mxu0 %v2069
  %2337 = vmatprep.subr.mxu0 0.0
  %2338 = vmatpush1.msra.mxu0 %v2074
  %2339 = vmatprep.subr.mxu0 0.0
  %2340 = vmatpush1.msra.mxu0 0.0
  %2341 = vmatprep.subr.mxu0 0.0
  %2342 = vmatpush1.msra.mxu0 0.0
  %2343 = vmatprep.subr.mxu0 0.0
  %2344 = vmatpush1.msra.mxu0 0.0
  %2345 = vmatprep.subr.mxu0 0.0
  %2346 = vmatpush1.msra.mxu0 0.0
  %2347 = vmatprep.subr.mxu0 0.0
  %2348 = vmatpush1.msra.mxu0 0.0
  %2349 = vmatprep.subr.mxu0 0.0
  %2350 = vmatpush1.msra.mxu0 0.0
  %2351 = vmatprep.subr.mxu0 0.0
  %2352 = vmatpush1.msra.mxu0 0.0
  %2353 = vmatprep.subr.mxu0 0.0
  %2354 = vmatpush1.msra.mxu0 0.0
  %2355 = vmatprep.subr.mxu0 0.0
  %2356 = vmatpush1.msra.mxu0 0.0
  %2357 = vmatprep.subr.mxu0 0.0
  %2358 = vmatpush1.msra.mxu0 0.0
  %2359 = vmatprep.subr.mxu0 0.0
  %2360 = vmatpush1.msra.mxu0 0.0
  %2361 = vmatprep.subr.mxu0 0.0
  %2362 = vmatpush1.msra.mxu0 0.0
  %2363 = vmatprep.subr.mxu0 0.0
  %2364 = vmatpush1.msra.mxu0 0.0
  %2365 = vmatprep.subr.mxu0 0.0
  %2366 = vmatpush1.msra.mxu0 0.0
  %2367 = vmatprep.subr.mxu0 0.0
  %2368 = vmatpush1.msra.mxu0 0.0
  %2369 = vmatprep.subr.mxu0 0.0
  %2370 = vmatpush1.msra.mxu0 0.0
  %2371 = vmatprep.subr.mxu0 0.0
  %2372 = vmatpush1.msra.mxu0 0.0
  %2373 = vmatprep.subr.mxu0 0.0
  %2374 = vmatpush1.msra.mxu0 0.0
  %2375 = vmatprep.subr.mxu0 0.0
  %2376 = vmatpush1.msra.mxu0 0.0
  %2377 = vmatprep.subr.mxu0 0.0
  %2378 = vmatpush1.msra.mxu0 0.0
  %2379 = vmatprep.subr.mxu0 0.0
  %2380 = vmatpush1.msra.mxu0 0.0
  %2381 = vmatprep.subr.mxu0 0.0
  %2382 = vmatpush1.msra.mxu0 0.0
  %2383 = vmatprep.subr.mxu0 0.0
  %2384 = vmatpush1.msra.mxu0 0.0
  %2385 = vmatprep.subr.mxu0 0.0
  %2386 = vmatpush1.msra.mxu0 0.0
  %2387 = vmatprep.subr.mxu0 0.0
  %2388 = vmatpush1.msra.mxu0 0.0
  %2389 = vmatprep.subr.mxu0 0.0
  %2390 = vmatpush1.msra.mxu0 0.0
  %2391 = vmatprep.subr.mxu0 0.0
  %2392 = vmatpush1.msra.mxu0 0.0
  %2393 = vmatprep.subr.mxu0 0.0
  %2394 = vmatpush1.msra.mxu0 0.0
  %2395 = vmatprep.subr.mxu0 0.0
  %2396 = vmatpush1.msra.mxu0 0.0
  %2397 = vmatprep.subr.mxu0 0.0
  %2398 = vmatpush1.msra.mxu0 0.0
  %2399 = vmatprep.mubr.f32.mxu0 0.0
  %2400 = vmatmul.mubr.f32.gmra.mrb[0].mxu0 %v2333
  %v2401 = vpop.f32.mrb[0].mxu0
  %v2402 = vadd.f32 0.0, %v2401
  %v2403 = vpop.f32.mrb[0].mxu0
  %2404 = vdwg.mxu0
  %2405 = vrot.lane.b32.xlu0 %v2077, 120
  %v2406 = vpop.permute.xlu0 %2405
  %2407 = vrot.lane.b32.xlu0 %v1947, 120
  %v2408 = vpop.permute.xlu0 %2407
  %2409 = vrot.lane.b32.xlu0 %v1952, 120
  %v2410 = vpop.permute.xlu0 %2409
  %v2411 = vsel %vm269, %v2406, 0
  %v2413 = vsel %vm269, %v2408, 0
  %v2415 = vsel %vm269, %v2410, 0
  %2417 = vmatprep.subr.mxu0 0.0
  %2418 = vmatpush1.xpose.msra.mxu0 %v2413
  %2419 = vmatprep.subr.mxu0 0.0
  %2420 = vmatpush1.xpose.msra.mxu0 %v2415
  %2421 = vmatprep.subr.mxu0 0.0
  %2422 = vmatpush1.xpose.msra.mxu0 0.0
  %2423 = vmatprep.subr.mxu0 0.0
  %2424 = vmatpush1.xpose.msra.mxu0 0.0
  %2425 = vmatprep.subr.mxu0 0.0
  %2426 = vmatpush1.xpose.msra.mxu0 0.0
  %2427 = vmatprep.subr.mxu0 0.0
  %2428 = vmatpush1.xpose.msra.mxu0 0.0
  %2429 = vmatprep.subr.mxu0 0.0
  %2430 = vmatpush1.xpose.msra.mxu0 0.0
  %2431 = vmatprep.subr.mxu0 0.0
  %2432 = vmatpush1.xpose.msra.mxu0 0.0
  %2433 = vmatprep.subr.mxu0 0.0
  %2434 = vmatpush1.xpose.msra.mxu0 0.0
  %2435 = vmatprep.subr.mxu0 0.0
  %2436 = vmatpush1.xpose.msra.mxu0 0.0
  %2437 = vmatprep.subr.mxu0 0.0
  %2438 = vmatpush1.xpose.msra.mxu0 0.0
  %2439 = vmatprep.subr.mxu0 0.0
  %2440 = vmatpush1.xpose.msra.mxu0 0.0
  %2441 = vmatprep.subr.mxu0 0.0
  %2442 = vmatpush1.xpose.msra.mxu0 0.0
  %2443 = vmatprep.subr.mxu0 0.0
  %2444 = vmatpush1.xpose.msra.mxu0 0.0
  %2445 = vmatprep.subr.mxu0 0.0
  %2446 = vmatpush1.xpose.msra.mxu0 0.0
  %2447 = vmatprep.subr.mxu0 0.0
  %2448 = vmatpush1.xpose.msra.mxu0 0.0
  %2449 = vmatprep.subr.mxu0 0.0
  %2450 = vmatpush1.xpose.msra.mxu0 0.0
  %2451 = vmatprep.subr.mxu0 0.0
  %2452 = vmatpush1.xpose.msra.mxu0 0.0
  %2453 = vmatprep.subr.mxu0 0.0
  %2454 = vmatpush1.xpose.msra.mxu0 0.0
  %2455 = vmatprep.subr.mxu0 0.0
  %2456 = vmatpush1.xpose.msra.mxu0 0.0
  %2457 = vmatprep.subr.mxu0 0.0
  %2458 = vmatpush1.xpose.msra.mxu0 0.0
  %2459 = vmatprep.subr.mxu0 0.0
  %2460 = vmatpush1.xpose.msra.mxu0 0.0
  %2461 = vmatprep.subr.mxu0 0.0
  %2462 = vmatpush1.xpose.msra.mxu0 0.0
  %2463 = vmatprep.subr.mxu0 0.0
  %2464 = vmatpush1.xpose.msra.mxu0 0.0
  %2465 = vmatprep.subr.mxu0 0.0
  %2466 = vmatpush1.xpose.msra.mxu0 0.0
  %2467 = vmatprep.subr.mxu0 0.0
  %2468 = vmatpush1.xpose.msra.mxu0 0.0
  %2469 = vmatprep.subr.mxu0 0.0
  %2470 = vmatpush1.xpose.msra.mxu0 0.0
  %2471 = vmatprep.subr.mxu0 0.0
  %2472 = vmatpush1.xpose.msra.mxu0 0.0
  %2473 = vmatprep.subr.mxu0 0.0
  %2474 = vmatpush1.xpose.msra.mxu0 0.0
  %2475 = vmatprep.subr.mxu0 0.0
  %2476 = vmatpush1.xpose.msra.mxu0 0.0
  %2477 = vmatprep.subr.mxu0 0.0
  %2478 = vmatpush1.xpose.msra.mxu0 0.0
  %2479 = vmatprep.subr.mxu0 0.0
  %2480 = vmatpush1.xpose.msra.mxu0 0.0
  %2481 = vmatprep.mubr.f32.mxu0 0.0
  %2482 = vmatmul.mubr.f32.gmra.mrb[0].mxu0 %v2411
  %v2483 = vpop.f32.mrb[0].mxu0
  %v2484 = vadd.f32 0.0, %v2483
  %v2485 = vpop.f32.mrb[0].mxu0
  %2486 = vdwg.mxu0
  %2487 = vrot.lane.b32.xlu0 %v2078, 120
  %v2488 = vpop.permute.xlu0 %2487
  %2489 = vrot.lane.b32.xlu0 %v1957, 120
  %v2490 = vpop.permute.xlu0 %2489
  %2491 = vrot.lane.b32.xlu0 %v1962, 120
  %v2492 = vpop.permute.xlu0 %2491
  %v2493 = vsel %vm269, %v2488, 0
  %v2495 = vsel %vm269, %v2490, 0
  %v2497 = vsel %vm269, %v2492, 0
  %2499 = vmatprep.subr.mxu0 0.0
  %2500 = vmatpush1.xpose.msra.mxu0 %v2495
  %2501 = vmatprep.subr.mxu0 0.0
  %2502 = vmatpush1.xpose.msra.mxu0 %v2497
  %2503 = vmatprep.subr.mxu0 0.0
  %2504 = vmatpush1.xpose.msra.mxu0 0.0
  %2505 = vmatprep.subr.mxu0 0.0
  %2506 = vmatpush1.xpose.msra.mxu0 0.0
  %2507 = vmatprep.subr.mxu0 0.0
  %2508 = vmatpush1.xpose.msra.mxu0 0.0
  %2509 = vmatprep.subr.mxu0 0.0
  %2510 = vmatpush1.xpose.msra.mxu0 0.0
  %2511 = vmatprep.subr.mxu0 0.0
  %2512 = vmatpush1.xpose.msra.mxu0 0.0
  %2513 = vmatprep.subr.mxu0 0.0
  %2514 = vmatpush1.xpose.msra.mxu0 0.0
  %2515 = vmatprep.subr.mxu0 0.0
  %2516 = vmatpush1.xpose.msra.mxu0 0.0
  %2517 = vmatprep.subr.mxu0 0.0
  %2518 = vmatpush1.xpose.msra.mxu0 0.0
  %2519 = vmatprep.subr.mxu0 0.0
  %2520 = vmatpush1.xpose.msra.mxu0 0.0
  %2521 = vmatprep.subr.mxu0 0.0
  %2522 = vmatpush1.xpose.msra.mxu0 0.0
  %2523 = vmatprep.subr.mxu0 0.0
  %2524 = vmatpush1.xpose.msra.mxu0 0.0
  %2525 = vmatprep.subr.mxu0 0.0
  %2526 = vmatpush1.xpose.msra.mxu0 0.0
  %2527 = vmatprep.subr.mxu0 0.0
  %2528 = vmatpush1.xpose.msra.mxu0 0.0
  %2529 = vmatprep.subr.mxu0 0.0
  %2530 = vmatpush1.xpose.msra.mxu0 0.0
  %2531 = vmatprep.subr.mxu0 0.0
  %2532 = vmatpush1.xpose.msra.mxu0 0.0
  %2533 = vmatprep.subr.mxu0 0.0
  %2534 = vmatpush1.xpose.msra.mxu0 0.0
  %2535 = vmatprep.subr.mxu0 0.0
  %2536 = vmatpush1.xpose.msra.mxu0 0.0
  %2537 = vmatprep.subr.mxu0 0.0
  %2538 = vmatpush1.xpose.msra.mxu0 0.0
  %2539 = vmatprep.subr.mxu0 0.0
  %2540 = vmatpush1.xpose.msra.mxu0 0.0
  %2541 = vmatprep.subr.mxu0 0.0
  %2542 = vmatpush1.xpose.msra.mxu0 0.0
  %2543 = vmatprep.subr.mxu0 0.0
  %2544 = vmatpush1.xpose.msra.mxu0 0.0
  %2545 = vmatprep.subr.mxu0 0.0
  %2546 = vmatpush1.xpose.msra.mxu0 0.0
  %2547 = vmatprep.subr.mxu0 0.0
  %2548 = vmatpush1.xpose.msra.mxu0 0.0
  %2549 = vmatprep.subr.mxu0 0.0
  %2550 = vmatpush1.xpose.msra.mxu0 0.0
  %2551 = vmatprep.subr.mxu0 0.0
  %2552 = vmatpush1.xpose.msra.mxu0 0.0
  %2553 = vmatprep.subr.mxu0 0.0
  %2554 = vmatpush1.xpose.msra.mxu0 0.0
  %2555 = vmatprep.subr.mxu0 0.0
  %2556 = vmatpush1.xpose.msra.mxu0 0.0
  %2557 = vmatprep.subr.mxu0 0.0
  %2558 = vmatpush1.xpose.msra.mxu0 0.0
  %2559 = vmatprep.subr.mxu0 0.0
  %2560 = vmatpush1.xpose.msra.mxu0 0.0
  %2561 = vmatprep.subr.mxu0 0.0
  %2562 = vmatpush1.xpose.msra.mxu0 0.0
  %2563 = vmatprep.mubr.f32.mxu0 0.0
  %2564 = vmatmul.mubr.f32.gmra.mrb[0].mxu0 %v2493
  %v2565 = vpop.f32.mrb[0].mxu0
  %v2566 = vadd.f32 0.0, %v2565
  %v2567 = vpop.f32.mrb[0].mxu0
  %2568 = vdwg.mxu0
  %v2569 = vsel %vm1609, %v2484, -inf
  %2570 = vmax.xlane.f32.xlu0 %v2569
  %v2571 = vpop.xlane.xlu0 %2570
  %v2572 = vsel %vm1609, %v2566, -inf
  %2573 = vmax.xlane.f32.xlu0 %v2572
  %v2574 = vpop.xlane.xlu0 %2573
  %v2575 = vsub.f32 %v2484, %v2571
  %v2576 = vsub.f32 %v2566, %v2574
  %v2577 = vmul.f32 %v2575, 1.442695
  %v2578 = vpow.pop %v2577
  %v2579 = vmul.f32 %v2576, 1.442695
  %v2580 = vpow.pop %v2579
  %v2581 = vsel %vm1609, %v2578, 0.0
  %2582 = vadd.xlane.f32.xlu0 %v2581
  %v2583 = vpop.xlane.xlu0 %2582
  %v2584 = vsel %vm1609, %v2580, 0.0
  %2585 = vadd.xlane.f32.xlu0 %v2584
  %v2586 = vpop.xlane.xlu0 %2585
  %v2587 = vrcp.pop %v2583
  %v2588 = vmul.f32 %v2578, %v2587
  %v2589 = vrcp.pop %v2586
  %v2590 = vmul.f32 %v2580, %v2589
  %2593 = vrot.lane.b32.xlu0 %v2059, 120
  %v2594 = vpop.permute.xlu0 %2593
  %2595 = vrot.lane.b32.xlu0 %v2064, 120
  %v2596 = vpop.permute.xlu0 %2595
  %v2600 = vsel %vm1609, %v2588, 0
  %2602 = vmatprep.subr.mxu0 0.0
  %2603 = vmatpush1.msra.mxu0 %v2594
  %2604 = vmatprep.subr.mxu0 0.0
  %2605 = vmatpush1.msra.mxu0 %v2596
  %2606 = vmatprep.subr.mxu0 0.0
  %2607 = vmatpush1.msra.mxu0 0.0
  %2608 = vmatprep.subr.mxu0 0.0
  %2609 = vmatpush1.msra.mxu0 0.0
  %2610 = vmatprep.subr.mxu0 0.0
  %2611 = vmatpush1.msra.mxu0 0.0
  %2612 = vmatprep.subr.mxu0 0.0
  %2613 = vmatpush1.msra.mxu0 0.0
  %2614 = vmatprep.subr.mxu0 0.0
  %2615 = vmatpush1.msra.mxu0 0.0
  %2616 = vmatprep.subr.mxu0 0.0
  %2617 = vmatpush1.msra.mxu0 0.0
  %2618 = vmatprep.subr.mxu0 0.0
  %2619 = vmatpush1.msra.mxu0 0.0
  %2620 = vmatprep.subr.mxu0 0.0
  %2621 = vmatpush1.msra.mxu0 0.0
  %2622 = vmatprep.subr.mxu0 0.0
  %2623 = vmatpush1.msra.mxu0 0.0
  %2624 = vmatprep.subr.mxu0 0.0
  %2625 = vmatpush1.msra.mxu0 0.0
  %2626 = vmatprep.subr.mxu0 0.0
  %2627 = vmatpush1.msra.mxu0 0.0
  %2628 = vmatprep.subr.mxu0 0.0
  %2629 = vmatpush1.msra.mxu0 0.0
  %2630 = vmatprep.subr.mxu0 0.0
  %2631 = vmatpush1.msra.mxu0 0.0
  %2632 = vmatprep.subr.mxu0 0.0
  %2633 = vmatpush1.msra.mxu0 0.0
  %2634 = vmatprep.subr.mxu0 0.0
  %2635 = vmatpush1.msra.mxu0 0.0
  %2636 = vmatprep.subr.mxu0 0.0
  %2637 = vmatpush1.msra.mxu0 0.0
  %2638 = vmatprep.subr.mxu0 0.0
  %2639 = vmatpush1.msra.mxu0 0.0
  %2640 = vmatprep.subr.mxu0 0.0
  %2641 = vmatpush1.msra.mxu0 0.0
  %2642 = vmatprep.subr.mxu0 0.0
  %2643 = vmatpush1.msra.mxu0 0.0
  %2644 = vmatprep.subr.mxu0 0.0
  %2645 = vmatpush1.msra.mxu0 0.0
  %2646 = vmatprep.subr.mxu0 0.0
  %2647 = vmatpush1.msra.mxu0 0.0
  %2648 = vmatprep.subr.mxu0 0.0
  %2649 = vmatpush1.msra.mxu0 0.0
  %2650 = vmatprep.subr.mxu0 0.0
  %2651 = vmatpush1.msra.mxu0 0.0
  %2652 = vmatprep.subr.mxu0 0.0
  %2653 = vmatpush1.msra.mxu0 0.0
  %2654 = vmatprep.subr.mxu0 0.0
  %2655 = vmatpush1.msra.mxu0 0.0
  %2656 = vmatprep.subr.mxu0 0.0
  %2657 = vmatpush1.msra.mxu0 0.0
  %2658 = vmatprep.subr.mxu0 0.0
  %2659 = vmatpush1.msra.mxu0 0.0
  %2660 = vmatprep.subr.mxu0 0.0
  %2661 = vmatpush1.msra.mxu0 0.0
  %2662 = vmatprep.subr.mxu0 0.0
  %2663 = vmatpush1.msra.mxu0 0.0
  %2664 = vmatprep.subr.mxu0 0.0
  %2665 = vmatpush1.msra.mxu0 0.0
  %2666 = vmatprep.mubr.f32.mxu0 0.0
  %2667 = vmatmul.mubr.f32.gmra.mrb[0].mxu0 %v2600
  %v2668 = vpop.f32.mrb[0].mxu0
  %v2669 = vadd.f32 0.0, %v2668
  %v2670 = vpop.f32.mrb[0].mxu0
  %2671 = vdwg.mxu0
  %2674 = vrot.lane.b32.xlu0 %v2069, 120
  %v2675 = vpop.permute.xlu0 %2674
  %2676 = vrot.lane.b32.xlu0 %v2074, 120
  %v2677 = vpop.permute.xlu0 %2676
  %v2681 = vsel %vm1609, %v2590, 0
  %2683 = vmatprep.subr.mxu0 0.0
  %2684 = vmatpush1.msra.mxu0 %v2675
  %2685 = vmatprep.subr.mxu0 0.0
  %2686 = vmatpush1.msra.mxu0 %v2677
  %2687 = vmatprep.subr.mxu0 0.0
  %2688 = vmatpush1.msra.mxu0 0.0
  %2689 = vmatprep.subr.mxu0 0.0
  %2690 = vmatpush1.msra.mxu0 0.0
  %2691 = vmatprep.subr.mxu0 0.0
  %2692 = vmatpush1.msra.mxu0 0.0
  %2693 = vmatprep.subr.mxu0 0.0
  %2694 = vmatpush1.msra.mxu0 0.0
  %2695 = vmatprep.subr.mxu0 0.0
  %2696 = vmatpush1.msra.mxu0 0.0
  %2697 = vmatprep.subr.mxu0 0.0
  %2698 = vmatpush1.msra.mxu0 0.0
  %2699 = vmatprep.subr.mxu0 0.0
  %2700 = vmatpush1.msra.mxu0 0.0
  %2701 = vmatprep.subr.mxu0 0.0
  %2702 = vmatpush1.msra.mxu0 0.0
  %2703 = vmatprep.subr.mxu0 0.0
  %2704 = vmatpush1.msra.mxu0 0.0
  %2705 = vmatprep.subr.mxu0 0.0
  %2706 = vmatpush1.msra.mxu0 0.0
  %2707 = vmatprep.subr.mxu0 0.0
  %2708 = vmatpush1.msra.mxu0 0.0
  %2709 = vmatprep.subr.mxu0 0.0
  %2710 = vmatpush1.msra.mxu0 0.0
  %2711 = vmatprep.subr.mxu0 0.0
  %2712 = vmatpush1.msra.mxu0 0.0
  %2713 = vmatprep.subr.mxu0 0.0
  %2714 = vmatpush1.msra.mxu0 0.0
  %2715 = vmatprep.subr.mxu0 0.0
  %2716 = vmatpush1.msra.mxu0 0.0
  %2717 = vmatprep.subr.mxu0 0.0
  %2718 = vmatpush1.msra.mxu0 0.0
  %2719 = vmatprep.subr.mxu0 0.0
  %2720 = vmatpush1.msra.mxu0 0.0
  %2721 = vmatprep.subr.mxu0 0.0
  %2722 = vmatpush1.msra.mxu0 0.0
  %2723 = vmatprep.subr.mxu0 0.0
  %2724 = vmatpush1.msra.mxu0 0.0
  %2725 = vmatprep.subr.mxu0 0.0
  %2726 = vmatpush1.msra.mxu0 0.0
  %2727 = vmatprep.subr.mxu0 0.0
  %2728 = vmatpush1.msra.mxu0 0.0
  %2729 = vmatprep.subr.mxu0 0.0
  %2730 = vmatpush1.msra.mxu0 0.0
  %2731 = vmatprep.subr.mxu0 0.0
  %2732 = vmatpush1.msra.mxu0 0.0
  %2733 = vmatprep.subr.mxu0 0.0
  %2734 = vmatpush1.msra.mxu0 0.0
  %2735 = vmatprep.subr.mxu0 0.0
  %2736 = vmatpush1.msra.mxu0 0.0
  %2737 = vmatprep.subr.mxu0 0.0
  %2738 = vmatpush1.msra.mxu0 0.0
  %2739 = vmatprep.subr.mxu0 0.0
  %2740 = vmatpush1.msra.mxu0 0.0
  %2741 = vmatprep.subr.mxu0 0.0
  %2742 = vmatpush1.msra.mxu0 0.0
  %2743 = vmatprep.subr.mxu0 0.0
  %2744 = vmatpush1.msra.mxu0 0.0
  %2745 = vmatprep.subr.mxu0 0.0
  %2746 = vmatpush1.msra.mxu0 0.0
  %2747 = vmatprep.mubr.f32.mxu0 0.0
  %2748 = vmatmul.mubr.f32.gmra.mrb[0].mxu0 %v2681
  %v2749 = vpop.f32.mrb[0].mxu0
  %v2750 = vadd.f32 0.0, %v2749
  %v2751 = vpop.f32.mrb[0].mxu0
  %2752 = vdwg.mxu0
  %2753 = vrot.lane.b32.xlu0 %v2077, 112
  %v2754 = vpop.permute.xlu0 %2753
  %2755 = vrot.lane.b32.xlu0 %v1947, 112
  %v2756 = vpop.permute.xlu0 %2755
  %2757 = vrot.lane.b32.xlu0 %v1952, 112
  %v2758 = vpop.permute.xlu0 %2757
  %v2759 = vsel %vm269, %v2754, 0
  %v2761 = vsel %vm269, %v2756, 0
  %v2763 = vsel %vm269, %v2758, 0
  %2765 = vmatprep.subr.mxu0 0.0
  %2766 = vmatpush1.xpose.msra.mxu0 %v2761
  %2767 = vmatprep.subr.mxu0 0.0
  %2768 = vmatpush1.xpose.msra.mxu0 %v2763
  %2769 = vmatprep.subr.mxu0 0.0
  %2770 = vmatpush1.xpose.msra.mxu0 0.0
  %2771 = vmatprep.subr.mxu0 0.0
  %2772 = vmatpush1.xpose.msra.mxu0 0.0
  %2773 = vmatprep.subr.mxu0 0.0
  %2774 = vmatpush1.xpose.msra.mxu0 0.0
  %2775 = vmatprep.subr.mxu0 0.0
  %2776 = vmatpush1.xpose.msra.mxu0 0.0
  %2777 = vmatprep.subr.mxu0 0.0
  %2778 = vmatpush1.xpose.msra.mxu0 0.0
  %2779 = vmatprep.subr.mxu0 0.0
  %2780 = vmatpush1.xpose.msra.mxu0 0.0
  %2781 = vmatprep.subr.mxu0 0.0
  %2782 = vmatpush1.xpose.msra.mxu0 0.0
  %2783 = vmatprep.subr.mxu0 0.0
  %2784 = vmatpush1.xpose.msra.mxu0 0.0
  %2785 = vmatprep.subr.mxu0 0.0
  %2786 = vmatpush1.xpose.msra.mxu0 0.0
  %2787 = vmatprep.subr.mxu0 0.0
  %2788 = vmatpush1.xpose.msra.mxu0 0.0
  %2789 = vmatprep.subr.mxu0 0.0
  %2790 = vmatpush1.xpose.msra.mxu0 0.0
  %2791 = vmatprep.subr.mxu0 0.0
  %2792 = vmatpush1.xpose.msra.mxu0 0.0
  %2793 = vmatprep.subr.mxu0 0.0
  %2794 = vmatpush1.xpose.msra.mxu0 0.0
  %2795 = vmatprep.subr.mxu0 0.0
  %2796 = vmatpush1.xpose.msra.mxu0 0.0
  %2797 = vmatprep.subr.mxu0 0.0
  %2798 = vmatpush1.xpose.msra.mxu0 0.0
  %2799 = vmatprep.subr.mxu0 0.0
  %2800 = vmatpush1.xpose.msra.mxu0 0.0
  %2801 = vmatprep.subr.mxu0 0.0
  %2802 = vmatpush1.xpose.msra.mxu0 0.0
  %2803 = vmatprep.subr.mxu0 0.0
  %2804 = vmatpush1.xpose.msra.mxu0 0.0
  %2805 = vmatprep.subr.mxu0 0.0
  %2806 = vmatpush1.xpose.msra.mxu0 0.0
  %2807 = vmatprep.subr.mxu0 0.0
  %2808 = vmatpush1.xpose.msra.mxu0 0.0
  %2809 = vmatprep.subr.mxu0 0.0
  %2810 = vmatpush1.xpose.msra.mxu0 0.0
  %2811 = vmatprep.subr.mxu0 0.0
  %2812 = vmatpush1.xpose.msra.mxu0 0.0
  %2813 = vmatprep.subr.mxu0 0.0
  %2814 = vmatpush1.xpose.msra.mxu0 0.0
  %2815 = vmatprep.subr.mxu0 0.0
  %2816 = vmatpush1.xpose.msra.mxu0 0.0
  %2817 = vmatprep.subr.mxu0 0.0
  %2818 = vmatpush1.xpose.msra.mxu0 0.0
  %2819 = vmatprep.subr.mxu0 0.0
  %2820 = vmatpush1.xpose.msra.mxu0 0.0
  %2821 = vmatprep.subr.mxu0 0.0
  %2822 = vmatpush1.xpose.msra.mxu0 0.0
  %2823 = vmatprep.subr.mxu0 0.0
  %2824 = vmatpush1.xpose.msra.mxu0 0.0
  %2825 = vmatprep.subr.mxu0 0.0
  %2826 = vmatpush1.xpose.msra.mxu0 0.0
  %2827 = vmatprep.subr.mxu0 0.0
  %2828 = vmatpush1.xpose.msra.mxu0 0.0
  %2829 = vmatprep.mubr.f32.mxu0 0.0
  %2830 = vmatmul.mubr.f32.gmra.mrb[0].mxu0 %v2759
  %v2831 = vpop.f32.mrb[0].mxu0
  %v2832 = vadd.f32 0.0, %v2831
  %v2833 = vpop.f32.mrb[0].mxu0
  %2834 = vdwg.mxu0
  %2835 = vrot.lane.b32.xlu0 %v2078, 112
  %v2836 = vpop.permute.xlu0 %2835
  %2837 = vrot.lane.b32.xlu0 %v1957, 112
  %v2838 = vpop.permute.xlu0 %2837
  %2839 = vrot.lane.b32.xlu0 %v1962, 112
  %v2840 = vpop.permute.xlu0 %2839
  %v2841 = vsel %vm269, %v2836, 0
  %v2843 = vsel %vm269, %v2838, 0
  %v2845 = vsel %vm269, %v2840, 0
  %2847 = vmatprep.subr.mxu0 0.0
  %2848 = vmatpush1.xpose.msra.mxu0 %v2843
  %2849 = vmatprep.subr.mxu0 0.0
  %2850 = vmatpush1.xpose.msra.mxu0 %v2845
  %2851 = vmatprep.subr.mxu0 0.0
  %2852 = vmatpush1.xpose.msra.mxu0 0.0
  %2853 = vmatprep.subr.mxu0 0.0
  %2854 = vmatpush1.xpose.msra.mxu0 0.0
  %2855 = vmatprep.subr.mxu0 0.0
  %2856 = vmatpush1.xpose.msra.mxu0 0.0
  %2857 = vmatprep.subr.mxu0 0.0
  %2858 = vmatpush1.xpose.msra.mxu0 0.0
  %2859 = vmatprep.subr.mxu0 0.0
  %2860 = vmatpush1.xpose.msra.mxu0 0.0
  %2861 = vmatprep.subr.mxu0 0.0
  %2862 = vmatpush1.xpose.msra.mxu0 0.0
  %2863 = vmatprep.subr.mxu0 0.0
  %2864 = vmatpush1.xpose.msra.mxu0 0.0
  %2865 = vmatprep.subr.mxu0 0.0
  %2866 = vmatpush1.xpose.msra.mxu0 0.0
  %2867 = vmatprep.subr.mxu0 0.0
  %2868 = vmatpush1.xpose.msra.mxu0 0.0
  %2869 = vmatprep.subr.mxu0 0.0
  %2870 = vmatpush1.xpose.msra.mxu0 0.0
  %2871 = vmatprep.subr.mxu0 0.0
  %2872 = vmatpush1.xpose.msra.mxu0 0.0
  %2873 = vmatprep.subr.mxu0 0.0
  %2874 = vmatpush1.xpose.msra.mxu0 0.0
  %2875 = vmatprep.subr.mxu0 0.0
  %2876 = vmatpush1.xpose.msra.mxu0 0.0
  %2877 = vmatprep.subr.mxu0 0.0
  %2878 = vmatpush1.xpose.msra.mxu0 0.0
  %2879 = vmatprep.subr.mxu0 0.0
  %2880 = vmatpush1.xpose.msra.mxu0 0.0
  %2881 = vmatprep.subr.mxu0 0.0
  %2882 = vmatpush1.xpose.msra.mxu0 0.0
  %2883 = vmatprep.subr.mxu0 0.0
  %2884 = vmatpush1.xpose.msra.mxu0 0.0
  %2885 = vmatprep.subr.mxu0 0.0
  %2886 = vmatpush1.xpose.msra.mxu0 0.0
  %2887 = vmatprep.subr.mxu0 0.0
  %2888 = vmatpush1.xpose.msra.mxu0 0.0
  %2889 = vmatprep.subr.mxu0 0.0
  %2890 = vmatpush1.xpose.msra.mxu0 0.0
  %2891 = vmatprep.subr.mxu0 0.0
  %2892 = vmatpush1.xpose.msra.mxu0 0.0
  %2893 = vmatprep.subr.mxu0 0.0
  %2894 = vmatpush1.xpose.msra.mxu0 0.0
  %2895 = vmatprep.subr.mxu0 0.0
  %2896 = vmatpush1.xpose.msra.mxu0 0.0
  %2897 = vmatprep.subr.mxu0 0.0
  %2898 = vmatpush1.xpose.msra.mxu0 0.0
  %2899 = vmatprep.subr.mxu0 0.0
  %2900 = vmatpush1.xpose.msra.mxu0 0.0
  %2901 = vmatprep.subr.mxu0 0.0
  %2902 = vmatpush1.xpose.msra.mxu0 0.0
  %2903 = vmatprep.subr.mxu0 0.0
  %2904 = vmatpush1.xpose.msra.mxu0 0.0
  %2905 = vmatprep.subr.mxu0 0.0
  %2906 = vmatpush1.xpose.msra.mxu0 0.0
  %2907 = vmatprep.subr.mxu0 0.0
  %2908 = vmatpush1.xpose.msra.mxu0 0.0
  %2909 = vmatprep.subr.mxu0 0.0
  %2910 = vmatpush1.xpose.msra.mxu0 0.0
  %2911 = vmatprep.mubr.f32.mxu0 0.0
  %2912 = vmatmul.mubr.f32.gmra.mrb[0].mxu0 %v2841
  %v2913 = vpop.f32.mrb[0].mxu0
  %v2914 = vadd.f32 0.0, %v2913
  %v2915 = vpop.f32.mrb[0].mxu0
  %2916 = vdwg.mxu0
  %v2917 = vsel %vm1609, %v2832, -inf
  %2918 = vmax.xlane.f32.xlu0 %v2917
  %v2919 = vpop.xlane.xlu0 %2918
  %v2920 = vsel %vm1609, %v2914, -inf
  %2921 = vmax.xlane.f32.xlu0 %v2920
  %v2922 = vpop.xlane.xlu0 %2921
  %v2923 = vsub.f32 %v2832, %v2919
  %v2924 = vsub.f32 %v2914, %v2922
  %v2925 = vmul.f32 %v2923, 1.442695
  %v2926 = vpow.pop %v2925
  %v2927 = vmul.f32 %v2924, 1.442695
  %v2928 = vpow.pop %v2927
  %v2929 = vsel %vm1609, %v2926, 0.0
  %2930 = vadd.xlane.f32.xlu0 %v2929
  %v2931 = vpop.xlane.xlu0 %2930
  %v2932 = vsel %vm1609, %v2928, 0.0
  %2933 = vadd.xlane.f32.xlu0 %v2932
  %v2934 = vpop.xlane.xlu0 %2933
  %v2935 = vrcp.pop %v2931
  %v2936 = vmul.f32 %v2926, %v2935
  %v2937 = vrcp.pop %v2934
  %v2938 = vmul.f32 %v2928, %v2937
  %2939 = vrot.lane.b32.xlu0 %v2059, 112
  %v2940 = vpop.permute.xlu0 %2939
  %2941 = vrot.lane.b32.xlu0 %v2064, 112
  %v2942 = vpop.permute.xlu0 %2941
  %v2946 = vsel %vm1609, %v2936, 0
  %2948 = vmatprep.subr.mxu0 0.0
  %2949 = vmatpush1.msra.mxu0 %v2940
  %2950 = vmatprep.subr.mxu0 0.0
  %2951 = vmatpush1.msra.mxu0 %v2942
  %2952 = vmatprep.subr.mxu0 0.0
  %2953 = vmatpush1.msra.mxu0 0.0
  %2954 = vmatprep.subr.mxu0 0.0
  %2955 = vmatpush1.msra.mxu0 0.0
  %2956 = vmatprep.subr.mxu0 0.0
  %2957 = vmatpush1.msra.mxu0 0.0
  %2958 = vmatprep.subr.mxu0 0.0
  %2959 = vmatpush1.msra.mxu0 0.0
  %2960 = vmatprep.subr.mxu0 0.0
  %2961 = vmatpush1.msra.mxu0 0.0
  %2962 = vmatprep.subr.mxu0 0.0
  %2963 = vmatpush1.msra.mxu0 0.0
  %2964 = vmatprep.subr.mxu0 0.0
  %2965 = vmatpush1.msra.mxu0 0.0
  %2966 = vmatprep.subr.mxu0 0.0
  %2967 = vmatpush1.msra.mxu0 0.0
  %2968 = vmatprep.subr.mxu0 0.0
  %2969 = vmatpush1.msra.mxu0 0.0
  %2970 = vmatprep.subr.mxu0 0.0
  %2971 = vmatpush1.msra.mxu0 0.0
  %2972 = vmatprep.subr.mxu0 0.0
  %2973 = vmatpush1.msra.mxu0 0.0
  %2974 = vmatprep.subr.mxu0 0.0
  %2975 = vmatpush1.msra.mxu0 0.0
  %2976 = vmatprep.subr.mxu0 0.0
  %2977 = vmatpush1.msra.mxu0 0.0
  %2978 = vmatprep.subr.mxu0 0.0
  %2979 = vmatpush1.msra.mxu0 0.0
  %2980 = vmatprep.subr.mxu0 0.0
  %2981 = vmatpush1.msra.mxu0 0.0
  %2982 = vmatprep.subr.mxu0 0.0
  %2983 = vmatpush1.msra.mxu0 0.0
  %2984 = vmatprep.subr.mxu0 0.0
  %2985 = vmatpush1.msra.mxu0 0.0
  %2986 = vmatprep.subr.mxu0 0.0
  %2987 = vmatpush1.msra.mxu0 0.0
  %2988 = vmatprep.subr.mxu0 0.0
  %2989 = vmatpush1.msra.mxu0 0.0
  %2990 = vmatprep.subr.mxu0 0.0
  %2991 = vmatpush1.msra.mxu0 0.0
  %2992 = vmatprep.subr.mxu0 0.0
  %2993 = vmatpush1.msra.mxu0 0.0
  %2994 = vmatprep.subr.mxu0 0.0
  %2995 = vmatpush1.msra.mxu0 0.0
  %2996 = vmatprep.subr.mxu0 0.0
  %2997 = vmatpush1.msra.mxu0 0.0
  %2998 = vmatprep.subr.mxu0 0.0
  %2999 = vmatpush1.msra.mxu0 0.0
  %3000 = vmatprep.subr.mxu0 0.0
  %3001 = vmatpush1.msra.mxu0 0.0
  %3002 = vmatprep.subr.mxu0 0.0
  %3003 = vmatpush1.msra.mxu0 0.0
  %3004 = vmatprep.subr.mxu0 0.0
  %3005 = vmatpush1.msra.mxu0 0.0
  %3006 = vmatprep.subr.mxu0 0.0
  %3007 = vmatpush1.msra.mxu0 0.0
  %3008 = vmatprep.subr.mxu0 0.0
  %3009 = vmatpush1.msra.mxu0 0.0
  %3010 = vmatprep.subr.mxu0 0.0
  %3011 = vmatpush1.msra.mxu0 0.0
  %3012 = vmatprep.mubr.f32.mxu0 0.0
  %3013 = vmatmul.mubr.f32.gmra.mrb[0].mxu0 %v2946
  %v3014 = vpop.f32.mrb[0].mxu0
  %v3015 = vadd.f32 0.0, %v3014
  %v3016 = vpop.f32.mrb[0].mxu0
  %3017 = vdwg.mxu0
  %3018 = vrot.lane.b32.xlu0 %v2069, 112
  %v3019 = vpop.permute.xlu0 %3018
  %3020 = vrot.lane.b32.xlu0 %v2074, 112
  %v3021 = vpop.permute.xlu0 %3020
  %v3025 = vsel %vm1609, %v2938, 0
  %3027 = vmatprep.subr.mxu0 0.0
  %3028 = vmatpush1.msra.mxu0 %v3019
  %3029 = vmatprep.subr.mxu0 0.0
  %3030 = vmatpush1.msra.mxu0 %v3021
  %3031 = vmatprep.subr.mxu0 0.0
  %3032 = vmatpush1.msra.mxu0 0.0
  %3033 = vmatprep.subr.mxu0 0.0
  %3034 = vmatpush1.msra.mxu0 0.0
  %3035 = vmatprep.subr.mxu0 0.0
  %3036 = vmatpush1.msra.mxu0 0.0
  %3037 = vmatprep.subr.mxu0 0.0
  %3038 = vmatpush1.msra.mxu0 0.0
  %3039 = vmatprep.subr.mxu0 0.0
  %3040 = vmatpush1.msra.mxu0 0.0
  %3041 = vmatprep.subr.mxu0 0.0
  %3042 = vmatpush1.msra.mxu0 0.0
  %3043 = vmatprep.subr.mxu0 0.0
  %3044 = vmatpush1.msra.mxu0 0.0
  %3045 = vmatprep.subr.mxu0 0.0
  %3046 = vmatpush1.msra.mxu0 0.0
  %3047 = vmatprep.subr.mxu0 0.0
  %3048 = vmatpush1.msra.mxu0 0.0
  %3049 = vmatprep.subr.mxu0 0.0
  %3050 = vmatpush1.msra.mxu0 0.0
  %3051 = vmatprep.subr.mxu0 0.0
  %3052 = vmatpush1.msra.mxu0 0.0
  %3053 = vmatprep.subr.mxu0 0.0
  %3054 = vmatpush1.msra.mxu0 0.0
  %3055 = vmatprep.subr.mxu0 0.0
  %3056 = vmatpush1.msra.mxu0 0.0
  %3057 = vmatprep.subr.mxu0 0.0
  %3058 = vmatpush1.msra.mxu0 0.0
  %3059 = vmatprep.subr.mxu0 0.0
  %3060 = vmatpush1.msra.mxu0 0.0
  %3061 = vmatprep.subr.mxu0 0.0
  %3062 = vmatpush1.msra.mxu0 0.0
  %3063 = vmatprep.subr.mxu0 0.0
  %3064 = vmatpush1.msra.mxu0 0.0
  %3065 = vmatprep.subr.mxu0 0.0
  %3066 = vmatpush1.msra.mxu0 0.0
  %3067 = vmatprep.subr.mxu0 0.0
  %3068 = vmatpush1.msra.mxu0 0.0
  %3069 = vmatprep.subr.mxu0 0.0
  %3070 = vmatpush1.msra.mxu0 0.0
  %3071 = vmatprep.subr.mxu0 0.0
  %3072 = vmatpush1.msra.mxu0 0.0
  %3073 = vmatprep.subr.mxu0 0.0
  %3074 = vmatpush1.msra.mxu0 0.0
  %3075 = vmatprep.subr.mxu0 0.0
  %3076 = vmatpush1.msra.mxu0 0.0
  %3077 = vmatprep.subr.mxu0 0.0
  %3078 = vmatpush1.msra.mxu0 0.0
  %3079 = vmatprep.subr.mxu0 0.0
  %3080 = vmatpush1.msra.mxu0 0.0
  %3081 = vmatprep.subr.mxu0 0.0
  %3082 = vmatpush1.msra.mxu0 0.0
  %3083 = vmatprep.subr.mxu0 0.0
  %3084 = vmatpush1.msra.mxu0 0.0
  %3085 = vmatprep.subr.mxu0 0.0
  %3086 = vmatpush1.msra.mxu0 0.0
  %3087 = vmatprep.subr.mxu0 0.0
  %3088 = vmatpush1.msra.mxu0 0.0
  %3089 = vmatprep.subr.mxu0 0.0
  %3090 = vmatpush1.msra.mxu0 0.0
  %3091 = vmatprep.mubr.f32.mxu0 0.0
  %3092 = vmatmul.mubr.f32.gmra.mrb[0].mxu0 %v3025
  %v3093 = vpop.f32.mrb[0].mxu0
  %v3094 = vadd.f32 0.0, %v3093
  %v3095 = vpop.f32.mrb[0].mxu0
  %3096 = vdwg.mxu0
  %3097 = vrot.lane.b32.xlu0 %v2077, 104
  %v3098 = vpop.permute.xlu0 %3097
  %3099 = vrot.lane.b32.xlu0 %v1947, 104
  %v3100 = vpop.permute.xlu0 %3099
  %3101 = vrot.lane.b32.xlu0 %v1952, 104
  %v3102 = vpop.permute.xlu0 %3101
  %v3103 = vsel %vm269, %v3098, 0
  %v3105 = vsel %vm269, %v3100, 0
  %v3107 = vsel %vm269, %v3102, 0
  %3109 = vmatprep.subr.mxu0 0.0
  %3110 = vmatpush1.xpose.msra.mxu0 %v3105
  %3111 = vmatprep.subr.mxu0 0.0
  %3112 = vmatpush1.xpose.msra.mxu0 %v3107
  %3113 = vmatprep.subr.mxu0 0.0
  %3114 = vmatpush1.xpose.msra.mxu0 0.0
  %3115 = vmatprep.subr.mxu0 0.0
  %3116 = vmatpush1.xpose.msra.mxu0 0.0
  %3117 = vmatprep.subr.mxu0 0.0
  %3118 = vmatpush1.xpose.msra.mxu0 0.0
  %3119 = vmatprep.subr.mxu0 0.0
  %3120 = vmatpush1.xpose.msra.mxu0 0.0
  %3121 = vmatprep.subr.mxu0 0.0
  %3122 = vmatpush1.xpose.msra.mxu0 0.0
  %3123 = vmatprep.subr.mxu0 0.0
  %3124 = vmatpush1.xpose.msra.mxu0 0.0
  %3125 = vmatprep.subr.mxu0 0.0
  %3126 = vmatpush1.xpose.msra.mxu0 0.0
  %3127 = vmatprep.subr.mxu0 0.0
  %3128 = vmatpush1.xpose.msra.mxu0 0.0
  %3129 = vmatprep.subr.mxu0 0.0
  %3130 = vmatpush1.xpose.msra.mxu0 0.0
  %3131 = vmatprep.subr.mxu0 0.0
  %3132 = vmatpush1.xpose.msra.mxu0 0.0
  %3133 = vmatprep.subr.mxu0 0.0
  %3134 = vmatpush1.xpose.msra.mxu0 0.0
  %3135 = vmatprep.subr.mxu0 0.0
  %3136 = vmatpush1.xpose.msra.mxu0 0.0
  %3137 = vmatprep.subr.mxu0 0.0
  %3138 = vmatpush1.xpose.msra.mxu0 0.0
  %3139 = vmatprep.subr.mxu0 0.0
  %3140 = vmatpush1.xpose.msra.mxu0 0.0
  %3141 = vmatprep.subr.mxu0 0.0
  %3142 = vmatpush1.xpose.msra.mxu0 0.0
  %3143 = vmatprep.subr.mxu0 0.0
  %3144 = vmatpush1.xpose.msra.mxu0 0.0
  %3145 = vmatprep.subr.mxu0 0.0
  %3146 = vmatpush1.xpose.msra.mxu0 0.0
  %3147 = vmatprep.subr.mxu0 0.0
  %3148 = vmatpush1.xpose.msra.mxu0 0.0
  %3149 = vmatprep.subr.mxu0 0.0
  %3150 = vmatpush1.xpose.msra.mxu0 0.0
  %3151 = vmatprep.subr.mxu0 0.0
  %3152 = vmatpush1.xpose.msra.mxu0 0.0
  %3153 = vmatprep.subr.mxu0 0.0
  %3154 = vmatpush1.xpose.msra.mxu0 0.0
  %3155 = vmatprep.subr.mxu0 0.0
  %3156 = vmatpush1.xpose.msra.mxu0 0.0
  %3157 = vmatprep.subr.mxu0 0.0
  %3158 = vmatpush1.xpose.msra.mxu0 0.0
  %3159 = vmatprep.subr.mxu0 0.0
  %3160 = vmatpush1.xpose.msra.mxu0 0.0
  %3161 = vmatprep.subr.mxu0 0.0
  %3162 = vmatpush1.xpose.msra.mxu0 0.0
  %3163 = vmatprep.subr.mxu0 0.0
  %3164 = vmatpush1.xpose.msra.mxu0 0.0
  %3165 = vmatprep.subr.mxu0 0.0
  %3166 = vmatpush1.xpose.msra.mxu0 0.0
  %3167 = vmatprep.subr.mxu0 0.0
  %3168 = vmatpush1.xpose.msra.mxu0 0.0
  %3169 = vmatprep.subr.mxu0 0.0
  %3170 = vmatpush1.xpose.msra.mxu0 0.0
  %3171 = vmatprep.subr.mxu0 0.0
  %3172 = vmatpush1.xpose.msra.mxu0 0.0
  %3173 = vmatprep.mubr.f32.mxu0 0.0
  %3174 = vmatmul.mubr.f32.gmra.mrb[0].mxu0 %v3103
  %v3175 = vpop.f32.mrb[0].mxu0
  %v3176 = vadd.f32 0.0, %v3175
  %v3177 = vpop.f32.mrb[0].mxu0
  %3178 = vdwg.mxu0
  %3179 = vrot.lane.b32.xlu0 %v2078, 104
  %v3180 = vpop.permute.xlu0 %3179
  %3181 = vrot.lane.b32.xlu0 %v1957, 104
  %v3182 = vpop.permute.xlu0 %3181
  %3183 = vrot.lane.b32.xlu0 %v1962, 104
  %v3184 = vpop.permute.xlu0 %3183
  %v3185 = vsel %vm269, %v3180, 0
  %v3187 = vsel %vm269, %v3182, 0
  %v3189 = vsel %vm269, %v3184, 0
  %3191 = vmatprep.subr.mxu0 0.0
  %3192 = vmatpush1.xpose.msra.mxu0 %v3187
  %3193 = vmatprep.subr.mxu0 0.0
  %3194 = vmatpush1.xpose.msra.mxu0 %v3189
  %3195 = vmatprep.subr.mxu0 0.0
  %3196 = vmatpush1.xpose.msra.mxu0 0.0
  %3197 = vmatprep.subr.mxu0 0.0
  %3198 = vmatpush1.xpose.msra.mxu0 0.0
  %3199 = vmatprep.subr.mxu0 0.0
  %3200 = vmatpush1.xpose.msra.mxu0 0.0
  %3201 = vmatprep.subr.mxu0 0.0
  %3202 = vmatpush1.xpose.msra.mxu0 0.0
  %3203 = vmatprep.subr.mxu0 0.0
  %3204 = vmatpush1.xpose.msra.mxu0 0.0
  %3205 = vmatprep.subr.mxu0 0.0
  %3206 = vmatpush1.xpose.msra.mxu0 0.0
  %3207 = vmatprep.subr.mxu0 0.0
  %3208 = vmatpush1.xpose.msra.mxu0 0.0
  %3209 = vmatprep.subr.mxu0 0.0
  %3210 = vmatpush1.xpose.msra.mxu0 0.0
  %3211 = vmatprep.subr.mxu0 0.0
  %3212 = vmatpush1.xpose.msra.mxu0 0.0
  %3213 = vmatprep.subr.mxu0 0.0
  %3214 = vmatpush1.xpose.msra.mxu0 0.0
  %3215 = vmatprep.subr.mxu0 0.0
  %3216 = vmatpush1.xpose.msra.mxu0 0.0
  %3217 = vmatprep.subr.mxu0 0.0
  %3218 = vmatpush1.xpose.msra.mxu0 0.0
  %3219 = vmatprep.subr.mxu0 0.0
  %3220 = vmatpush1.xpose.msra.mxu0 0.0
  %3221 = vmatprep.subr.mxu0 0.0
  %3222 = vmatpush1.xpose.msra.mxu0 0.0
  %3223 = vmatprep.subr.mxu0 0.0
  %3224 = vmatpush1.xpose.msra.mxu0 0.0
  %3225 = vmatprep.subr.mxu0 0.0
  %3226 = vmatpush1.xpose.msra.mxu0 0.0
  %3227 = vmatprep.subr.mxu0 0.0
  %3228 = vmatpush1.xpose.msra.mxu0 0.0
  %3229 = vmatprep.subr.mxu0 0.0
  %3230 = vmatpush1.xpose.msra.mxu0 0.0
  %3231 = vmatprep.subr.mxu0 0.0
  %3232 = vmatpush1.xpose.msra.mxu0 0.0
  %3233 = vmatprep.subr.mxu0 0.0
  %3234 = vmatpush1.xpose.msra.mxu0 0.0
  %3235 = vmatprep.subr.mxu0 0.0
  %3236 = vmatpush1.xpose.msra.mxu0 0.0
  %3237 = vmatprep.subr.mxu0 0.0
  %3238 = vmatpush1.xpose.msra.mxu0 0.0
  %3239 = vmatprep.subr.mxu0 0.0
  %3240 = vmatpush1.xpose.msra.mxu0 0.0
  %3241 = vmatprep.subr.mxu0 0.0
  %3242 = vmatpush1.xpose.msra.mxu0 0.0
  %3243 = vmatprep.subr.mxu0 0.0
  %3244 = vmatpush1.xpose.msra.mxu0 0.0
  %3245 = vmatprep.subr.mxu0 0.0
  %3246 = vmatpush1.xpose.msra.mxu0 0.0
  %3247 = vmatprep.subr.mxu0 0.0
  %3248 = vmatpush1.xpose.msra.mxu0 0.0
  %3249 = vmatprep.subr.mxu0 0.0
  %3250 = vmatpush1.xpose.msra.mxu0 0.0
  %3251 = vmatprep.subr.mxu0 0.0
  %3252 = vmatpush1.xpose.msra.mxu0 0.0
  %3253 = vmatprep.subr.mxu0 0.0
  %3254 = vmatpush1.xpose.msra.mxu0 0.0
  %3255 = vmatprep.mubr.f32.mxu0 0.0
  %3256 = vmatmul.mubr.f32.gmra.mrb[0].mxu0 %v3185
  %v3257 = vpop.f32.mrb[0].mxu0
  %v3258 = vadd.f32 0.0, %v3257
  %v3259 = vpop.f32.mrb[0].mxu0
  %3260 = vdwg.mxu0
  %v3261 = vsel %vm1609, %v3176, -inf
  %3262 = vmax.xlane.f32.xlu0 %v3261
  %v3263 = vpop.xlane.xlu0 %3262
  %v3264 = vsel %vm1609, %v3258, -inf
  %3265 = vmax.xlane.f32.xlu0 %v3264
  %v3266 = vpop.xlane.xlu0 %3265
  %v3267 = vsub.f32 %v3176, %v3263
  %v3268 = vsub.f32 %v3258, %v3266
  %v3269 = vmul.f32 %v3267, 1.442695
  %v3270 = vpow.pop %v3269
  %v3271 = vmul.f32 %v3268, 1.442695
  %v3272 = vpow.pop %v3271
  %v3273 = vsel %vm1609, %v3270, 0.0
  %3274 = vadd.xlane.f32.xlu0 %v3273
  %v3275 = vpop.xlane.xlu0 %3274
  %v3276 = vsel %vm1609, %v3272, 0.0
  %3277 = vadd.xlane.f32.xlu0 %v3276
  %v3278 = vpop.xlane.xlu0 %3277
  %v3279 = vrcp.pop %v3275
  %v3280 = vmul.f32 %v3270, %v3279
  %v3281 = vrcp.pop %v3278
  %v3282 = vmul.f32 %v3272, %v3281
  %3283 = vrot.lane.b32.xlu0 %v2059, 104
  %v3284 = vpop.permute.xlu0 %3283
  %3285 = vrot.lane.b32.xlu0 %v2064, 104
  %v3286 = vpop.permute.xlu0 %3285
  %v3290 = vsel %vm1609, %v3280, 0
  %3292 = vmatprep.subr.mxu0 0.0
  %3293 = vmatpush1.msra.mxu0 %v3284
  %3294 = vmatprep.subr.mxu0 0.0
  %3295 = vmatpush1.msra.mxu0 %v3286
  %3296 = vmatprep.subr.mxu0 0.0
  %3297 = vmatpush1.msra.mxu0 0.0
  %3298 = vmatprep.subr.mxu0 0.0
  %3299 = vmatpush1.msra.mxu0 0.0
  %3300 = vmatprep.subr.mxu0 0.0
  %3301 = vmatpush1.msra.mxu0 0.0
  %3302 = vmatprep.subr.mxu0 0.0
  %3303 = vmatpush1.msra.mxu0 0.0
  %3304 = vmatprep.subr.mxu0 0.0
  %3305 = vmatpush1.msra.mxu0 0.0
  %3306 = vmatprep.subr.mxu0 0.0
  %3307 = vmatpush1.msra.mxu0 0.0
  %3308 = vmatprep.subr.mxu0 0.0
  %3309 = vmatpush1.msra.mxu0 0.0
  %3310 = vmatprep.subr.mxu0 0.0
  %3311 = vmatpush1.msra.mxu0 0.0
  %3312 = vmatprep.subr.mxu0 0.0
  %3313 = vmatpush1.msra.mxu0 0.0
  %3314 = vmatprep.subr.mxu0 0.0
  %3315 = vmatpush1.msra.mxu0 0.0
  %3316 = vmatprep.subr.mxu0 0.0
  %3317 = vmatpush1.msra.mxu0 0.0
  %3318 = vmatprep.subr.mxu0 0.0
  %3319 = vmatpush1.msra.mxu0 0.0
  %3320 = vmatprep.subr.mxu0 0.0
  %3321 = vmatpush1.msra.mxu0 0.0
  %3322 = vmatprep.subr.mxu0 0.0
  %3323 = vmatpush1.msra.mxu0 0.0
  %3324 = vmatprep.subr.mxu0 0.0
  %3325 = vmatpush1.msra.mxu0 0.0
  %3326 = vmatprep.subr.mxu0 0.0
  %3327 = vmatpush1.msra.mxu0 0.0
  %3328 = vmatprep.subr.mxu0 0.0
  %3329 = vmatpush1.msra.mxu0 0.0
  %3330 = vmatprep.subr.mxu0 0.0
  %3331 = vmatpush1.msra.mxu0 0.0
  %3332 = vmatprep.subr.mxu0 0.0
  %3333 = vmatpush1.msra.mxu0 0.0
  %3334 = vmatprep.subr.mxu0 0.0
  %3335 = vmatpush1.msra.mxu0 0.0
  %3336 = vmatprep.subr.mxu0 0.0
  %3337 = vmatpush1.msra.mxu0 0.0
  %3338 = vmatprep.subr.mxu0 0.0
  %3339 = vmatpush1.msra.mxu0 0.0
  %3340 = vmatprep.subr.mxu0 0.0
  %3341 = vmatpush1.msra.mxu0 0.0
  %3342 = vmatprep.subr.mxu0 0.0
  %3343 = vmatpush1.msra.mxu0 0.0
  %3344 = vmatprep.subr.mxu0 0.0
  %3345 = vmatpush1.msra.mxu0 0.0
  %3346 = vmatprep.subr.mxu0 0.0
  %3347 = vmatpush1.msra.mxu0 0.0
  %3348 = vmatprep.subr.mxu0 0.0
  %3349 = vmatpush1.msra.mxu0 0.0
  %3350 = vmatprep.subr.mxu0 0.0
  %3351 = vmatpush1.msra.mxu0 0.0
  %3352 = vmatprep.subr.mxu0 0.0
  %3353 = vmatpush1.msra.mxu0 0.0
  %3354 = vmatprep.subr.mxu0 0.0
  %3355 = vmatpush1.msra.mxu0 0.0
  %3356 = vmatprep.mubr.f32.mxu0 0.0
  %3357 = vmatmul.mubr.f32.gmra.mrb[0].mxu0 %v3290
  %v3358 = vpop.f32.mrb[0].mxu0
  %v3359 = vadd.f32 0.0, %v3358
  %v3360 = vpop.f32.mrb[0].mxu0
  %3361 = vdwg.mxu0
  %3362 = vrot.lane.b32.xlu0 %v2069, 104
  %v3363 = vpop.permute.xlu0 %3362
  %3364 = vrot.lane.b32.xlu0 %v2074, 104
  %v3365 = vpop.permute.xlu0 %3364
  %v3369 = vsel %vm1609, %v3282, 0
  %3371 = vmatprep.subr.mxu0 0.0
  %3372 = vmatpush1.msra.mxu0 %v3363
  %3373 = vmatprep.subr.mxu0 0.0
  %3374 = vmatpush1.msra.mxu0 %v3365
  %3375 = vmatprep.subr.mxu0 0.0
  %3376 = vmatpush1.msra.mxu0 0.0
  %3377 = vmatprep.subr.mxu0 0.0
  %3378 = vmatpush1.msra.mxu0 0.0
  %3379 = vmatprep.subr.mxu0 0.0
  %3380 = vmatpush1.msra.mxu0 0.0
  %3381 = vmatprep.subr.mxu0 0.0
  %3382 = vmatpush1.msra.mxu0 0.0
  %3383 = vmatprep.subr.mxu0 0.0
  %3384 = vmatpush1.msra.mxu0 0.0
  %3385 = vmatprep.subr.mxu0 0.0
  %3386 = vmatpush1.msra.mxu0 0.0
  %3387 = vmatprep.subr.mxu0 0.0
  %3388 = vmatpush1.msra.mxu0 0.0
  %3389 = vmatprep.subr.mxu0 0.0
  %3390 = vmatpush1.msra.mxu0 0.0
  %3391 = vmatprep.subr.mxu0 0.0
  %3392 = vmatpush1.msra.mxu0 0.0
  %3393 = vmatprep.subr.mxu0 0.0
  %3394 = vmatpush1.msra.mxu0 0.0
  %3395 = vmatprep.subr.mxu0 0.0
  %3396 = vmatpush1.msra.mxu0 0.0
  %3397 = vmatprep.subr.mxu0 0.0
  %3398 = vmatpush1.msra.mxu0 0.0
  %3399 = vmatprep.subr.mxu0 0.0
  %3400 = vmatpush1.msra.mxu0 0.0
  %3401 = vmatprep.subr.mxu0 0.0
  %3402 = vmatpush1.msra.mxu0 0.0
  %3403 = vmatprep.subr.mxu0 0.0
  %3404 = vmatpush1.msra.mxu0 0.0
  %3405 = vmatprep.subr.mxu0 0.0
  %3406 = vmatpush1.msra.mxu0 0.0
  %3407 = vmatprep.subr.mxu0 0.0
  %3408 = vmatpush1.msra.mxu0 0.0
  %3409 = vmatprep.subr.mxu0 0.0
  %3410 = vmatpush1.msra.mxu0 0.0
  %3411 = vmatprep.subr.mxu0 0.0
  %3412 = vmatpush1.msra.mxu0 0.0
  %3413 = vmatprep.subr.mxu0 0.0
  %3414 = vmatpush1.msra.mxu0 0.0
  %3415 = vmatprep.subr.mxu0 0.0
  %3416 = vmatpush1.msra.mxu0 0.0
  %3417 = vmatprep.subr.mxu0 0.0
  %3418 = vmatpush1.msra.mxu0 0.0
  %3419 = vmatprep.subr.mxu0 0.0
  %3420 = vmatpush1.msra.mxu0 0.0
  %3421 = vmatprep.subr.mxu0 0.0
  %3422 = vmatpush1.msra.mxu0 0.0
  %3423 = vmatprep.subr.mxu0 0.0
  %3424 = vmatpush1.msra.mxu0 0.0
  %3425 = vmatprep.subr.mxu0 0.0
  %3426 = vmatpush1.msra.mxu0 0.0
  %3427 = vmatprep.subr.mxu0 0.0
  %3428 = vmatpush1.msra.mxu0 0.0
  %3429 = vmatprep.subr.mxu0 0.0
  %3430 = vmatpush1.msra.mxu0 0.0
  %3431 = vmatprep.subr.mxu0 0.0
  %3432 = vmatpush1.msra.mxu0 0.0
  %3433 = vmatprep.subr.mxu0 0.0
  %3434 = vmatpush1.msra.mxu0 0.0
  %3435 = vmatprep.mubr.f32.mxu0 0.0
  %3436 = vmatmul.mubr.f32.gmra.mrb[0].mxu0 %v3369
  %v3437 = vpop.f32.mrb[0].mxu0
  %v3438 = vadd.f32 0.0, %v3437
  %v3439 = vpop.f32.mrb[0].mxu0
  %3440 = vdwg.mxu0
  %3443 = vrot.lane.b32.xlu0 %v2669, 8
  %v3444 = vpop.permute.xlu0 %3443
  %3445 = vrot.lane.b32.xlu0 %v2750, 8
  %v3446 = vpop.permute.xlu0 %3445
  %3451 = vrot.lane.b32.xlu0 %v3015, 16
  %v3452 = vpop.permute.xlu0 %3451
  %3453 = vrot.lane.b32.xlu0 %v3094, 16
  %v3454 = vpop.permute.xlu0 %3453
  %3459 = vrot.lane.b32.xlu0 %v3359, 24
  %v3460 = vpop.permute.xlu0 %3459
  %3461 = vrot.lane.b32.xlu0 %v3438, 24
  %v3462 = vpop.permute.xlu0 %3461
  %v3465 = vsel %vm269, %v2329, %v3444
  %v3466 = vsel %vm269, %v2402, %v3446
  %v3467 = vsel %vm1609, %v3465, %v3452
  %v3468 = vsel %vm1609, %v3466, %v3454
  %v3469 = vsel %vm1612, %v3467, %v3460
  %v3470 = vsel %vm1612, %v3468, %v3462
  %3471 = vrot.lane.b32.xlu0 %v52, 32
  %v3472 = vpop.permute.xlu0 %3471
  %3473 = vrot.lane.b32.xlu0 %v53, 32
  %v3474 = vpop.permute.xlu0 %3473
  %3475 = vrot.lane.b32.xlu0 %v54, 32
  %v3476 = vpop.permute.xlu0 %3475
  %3477 = vrot.lane.b32.xlu0 %v55, 32
  %v3478 = vpop.permute.xlu0 %3477
  %3483 = vrot.lane.b32.xlu0 %v1758, 32
  %v3484 = vpop.permute.xlu0 %3483
  %v3487 = vsel %vm82, %v3469, 0
  %v3490 = vsel %vm82, %v3470, 0
  %3492 = vmatprep.subr.mxu0 0.0
  %3493 = vmatpush1.msra.mxu0 %v3472
  %3494 = vmatprep.subr.mxu0 0.0
  %3495 = vmatpush1.msra.mxu0 %v3474
  %3496 = vmatprep.subr.mxu0 0.0
  %3497 = vmatpush1.msra.mxu0 %v3476
  %3498 = vmatprep.subr.mxu0 0.0
  %3499 = vmatpush1.msra.mxu0 %v3478
  %3500 = vmatprep.subr.mxu0 0.0
  %3501 = vmatpush1.msra.mxu0 0.0
  %3502 = vmatprep.subr.mxu0 0.0
  %3503 = vmatpush1.msra.mxu0 0.0
  %3504 = vmatprep.subr.mxu0 0.0
  %3505 = vmatpush1.msra.mxu0 0.0
  %3506 = vmatprep.subr.mxu0 0.0
  %3507 = vmatpush1.msra.mxu0 0.0
  %3508 = vmatprep.subr.mxu0 0.0
  %3509 = vmatpush1.msra.mxu0 0.0
  %3510 = vmatprep.subr.mxu0 0.0
  %3511 = vmatpush1.msra.mxu0 0.0
  %3512 = vmatprep.subr.mxu0 0.0
  %3513 = vmatpush1.msra.mxu0 0.0
  %3514 = vmatprep.subr.mxu0 0.0
  %3515 = vmatpush1.msra.mxu0 0.0
  %3516 = vmatprep.subr.mxu0 0.0
  %3517 = vmatpush1.msra.mxu0 0.0
  %3518 = vmatprep.subr.mxu0 0.0
  %3519 = vmatpush1.msra.mxu0 0.0
  %3520 = vmatprep.subr.mxu0 0.0
  %3521 = vmatpush1.msra.mxu0 0.0
  %3522 = vmatprep.subr.mxu0 0.0
  %3523 = vmatpush1.msra.mxu0 0.0
  %3524 = vmatprep.subr.mxu0 0.0
  %3525 = vmatpush1.msra.mxu0 0.0
  %3526 = vmatprep.subr.mxu0 0.0
  %3527 = vmatpush1.msra.mxu0 0.0
  %3528 = vmatprep.subr.mxu0 0.0
  %3529 = vmatpush1.msra.mxu0 0.0
  %3530 = vmatprep.subr.mxu0 0.0
  %3531 = vmatpush1.msra.mxu0 0.0
  %3532 = vmatprep.subr.mxu0 0.0
  %3533 = vmatpush1.msra.mxu0 0.0
  %3534 = vmatprep.subr.mxu0 0.0
  %3535 = vmatpush1.msra.mxu0 0.0
  %3536 = vmatprep.subr.mxu0 0.0
  %3537 = vmatpush1.msra.mxu0 0.0
  %3538 = vmatprep.subr.mxu0 0.0
  %3539 = vmatpush1.msra.mxu0 0.0
  %3540 = vmatprep.subr.mxu0 0.0
  %3541 = vmatpush1.msra.mxu0 0.0
  %3542 = vmatprep.subr.mxu0 0.0
  %3543 = vmatpush1.msra.mxu0 0.0
  %3544 = vmatprep.subr.mxu0 0.0
  %3545 = vmatpush1.msra.mxu0 0.0
  %3546 = vmatprep.subr.mxu0 0.0
  %3547 = vmatpush1.msra.mxu0 0.0
  %3548 = vmatprep.subr.mxu0 0.0
  %3549 = vmatpush1.msra.mxu0 0.0
  %3550 = vmatprep.subr.mxu0 0.0
  %3551 = vmatpush1.msra.mxu0 0.0
  %3552 = vmatprep.subr.mxu0 0.0
  %3553 = vmatpush1.msra.mxu0 0.0
  %3554 = vmatprep.subr.mxu0 0.0
  %3555 = vmatpush1.msra.mxu0 0.0
  %3556 = vmatprep.mubr.f32.mxu0 0.0
  %3557 = vmatmul.mubr.f32.gmra.mrb[0].mxu0 %v3487
  %v3558 = vpop.f32.mrb[0].mxu0
  %v3559 = vadd.f32 %v3484, %v3558
  %v3560 = vpop.f32.mrb[0].mxu0
  %3561 = vmatprep.mubr.f32.mxu0 0.0
  %3562 = vmatmul.mubr.f32.gmra.mrb[0].mxu0 %v3490
  %v3563 = vpop.f32.mrb[0].mxu0
  %v3564 = vadd.f32 %v3484, %v3563
  %v3565 = vpop.f32.mrb[0].mxu0
  %3566 = vdwg.mxu0
  %v3567 = vadd.f32 %v1750, %v3559
  %v3568 = vadd.f32 %v1751, %v3564
  %v3569 = vsel %vm82, %v3567, 0.0
  %3570 = vadd.xlane.f32.xlu0 %v3569
  %v3571 = vpop.xlane.xlu0 %3570
  %v3572 = vsel %vm82, %v3568, 0.0
  %3573 = vadd.xlane.f32.xlu0 %v3572
  %v3574 = vpop.xlane.xlu0 %3573
  %v3575 = vmul.f32 %v3571, %v1719
  %v3576 = vmul.f32 %v3574, %v1719
  %v3577 = vsub.f32 %v3567, %v3575
  %v3578 = vsub.f32 %v3568, %v3576
  %v3579 = vmul.f32 %v3577, %v3577
  %v3580 = vmul.f32 %v3578, %v3578
  %v3581 = vsel %vm82, %v3579, 0.0
  %3582 = vadd.xlane.f32.xlu0 %v3581
  %v3583 = vpop.xlane.xlu0 %3582
  %v3584 = vsel %vm82, %v3580, 0.0
  %3585 = vadd.xlane.f32.xlu0 %v3584
  %v3586 = vpop.xlane.xlu0 %3585
  %v3587 = vmul.f32 %v3583, %v1719
  %v3588 = vmul.f32 %v3586, %v1719
  %v3589 = vadd.f32 %v3587, 1e-05
  %v3590 = vadd.f32 %v3588, 1e-05
  %v3591 = vrsqrt.pop %v3589
  %v3592 = vrsqrt.pop %v3590
  %v3593 = vmul.f32 %v3577, %v3591
  %v3594 = vmul.f32 %v3578, %v3592
  %v3595 = vlaneseq
  %v3596 = vshrl.u32 %v3595, 7
  %v3597 = vsub.s32 2, %v3596
  %v3598 = vrot.slane %v71, %v3597
  %v3599 = vmul.f32 %v3593, %v3598
  %v3600 = vmul.f32 %v3594, %v3598
  %v3601 = vlaneseq
  %v3602 = vshrl.u32 %v3601, 7
  %v3603 = vsub.s32 3, %v3602
  %v3604 = vrot.slane %v71, %v3603
  %v3605 = vadd.f32 %v3599, %v3604
  %v3606 = vadd.f32 %v3600, %v3604
  %v3607 = vld [vmem:[%s4] sm:$0xff]
  %v3608 = vld [vmem:[%s4 + $0x8] sm:$0xff]
  %v3609 = vld [vmem:[%s4 + $0x10] sm:$0xff]
  %v3610 = vld [vmem:[%s4 + $0x18] sm:$0xff]
  %v3612 = vsel %vm82, %v3607, 0
  %v3615 = vsel %vm82, %v3608, 0
  %v3618 = vsel %vm82, %v3609, 0
  %v3621 = vsel %vm82, %v3610, 0
  %3623 = vmatprep.subr.mxu0 0.0
  %3624 = vmatpush1.msra.mxu0 %v1854
  %3625 = vmatprep.subr.mxu0 0.0
  %3626 = vmatpush1.msra.mxu0 %v1856
  %3627 = vmatprep.subr.mxu0 0.0
  %3628 = vmatpush1.msra.mxu0 %v1858
  %3629 = vmatprep.subr.mxu0 0.0
  %3630 = vmatpush1.msra.mxu0 %v1860
  %3631 = vmatprep.subr.mxu0 0.0
  %3632 = vmatpush1.msra.mxu0 0.0
  %3633 = vmatprep.subr.mxu0 0.0
  %3634 = vmatpush1.msra.mxu0 0.0
  %3635 = vmatprep.subr.mxu0 0.0
  %3636 = vmatpush1.msra.mxu0 0.0
  %3637 = vmatprep.subr.mxu0 0.0
  %3638 = vmatpush1.msra.mxu0 0.0
  %3639 = vmatprep.subr.mxu0 0.0
  %3640 = vmatpush1.msra.mxu0 0.0
  %3641 = vmatprep.subr.mxu0 0.0
  %3642 = vmatpush1.msra.mxu0 0.0
  %3643 = vmatprep.subr.mxu0 0.0
  %3644 = vmatpush1.msra.mxu0 0.0
  %3645 = vmatprep.subr.mxu0 0.0
  %3646 = vmatpush1.msra.mxu0 0.0
  %3647 = vmatprep.subr.mxu0 0.0
  %3648 = vmatpush1.msra.mxu0 0.0
  %3649 = vmatprep.subr.mxu0 0.0
  %3650 = vmatpush1.msra.mxu0 0.0
  %3651 = vmatprep.subr.mxu0 0.0
  %3652 = vmatpush1.msra.mxu0 0.0
  %3653 = vmatprep.subr.mxu0 0.0
  %3654 = vmatpush1.msra.mxu0 0.0
  %3655 = vmatprep.subr.mxu0 0.0
  %3656 = vmatpush1.msra.mxu0 0.0
  %3657 = vmatprep.subr.mxu0 0.0
  %3658 = vmatpush1.msra.mxu0 0.0
  %3659 = vmatprep.subr.mxu0 0.0
  %3660 = vmatpush1.msra.mxu0 0.0
  %3661 = vmatprep.subr.mxu0 0.0
  %3662 = vmatpush1.msra.mxu0 0.0
  %3663 = vmatprep.subr.mxu0 0.0
  %3664 = vmatpush1.msra.mxu0 0.0
  %3665 = vmatprep.subr.mxu0 0.0
  %3666 = vmatpush1.msra.mxu0 0.0
  %3667 = vmatprep.subr.mxu0 0.0
  %3668 = vmatpush1.msra.mxu0 0.0
  %3669 = vmatprep.subr.mxu0 0.0
  %3670 = vmatpush1.msra.mxu0 0.0
  %3671 = vmatprep.subr.mxu0 0.0
  %3672 = vmatpush1.msra.mxu0 0.0
  %3673 = vmatprep.subr.mxu0 0.0
  %3674 = vmatpush1.msra.mxu0 0.0
  %3675 = vmatprep.subr.mxu0 0.0
  %3676 = vmatpush1.msra.mxu0 0.0
  %3677 = vmatprep.subr.mxu0 0.0
  %3678 = vmatpush1.msra.mxu0 0.0
  %3679 = vmatprep.subr.mxu0 0.0
  %3680 = vmatpush1.msra.mxu0 0.0
  %3681 = vmatprep.subr.mxu0 0.0
  %3682 = vmatpush1.msra.mxu0 0.0
  %3683 = vmatprep.subr.mxu0 0.0
  %3684 = vmatpush1.msra.mxu0 0.0
  %3685 = vmatprep.subr.mxu0 0.0
  %3686 = vmatpush1.msra.mxu0 0.0
  %3687 = vmatprep.mubr.f32.mxu0 0.0
  %3688 = vmatmul.mubr.f32.gmra.mrb[0].mxu0 %v3612
  %v3689 = vpop.f32.mrb[0].mxu0
  %v3690 = vadd.f32 %v1866, %v3689
  %v3691 = vpop.f32.mrb[0].mxu0
  %3692 = vmatprep.mubr.f32.mxu0 0.0
  %3693 = vmatmul.mubr.f32.gmra.mrb[0].mxu0 %v3615
  %v3694 = vpop.f32.mrb[0].mxu0
  %v3695 = vadd.f32 %v1866, %v3694
  %v3696 = vpop.f32.mrb[0].mxu0
  %3697 = vmatprep.mubr.f32.mxu0 0.0
  %3698 = vmatmul.mubr.f32.gmra.mrb[0].mxu0 %v3618
  %v3699 = vpop.f32.mrb[0].mxu0
  %v3700 = vadd.f32 %v1866, %v3699
  %v3701 = vpop.f32.mrb[0].mxu0
  %3702 = vmatprep.mubr.f32.mxu0 0.0
  %3703 = vmatmul.mubr.f32.gmra.mrb[0].mxu0 %v3621
  %v3704 = vpop.f32.mrb[0].mxu0
  %v3705 = vadd.f32 %v1866, %v3704
  %v3706 = vpop.f32.mrb[0].mxu0
  %3707 = vdwg.mxu0
  %v3709 = vsel %vm269, %v3690, 0
  %v3712 = vsel %vm269, %v3695, 0
  %3714 = vmatprep.subr.mxu0 0.0
  %3715 = vmatpush1.xpose.msra.mxu0 %v3709
  %3716 = vmatprep.subr.mxu0 0.0
  %3717 = vmatpush1.xpose.msra.mxu0 %v3712
  %3718 = vmatprep.subr.mxu0 0.0
  %3719 = vmatpush1.xpose.msra.mxu0 0.0
  %3720 = vmatprep.subr.mxu0 0.0
  %3721 = vmatpush1.xpose.msra.mxu0 0.0
  %3722 = vmatprep.subr.mxu0 0.0
  %3723 = vmatpush1.xpose.msra.mxu0 0.0
  %3724 = vmatprep.subr.mxu0 0.0
  %3725 = vmatpush1.xpose.msra.mxu0 0.0
  %3726 = vmatprep.subr.mxu0 0.0
  %3727 = vmatpush1.xpose.msra.mxu0 0.0
  %3728 = vmatprep.subr.mxu0 0.0
  %3729 = vmatpush1.xpose.msra.mxu0 0.0
  %3730 = vmatprep.subr.mxu0 0.0
  %3731 = vmatpush1.xpose.msra.mxu0 0.0
  %3732 = vmatprep.subr.mxu0 0.0
  %3733 = vmatpush1.xpose.msra.mxu0 0.0
  %3734 = vmatprep.subr.mxu0 0.0
  %3735 = vmatpush1.xpose.msra.mxu0 0.0
  %3736 = vmatprep.subr.mxu0 0.0
  %3737 = vmatpush1.xpose.msra.mxu0 0.0
  %3738 = vmatprep.subr.mxu0 0.0
  %3739 = vmatpush1.xpose.msra.mxu0 0.0
  %3740 = vmatprep.subr.mxu0 0.0
  %3741 = vmatpush1.xpose.msra.mxu0 0.0
  %3742 = vmatprep.subr.mxu0 0.0
  %3743 = vmatpush1.xpose.msra.mxu0 0.0
  %3744 = vmatprep.subr.mxu0 0.0
  %3745 = vmatpush1.xpose.msra.mxu0 0.0
  %3746 = vmatprep.subr.mxu0 0.0
  %3747 = vmatpush1.xpose.msra.mxu0 0.0
  %3748 = vmatprep.subr.mxu0 0.0
  %3749 = vmatpush1.xpose.msra.mxu0 0.0
  %3750 = vmatprep.subr.mxu0 0.0
  %3751 = vmatpush1.xpose.msra.mxu0 0.0
  %3752 = vmatprep.subr.mxu0 0.0
  %3753 = vmatpush1.xpose.msra.mxu0 0.0
  %3754 = vmatprep.subr.mxu0 0.0
  %3755 = vmatpush1.xpose.msra.mxu0 0.0
  %3756 = vmatprep.subr.mxu0 0.0
  %3757 = vmatpush1.xpose.msra.mxu0 0.0
  %3758 = vmatprep.subr.mxu0 0.0
  %3759 = vmatpush1.xpose.msra.mxu0 0.0
  %3760 = vmatprep.subr.mxu0 0.0
  %3761 = vmatpush1.xpose.msra.mxu0 0.0
  %3762 = vmatprep.subr.mxu0 0.0
  %3763 = vmatpush1.xpose.msra.mxu0 0.0
  %3764 = vmatprep.subr.mxu0 0.0
  %3765 = vmatpush1.xpose.msra.mxu0 0.0
  %3766 = vmatprep.subr.mxu0 0.0
  %3767 = vmatpush1.xpose.msra.mxu0 0.0
  %3768 = vmatprep.subr.mxu0 0.0
  %3769 = vmatpush1.xpose.msra.mxu0 0.0
  %3770 = vmatprep.subr.mxu0 0.0
  %3771 = vmatpush1.xpose.msra.mxu0 0.0
  %3772 = vmatprep.subr.mxu0 0.0
  %3773 = vmatpush1.xpose.msra.mxu0 0.0
  %3774 = vmatprep.subr.mxu0 0.0
  %3775 = vmatpush1.xpose.msra.mxu0 0.0
  %3776 = vmatprep.subr.mxu0 0.0
  %3777 = vmatpush1.xpose.msra.mxu0 0.0
  %3778 = vmatprep.mubr.f32.mxu0 0.0
  %3779 = vmatmul.mubr.f32.gmra.mrb[0].mxu0 %v2080
  %v3780 = vpop.f32.mrb[0].mxu0
  %v3781 = vadd.f32 0.0, %v3780
  %v3782 = vpop.f32.mrb[0].mxu0
  %3783 = vdwg.mxu0
  %v3785 = vsel %vm269, %v3700, 0
  %v3788 = vsel %vm269, %v3705, 0
  %3790 = vmatprep.subr.mxu0 0.0
  %3791 = vmatpush1.xpose.msra.mxu0 %v3785
  %3792 = vmatprep.subr.mxu0 0.0
  %3793 = vmatpush1.xpose.msra.mxu0 %v3788
  %3794 = vmatprep.subr.mxu0 0.0
  %3795 = vmatpush1.xpose.msra.mxu0 0.0
  %3796 = vmatprep.subr.mxu0 0.0
  %3797 = vmatpush1.xpose.msra.mxu0 0.0
  %3798 = vmatprep.subr.mxu0 0.0
  %3799 = vmatpush1.xpose.msra.mxu0 0.0
  %3800 = vmatprep.subr.mxu0 0.0
  %3801 = vmatpush1.xpose.msra.mxu0 0.0
  %3802 = vmatprep.subr.mxu0 0.0
  %3803 = vmatpush1.xpose.msra.mxu0 0.0
  %3804 = vmatprep.subr.mxu0 0.0
  %3805 = vmatpush1.xpose.msra.mxu0 0.0
  %3806 = vmatprep.subr.mxu0 0.0
  %3807 = vmatpush1.xpose.msra.mxu0 0.0
  %3808 = vmatprep.subr.mxu0 0.0
  %3809 = vmatpush1.xpose.msra.mxu0 0.0
  %3810 = vmatprep.subr.mxu0 0.0
  %3811 = vmatpush1.xpose.msra.mxu0 0.0
  %3812 = vmatprep.subr.mxu0 0.0
  %3813 = vmatpush1.xpose.msra.mxu0 0.0
  %3814 = vmatprep.subr.mxu0 0.0
  %3815 = vmatpush1.xpose.msra.mxu0 0.0
  %3816 = vmatprep.subr.mxu0 0.0
  %3817 = vmatpush1.xpose.msra.mxu0 0.0
  %3818 = vmatprep.subr.mxu0 0.0
  %3819 = vmatpush1.xpose.msra.mxu0 0.0
  %3820 = vmatprep.subr.mxu0 0.0
  %3821 = vmatpush1.xpose.msra.mxu0 0.0
  %3822 = vmatprep.subr.mxu0 0.0
  %3823 = vmatpush1.xpose.msra.mxu0 0.0
  %3824 = vmatprep.subr.mxu0 0.0
  %3825 = vmatpush1.xpose.msra.mxu0 0.0
  %3826 = vmatprep.subr.mxu0 0.0
  %3827 = vmatpush1.xpose.msra.mxu0 0.0
  %3828 = vmatprep.subr.mxu0 0.0
  %3829 = vmatpush1.xpose.msra.mxu0 0.0
  %3830 = vmatprep.subr.mxu0 0.0
  %3831 = vmatpush1.xpose.msra.mxu0 0.0
  %3832 = vmatprep.subr.mxu0 0.0
  %3833 = vmatpush1.xpose.msra.mxu0 0.0
  %3834 = vmatprep.subr.mxu0 0.0
  %3835 = vmatpush1.xpose.msra.mxu0 0.0
  %3836 = vmatprep.subr.mxu0 0.0
  %3837 = vmatpush1.xpose.msra.mxu0 0.0
  %3838 = vmatprep.subr.mxu0 0.0
  %3839 = vmatpush1.xpose.msra.mxu0 0.0
  %3840 = vmatprep.subr.mxu0 0.0
  %3841 = vmatpush1.xpose.msra.mxu0 0.0
  %3842 = vmatprep.subr.mxu0 0.0
  %3843 = vmatpush1.xpose.msra.mxu0 0.0
  %3844 = vmatprep.subr.mxu0 0.0
  %3845 = vmatpush1.xpose.msra.mxu0 0.0
  %3846 = vmatprep.subr.mxu0 0.0
  %3847 = vmatpush1.xpose.msra.mxu0 0.0
  %3848 = vmatprep.subr.mxu0 0.0
  %3849 = vmatpush1.xpose.msra.mxu0 0.0
  %3850 = vmatprep.subr.mxu0 0.0
  %3851 = vmatpush1.xpose.msra.mxu0 0.0
  %3852 = vmatprep.subr.mxu0 0.0
  %3853 = vmatpush1.xpose.msra.mxu0 0.0
  %3854 = vmatprep.mubr.f32.mxu0 0.0
  %3855 = vmatmul.mubr.f32.gmra.mrb[0].mxu0 %v2159
  %v3856 = vpop.f32.mrb[0].mxu0
  %v3857 = vadd.f32 0.0, %v3856
  %v3858 = vpop.f32.mrb[0].mxu0
  %3859 = vdwg.mxu0
  %v3860 = vsel %vm1609, %v3781, -inf
  %3861 = vmax.xlane.f32.xlu0 %v3860
  %v3862 = vpop.xlane.xlu0 %3861
  %v3863 = vsel %vm1609, %v3857, -inf
  %3864 = vmax.xlane.f32.xlu0 %v3863
  %v3865 = vpop.xlane.xlu0 %3864
  %v3866 = vsub.f32 %v3781, %v3862
  %v3867 = vsub.f32 %v3857, %v3865
  %v3868 = vmul.f32 %v3866, 1.442695
  %v3869 = vpow.pop %v3868
  %v3870 = vmul.f32 %v3867, 1.442695
  %v3871 = vpow.pop %v3870
  %v3872 = vsel %vm1609, %v3869, 0.0
  %3873 = vadd.xlane.f32.xlu0 %v3872
  %v3874 = vpop.xlane.xlu0 %3873
  %v3875 = vsel %vm1609, %v3871, 0.0
  %3876 = vadd.xlane.f32.xlu0 %v3875
  %v3877 = vpop.xlane.xlu0 %3876
  %v3878 = vrcp.pop %v3874
  %v3879 = vmul.f32 %v3869, %v3878
  %v3880 = vrcp.pop %v3877
  %v3881 = vmul.f32 %v3871, %v3880
  %3882 = vrot.lane.b32.xlu0 %v3690, 96
  %v3883 = vpop.permute.xlu0 %3882
  %3884 = vrot.lane.b32.xlu0 %v3695, 96
  %v3885 = vpop.permute.xlu0 %3884
  %v3889 = vsel %vm1609, %v3879, 0
  %3891 = vmatprep.subr.mxu0 0.0
  %3892 = vmatpush1.msra.mxu0 %v3883
  %3893 = vmatprep.subr.mxu0 0.0
  %3894 = vmatpush1.msra.mxu0 %v3885
  %3895 = vmatprep.subr.mxu0 0.0
  %3896 = vmatpush1.msra.mxu0 0.0
  %3897 = vmatprep.subr.mxu0 0.0
  %3898 = vmatpush1.msra.mxu0 0.0
  %3899 = vmatprep.subr.mxu0 0.0
  %3900 = vmatpush1.msra.mxu0 0.0
  %3901 = vmatprep.subr.mxu0 0.0
  %3902 = vmatpush1.msra.mxu0 0.0
  %3903 = vmatprep.subr.mxu0 0.0
  %3904 = vmatpush1.msra.mxu0 0.0
  %3905 = vmatprep.subr.mxu0 0.0
  %3906 = vmatpush1.msra.mxu0 0.0
  %3907 = vmatprep.subr.mxu0 0.0
  %3908 = vmatpush1.msra.mxu0 0.0
  %3909 = vmatprep.subr.mxu0 0.0
  %3910 = vmatpush1.msra.mxu0 0.0
  %3911 = vmatprep.subr.mxu0 0.0
  %3912 = vmatpush1.msra.mxu0 0.0
  %3913 = vmatprep.subr.mxu0 0.0
  %3914 = vmatpush1.msra.mxu0 0.0
  %3915 = vmatprep.subr.mxu0 0.0
  %3916 = vmatpush1.msra.mxu0 0.0
  %3917 = vmatprep.subr.mxu0 0.0
  %3918 = vmatpush1.msra.mxu0 0.0
  %3919 = vmatprep.subr.mxu0 0.0
  %3920 = vmatpush1.msra.mxu0 0.0
  %3921 = vmatprep.subr.mxu0 0.0
  %3922 = vmatpush1.msra.mxu0 0.0
  %3923 = vmatprep.subr.mxu0 0.0
  %3924 = vmatpush1.msra.mxu0 0.0
  %3925 = vmatprep.subr.mxu0 0.0
  %3926 = vmatpush1.msra.mxu0 0.0
  %3927 = vmatprep.subr.mxu0 0.0
  %3928 = vmatpush1.msra.mxu0 0.0
  %3929 = vmatprep.subr.mxu0 0.0
  %3930 = vmatpush1.msra.mxu0 0.0
  %3931 = vmatprep.subr.mxu0 0.0
  %3932 = vmatpush1.msra.mxu0 0.0
  %3933 = vmatprep.subr.mxu0 0.0
  %3934 = vmatpush1.msra.mxu0 0.0
  %3935 = vmatprep.subr.mxu0 0.0
  %3936 = vmatpush1.msra.mxu0 0.0
  %3937 = vmatprep.subr.mxu0 0.0
  %3938 = vmatpush1.msra.mxu0 0.0
  %3939 = vmatprep.subr.mxu0 0.0
  %3940 = vmatpush1.msra.mxu0 0.0
  %3941 = vmatprep.subr.mxu0 0.0
  %3942 = vmatpush1.msra.mxu0 0.0
  %3943 = vmatprep.subr.mxu0 0.0
  %3944 = vmatpush1.msra.mxu0 0.0
  %3945 = vmatprep.subr.mxu0 0.0
  %3946 = vmatpush1.msra.mxu0 0.0
  %3947 = vmatprep.subr.mxu0 0.0
  %3948 = vmatpush1.msra.mxu0 0.0
  %3949 = vmatprep.subr.mxu0 0.0
  %3950 = vmatpush1.msra.mxu0 0.0
  %3951 = vmatprep.subr.mxu0 0.0
  %3952 = vmatpush1.msra.mxu0 0.0
  %3953 = vmatprep.subr.mxu0 0.0
  %3954 = vmatpush1.msra.mxu0 0.0
  %3955 = vmatprep.mubr.f32.mxu0 0.0
  %3956 = vmatmul.mubr.f32.gmra.mrb[0].mxu0 %v3889
  %v3957 = vpop.f32.mrb[0].mxu0
  %v3958 = vadd.f32 0.0, %v3957
  %v3959 = vpop.f32.mrb[0].mxu0
  %3960 = vdwg.mxu0
  %3961 = vrot.lane.b32.xlu0 %v3700, 96
  %v3962 = vpop.permute.xlu0 %3961
  %3963 = vrot.lane.b32.xlu0 %v3705, 96
  %v3964 = vpop.permute.xlu0 %3963
  %v3968 = vsel %vm1609, %v3881, 0
  %3970 = vmatprep.subr.mxu0 0.0
  %3971 = vmatpush1.msra.mxu0 %v3962
  %3972 = vmatprep.subr.mxu0 0.0
  %3973 = vmatpush1.msra.mxu0 %v3964
  %3974 = vmatprep.subr.mxu0 0.0
  %3975 = vmatpush1.msra.mxu0 0.0
  %3976 = vmatprep.subr.mxu0 0.0
  %3977 = vmatpush1.msra.mxu0 0.0
  %3978 = vmatprep.subr.mxu0 0.0
  %3979 = vmatpush1.msra.mxu0 0.0
  %3980 = vmatprep.subr.mxu0 0.0
  %3981 = vmatpush1.msra.mxu0 0.0
  %3982 = vmatprep.subr.mxu0 0.0
  %3983 = vmatpush1.msra.mxu0 0.0
  %3984 = vmatprep.subr.mxu0 0.0
  %3985 = vmatpush1.msra.mxu0 0.0
  %3986 = vmatprep.subr.mxu0 0.0
  %3987 = vmatpush1.msra.mxu0 0.0
  %3988 = vmatprep.subr.mxu0 0.0
  %3989 = vmatpush1.msra.mxu0 0.0
  %3990 = vmatprep.subr.mxu0 0.0
  %3991 = vmatpush1.msra.mxu0 0.0
  %3992 = vmatprep.subr.mxu0 0.0
  %3993 = vmatpush1.msra.mxu0 0.0
  %3994 = vmatprep.subr.mxu0 0.0
  %3995 = vmatpush1.msra.mxu0 0.0
  %3996 = vmatprep.subr.mxu0 0.0
  %3997 = vmatpush1.msra.mxu0 0.0
  %3998 = vmatprep.subr.mxu0 0.0
  %3999 = vmatpush1.msra.mxu0 0.0
  %4000 = vmatprep.subr.mxu0 0.0
  %4001 = vmatpush1.msra.mxu0 0.0
  %4002 = vmatprep.subr.mxu0 0.0
  %4003 = vmatpush1.msra.mxu0 0.0
  %4004 = vmatprep.subr.mxu0 0.0
  %4005 = vmatpush1.msra.mxu0 0.0
  %4006 = vmatprep.subr.mxu0 0.0
  %4007 = vmatpush1.msra.mxu0 0.0
  %4008 = vmatprep.subr.mxu0 0.0
  %4009 = vmatpush1.msra.mxu0 0.0
  %4010 = vmatprep.subr.mxu0 0.0
  %4011 = vmatpush1.msra.mxu0 0.0
  %4012 = vmatprep.subr.mxu0 0.0
  %4013 = vmatpush1.msra.mxu0 0.0
  %4014 = vmatprep.subr.mxu0 0.0
  %4015 = vmatpush1.msra.mxu0 0.0
  %4016 = vmatprep.subr.mxu0 0.0
  %4017 = vmatpush1.msra.mxu0 0.0
  %4018 = vmatprep.subr.mxu0 0.0
  %4019 = vmatpush1.msra.mxu0 0.0
  %4020 = vmatprep.subr.mxu0 0.0
  %4021 = vmatpush1.msra.mxu0 0.0
  %4022 = vmatprep.subr.mxu0 0.0
  %4023 = vmatpush1.msra.mxu0 0.0
  %4024 = vmatprep.subr.mxu0 0.0
  %4025 = vmatpush1.msra.mxu0 0.0
  %4026 = vmatprep.subr.mxu0 0.0
  %4027 = vmatpush1.msra.mxu0 0.0
  %4028 = vmatprep.subr.mxu0 0.0
  %4029 = vmatpush1.msra.mxu0 0.0
  %4030 = vmatprep.subr.mxu0 0.0
  %4031 = vmatpush1.msra.mxu0 0.0
  %4032 = vmatprep.subr.mxu0 0.0
  %4033 = vmatpush1.msra.mxu0 0.0
  %4034 = vmatprep.mubr.f32.mxu0 0.0
  %4035 = vmatmul.mubr.f32.gmra.mrb[0].mxu0 %v3968
  %v4036 = vpop.f32.mrb[0].mxu0
  %v4037 = vadd.f32 0.0, %v4036
  %v4038 = vpop.f32.mrb[0].mxu0
  %4039 = vdwg.mxu0
  %4040 = vrot.lane.b32.xlu0 %v3690, 120
  %v4041 = vpop.permute.xlu0 %4040
  %4042 = vrot.lane.b32.xlu0 %v3695, 120
  %v4043 = vpop.permute.xlu0 %4042
  %v4044 = vsel %vm269, %v4041, 0
  %v4046 = vsel %vm269, %v4043, 0
  %4048 = vmatprep.subr.mxu0 0.0
  %4049 = vmatpush1.xpose.msra.mxu0 %v4044
  %4050 = vmatprep.subr.mxu0 0.0
  %4051 = vmatpush1.xpose.msra.mxu0 %v4046
  %4052 = vmatprep.subr.mxu0 0.0
  %4053 = vmatpush1.xpose.msra.mxu0 0.0
  %4054 = vmatprep.subr.mxu0 0.0
  %4055 = vmatpush1.xpose.msra.mxu0 0.0
  %4056 = vmatprep.subr.mxu0 0.0
  %4057 = vmatpush1.xpose.msra.mxu0 0.0
  %4058 = vmatprep.subr.mxu0 0.0
  %4059 = vmatpush1.xpose.msra.mxu0 0.0
  %4060 = vmatprep.subr.mxu0 0.0
  %4061 = vmatpush1.xpose.msra.mxu0 0.0
  %4062 = vmatprep.subr.mxu0 0.0
  %4063 = vmatpush1.xpose.msra.mxu0 0.0
  %4064 = vmatprep.subr.mxu0 0.0
  %4065 = vmatpush1.xpose.msra.mxu0 0.0
  %4066 = vmatprep.subr.mxu0 0.0
  %4067 = vmatpush1.xpose.msra.mxu0 0.0
  %4068 = vmatprep.subr.mxu0 0.0
  %4069 = vmatpush1.xpose.msra.mxu0 0.0
  %4070 = vmatprep.subr.mxu0 0.0
  %4071 = vmatpush1.xpose.msra.mxu0 0.0
  %4072 = vmatprep.subr.mxu0 0.0
  %4073 = vmatpush1.xpose.msra.mxu0 0.0
  %4074 = vmatprep.subr.mxu0 0.0
  %4075 = vmatpush1.xpose.msra.mxu0 0.0
  %4076 = vmatprep.subr.mxu0 0.0
  %4077 = vmatpush1.xpose.msra.mxu0 0.0
  %4078 = vmatprep.subr.mxu0 0.0
  %4079 = vmatpush1.xpose.msra.mxu0 0.0
  %4080 = vmatprep.subr.mxu0 0.0
  %4081 = vmatpush1.xpose.msra.mxu0 0.0
  %4082 = vmatprep.subr.mxu0 0.0
  %4083 = vmatpush1.xpose.msra.mxu0 0.0
  %4084 = vmatprep.subr.mxu0 0.0
  %4085 = vmatpush1.xpose.msra.mxu0 0.0
  %4086 = vmatprep.subr.mxu0 0.0
  %4087 = vmatpush1.xpose.msra.mxu0 0.0
  %4088 = vmatprep.subr.mxu0 0.0
  %4089 = vmatpush1.xpose.msra.mxu0 0.0
  %4090 = vmatprep.subr.mxu0 0.0
  %4091 = vmatpush1.xpose.msra.mxu0 0.0
  %4092 = vmatprep.subr.mxu0 0.0
  %4093 = vmatpush1.xpose.msra.mxu0 0.0
  %4094 = vmatprep.subr.mxu0 0.0
  %4095 = vmatpush1.xpose.msra.mxu0 0.0
  %4096 = vmatprep.subr.mxu0 0.0
  %4097 = vmatpush1.xpose.msra.mxu0 0.0
  %4098 = vmatprep.subr.mxu0 0.0
  %4099 = vmatpush1.xpose.msra.mxu0 0.0
  %4100 = vmatprep.subr.mxu0 0.0
  %4101 = vmatpush1.xpose.msra.mxu0 0.0
  %4102 = vmatprep.subr.mxu0 0.0
  %4103 = vmatpush1.xpose.msra.mxu0 0.0
  %4104 = vmatprep.subr.mxu0 0.0
  %4105 = vmatpush1.xpose.msra.mxu0 0.0
  %4106 = vmatprep.subr.mxu0 0.0
  %4107 = vmatpush1.xpose.msra.mxu0 0.0
  %4108 = vmatprep.subr.mxu0 0.0
  %4109 = vmatpush1.xpose.msra.mxu0 0.0
  %4110 = vmatprep.subr.mxu0 0.0
  %4111 = vmatpush1.xpose.msra.mxu0 0.0
  %4112 = vmatprep.mubr.f32.mxu0 0.0
  %4113 = vmatmul.mubr.f32.gmra.mrb[0].mxu0 %v2411
  %v4114 = vpop.f32.mrb[0].mxu0
  %v4115 = vadd.f32 0.0, %v4114
  %v4116 = vpop.f32.mrb[0].mxu0
  %4117 = vdwg.mxu0
  %4118 = vrot.lane.b32.xlu0 %v3700, 120
  %v4119 = vpop.permute.xlu0 %4118
  %4120 = vrot.lane.b32.xlu0 %v3705, 120
  %v4121 = vpop.permute.xlu0 %4120
  %v4122 = vsel %vm269, %v4119, 0
  %v4124 = vsel %vm269, %v4121, 0
  %4126 = vmatprep.subr.mxu0 0.0
  %4127 = vmatpush1.xpose.msra.mxu0 %v4122
  %4128 = vmatprep.subr.mxu0 0.0
  %4129 = vmatpush1.xpose.msra.mxu0 %v4124
  %4130 = vmatprep.subr.mxu0 0.0
  %4131 = vmatpush1.xpose.msra.mxu0 0.0
  %4132 = vmatprep.subr.mxu0 0.0
  %4133 = vmatpush1.xpose.msra.mxu0 0.0
  %4134 = vmatprep.subr.mxu0 0.0
  %4135 = vmatpush1.xpose.msra.mxu0 0.0
  %4136 = vmatprep.subr.mxu0 0.0
  %4137 = vmatpush1.xpose.msra.mxu0 0.0
  %4138 = vmatprep.subr.mxu0 0.0
  %4139 = vmatpush1.xpose.msra.mxu0 0.0
  %4140 = vmatprep.subr.mxu0 0.0
  %4141 = vmatpush1.xpose.msra.mxu0 0.0
  %4142 = vmatprep.subr.mxu0 0.0
  %4143 = vmatpush1.xpose.msra.mxu0 0.0
  %4144 = vmatprep.subr.mxu0 0.0
  %4145 = vmatpush1.xpose.msra.mxu0 0.0
  %4146 = vmatprep.subr.mxu0 0.0
  %4147 = vmatpush1.xpose.msra.mxu0 0.0
  %4148 = vmatprep.subr.mxu0 0.0
  %4149 = vmatpush1.xpose.msra.mxu0 0.0
  %4150 = vmatprep.subr.mxu0 0.0
  %4151 = vmatpush1.xpose.msra.mxu0 0.0
  %4152 = vmatprep.subr.mxu0 0.0
  %4153 = vmatpush1.xpose.msra.mxu0 0.0
  %4154 = vmatprep.subr.mxu0 0.0
  %4155 = vmatpush1.xpose.msra.mxu0 0.0
  %4156 = vmatprep.subr.mxu0 0.0
  %4157 = vmatpush1.xpose.msra.mxu0 0.0
  %4158 = vmatprep.subr.mxu0 0.0
  %4159 = vmatpush1.xpose.msra.mxu0 0.0
  %4160 = vmatprep.subr.mxu0 0.0
  %4161 = vmatpush1.xpose.msra.mxu0 0.0
  %4162 = vmatprep.subr.mxu0 0.0
  %4163 = vmatpush1.xpose.msra.mxu0 0.0
  %4164 = vmatprep.subr.mxu0 0.0
  %4165 = vmatpush1.xpose.msra.mxu0 0.0
  %4166 = vmatprep.subr.mxu0 0.0
  %4167 = vmatpush1.xpose.msra.mxu0 0.0
  %4168 = vmatprep.subr.mxu0 0.0
  %4169 = vmatpush1.xpose.msra.mxu0 0.0
  %4170 = vmatprep.subr.mxu0 0.0
  %4171 = vmatpush1.xpose.msra.mxu0 0.0
  %4172 = vmatprep.subr.mxu0 0.0
  %4173 = vmatpush1.xpose.msra.mxu0 0.0
  %4174 = vmatprep.subr.mxu0 0.0
  %4175 = vmatpush1.xpose.msra.mxu0 0.0
  %4176 = vmatprep.subr.mxu0 0.0
  %4177 = vmatpush1.xpose.msra.mxu0 0.0
  %4178 = vmatprep.subr.mxu0 0.0
  %4179 = vmatpush1.xpose.msra.mxu0 0.0
  %4180 = vmatprep.subr.mxu0 0.0
  %4181 = vmatpush1.xpose.msra.mxu0 0.0
  %4182 = vmatprep.subr.mxu0 0.0
  %4183 = vmatpush1.xpose.msra.mxu0 0.0
  %4184 = vmatprep.subr.mxu0 0.0
  %4185 = vmatpush1.xpose.msra.mxu0 0.0
  %4186 = vmatprep.subr.mxu0 0.0
  %4187 = vmatpush1.xpose.msra.mxu0 0.0
  %4188 = vmatprep.subr.mxu0 0.0
  %4189 = vmatpush1.xpose.msra.mxu0 0.0
  %4190 = vmatprep.mubr.f32.mxu0 0.0
  %4191 = vmatmul.mubr.f32.gmra.mrb[0].mxu0 %v2493
  %v4192 = vpop.f32.mrb[0].mxu0
  %v4193 = vadd.f32 0.0, %v4192
  %v4194 = vpop.f32.mrb[0].mxu0
  %4195 = vdwg.mxu0
  %v4196 = vsel %vm1609, %v4115, -inf
  %4197 = vmax.xlane.f32.xlu0 %v4196
  %v4198 = vpop.xlane.xlu0 %4197
  %v4199 = vsel %vm1609, %v4193, -inf
  %4200 = vmax.xlane.f32.xlu0 %v4199
  %v4201 = vpop.xlane.xlu0 %4200
  %v4202 = vsub.f32 %v4115, %v4198
  %v4203 = vsub.f32 %v4193, %v4201
  %v4204 = vmul.f32 %v4202, 1.442695
  %v4205 = vpow.pop %v4204
  %v4206 = vmul.f32 %v4203, 1.442695
  %v4207 = vpow.pop %v4206
  %v4208 = vsel %vm1609, %v4205, 0.0
  %4209 = vadd.xlane.f32.xlu0 %v4208
  %v4210 = vpop.xlane.xlu0 %4209
  %v4211 = vsel %vm1609, %v4207, 0.0
  %4212 = vadd.xlane.f32.xlu0 %v4211
  %v4213 = vpop.xlane.xlu0 %4212
  %v4214 = vrcp.pop %v4210
  %v4215 = vmul.f32 %v4205, %v4214
  %v4216 = vrcp.pop %v4213
  %v4217 = vmul.f32 %v4207, %v4216
  %4218 = vrot.lane.b32.xlu0 %v3690, 88
  %v4219 = vpop.permute.xlu0 %4218
  %4220 = vrot.lane.b32.xlu0 %v3695, 88
  %v4221 = vpop.permute.xlu0 %4220
  %v4225 = vsel %vm1609, %v4215, 0
  %4227 = vmatprep.subr.mxu0 0.0
  %4228 = vmatpush1.msra.mxu0 %v4219
  %4229 = vmatprep.subr.mxu0 0.0
  %4230 = vmatpush1.msra.mxu0 %v4221
  %4231 = vmatprep.subr.mxu0 0.0
  %4232 = vmatpush1.msra.mxu0 0.0
  %4233 = vmatprep.subr.mxu0 0.0
  %4234 = vmatpush1.msra.mxu0 0.0
  %4235 = vmatprep.subr.mxu0 0.0
  %4236 = vmatpush1.msra.mxu0 0.0
  %4237 = vmatprep.subr.mxu0 0.0
  %4238 = vmatpush1.msra.mxu0 0.0
  %4239 = vmatprep.subr.mxu0 0.0
  %4240 = vmatpush1.msra.mxu0 0.0
  %4241 = vmatprep.subr.mxu0 0.0
  %4242 = vmatpush1.msra.mxu0 0.0
  %4243 = vmatprep.subr.mxu0 0.0
  %4244 = vmatpush1.msra.mxu0 0.0
  %4245 = vmatprep.subr.mxu0 0.0
  %4246 = vmatpush1.msra.mxu0 0.0
  %4247 = vmatprep.subr.mxu0 0.0
  %4248 = vmatpush1.msra.mxu0 0.0
  %4249 = vmatprep.subr.mxu0 0.0
  %4250 = vmatpush1.msra.mxu0 0.0
  %4251 = vmatprep.subr.mxu0 0.0
  %4252 = vmatpush1.msra.mxu0 0.0
  %4253 = vmatprep.subr.mxu0 0.0
  %4254 = vmatpush1.msra.mxu0 0.0
  %4255 = vmatprep.subr.mxu0 0.0
  %4256 = vmatpush1.msra.mxu0 0.0
  %4257 = vmatprep.subr.mxu0 0.0
  %4258 = vmatpush1.msra.mxu0 0.0
  %4259 = vmatprep.subr.mxu0 0.0
  %4260 = vmatpush1.msra.mxu0 0.0
  %4261 = vmatprep.subr.mxu0 0.0
  %4262 = vmatpush1.msra.mxu0 0.0
  %4263 = vmatprep.subr.mxu0 0.0
  %4264 = vmatpush1.msra.mxu0 0.0
  %4265 = vmatprep.subr.mxu0 0.0
  %4266 = vmatpush1.msra.mxu0 0.0
  %4267 = vmatprep.subr.mxu0 0.0
  %4268 = vmatpush1.msra.mxu0 0.0
  %4269 = vmatprep.subr.mxu0 0.0
  %4270 = vmatpush1.msra.mxu0 0.0
  %4271 = vmatprep.subr.mxu0 0.0
  %4272 = vmatpush1.msra.mxu0 0.0
  %4273 = vmatprep.subr.mxu0 0.0
  %4274 = vmatpush1.msra.mxu0 0.0
  %4275 = vmatprep.subr.mxu0 0.0
  %4276 = vmatpush1.msra.mxu0 0.0
  %4277 = vmatprep.subr.mxu0 0.0
  %4278 = vmatpush1.msra.mxu0 0.0
  %4279 = vmatprep.subr.mxu0 0.0
  %4280 = vmatpush1.msra.mxu0 0.0
  %4281 = vmatprep.subr.mxu0 0.0
  %4282 = vmatpush1.msra.mxu0 0.0
  %4283 = vmatprep.subr.mxu0 0.0
  %4284 = vmatpush1.msra.mxu0 0.0
  %4285 = vmatprep.subr.mxu0 0.0
  %4286 = vmatpush1.msra.mxu0 0.0
  %4287 = vmatprep.subr.mxu0 0.0
  %4288 = vmatpush1.msra.mxu0 0.0
  %4289 = vmatprep.subr.mxu0 0.0
  %4290 = vmatpush1.msra.mxu0 0.0
  %4291 = vmatprep.mubr.f32.mxu0 0.0
  %4292 = vmatmul.mubr.f32.gmra.mrb[0].mxu0 %v4225
  %v4293 = vpop.f32.mrb[0].mxu0
  %v4294 = vadd.f32 0.0, %v4293
  %v4295 = vpop.f32.mrb[0].mxu0
  %4296 = vdwg.mxu0
  %4297 = vrot.lane.b32.xlu0 %v3700, 88
  %v4298 = vpop.permute.xlu0 %4297
  %4299 = vrot.lane.b32.xlu0 %v3705, 88
  %v4300 = vpop.permute.xlu0 %4299
  %v4304 = vsel %vm1609, %v4217, 0
  %4306 = vmatprep.subr.mxu0 0.0
  %4307 = vmatpush1.msra.mxu0 %v4298
  %4308 = vmatprep.subr.mxu0 0.0
  %4309 = vmatpush1.msra.mxu0 %v4300
  %4310 = vmatprep.subr.mxu0 0.0
  %4311 = vmatpush1.msra.mxu0 0.0
  %4312 = vmatprep.subr.mxu0 0.0
  %4313 = vmatpush1.msra.mxu0 0.0
  %4314 = vmatprep.subr.mxu0 0.0
  %4315 = vmatpush1.msra.mxu0 0.0
  %4316 = vmatprep.subr.mxu0 0.0
  %4317 = vmatpush1.msra.mxu0 0.0
  %4318 = vmatprep.subr.mxu0 0.0
  %4319 = vmatpush1.msra.mxu0 0.0
  %4320 = vmatprep.subr.mxu0 0.0
  %4321 = vmatpush1.msra.mxu0 0.0
  %4322 = vmatprep.subr.mxu0 0.0
  %4323 = vmatpush1.msra.mxu0 0.0
  %4324 = vmatprep.subr.mxu0 0.0
  %4325 = vmatpush1.msra.mxu0 0.0
  %4326 = vmatprep.subr.mxu0 0.0
  %4327 = vmatpush1.msra.mxu0 0.0
  %4328 = vmatprep.subr.mxu0 0.0
  %4329 = vmatpush1.msra.mxu0 0.0
  %4330 = vmatprep.subr.mxu0 0.0
  %4331 = vmatpush1.msra.mxu0 0.0
  %4332 = vmatprep.subr.mxu0 0.0
  %4333 = vmatpush1.msra.mxu0 0.0
  %4334 = vmatprep.subr.mxu0 0.0
  %4335 = vmatpush1.msra.mxu0 0.0
  %4336 = vmatprep.subr.mxu0 0.0
  %4337 = vmatpush1.msra.mxu0 0.0
  %4338 = vmatprep.subr.mxu0 0.0
  %4339 = vmatpush1.msra.mxu0 0.0
  %4340 = vmatprep.subr.mxu0 0.0
  %4341 = vmatpush1.msra.mxu0 0.0
  %4342 = vmatprep.subr.mxu0 0.0
  %4343 = vmatpush1.msra.mxu0 0.0
  %4344 = vmatprep.subr.mxu0 0.0
  %4345 = vmatpush1.msra.mxu0 0.0
  %4346 = vmatprep.subr.mxu0 0.0
  %4347 = vmatpush1.msra.mxu0 0.0
  %4348 = vmatprep.subr.mxu0 0.0
  %4349 = vmatpush1.msra.mxu0 0.0
  %4350 = vmatprep.subr.mxu0 0.0
  %4351 = vmatpush1.msra.mxu0 0.0
  %4352 = vmatprep.subr.mxu0 0.0
  %4353 = vmatpush1.msra.mxu0 0.0
  %4354 = vmatprep.subr.mxu0 0.0
  %4355 = vmatpush1.msra.mxu0 0.0
  %4356 = vmatprep.subr.mxu0 0.0
  %4357 = vmatpush1.msra.mxu0 0.0
  %4358 = vmatprep.subr.mxu0 0.0
  %4359 = vmatpush1.msra.mxu0 0.0
  %4360 = vmatprep.subr.mxu0 0.0
  %4361 = vmatpush1.msra.mxu0 0.0
  %4362 = vmatprep.subr.mxu0 0.0
  %4363 = vmatpush1.msra.mxu0 0.0
  %4364 = vmatprep.subr.mxu0 0.0
  %4365 = vmatpush1.msra.mxu0 0.0
  %4366 = vmatprep.subr.mxu0 0.0
  %4367 = vmatpush1.msra.mxu0 0.0
  %4368 = vmatprep.subr.mxu0 0.0
  %4369 = vmatpush1.msra.mxu0 0.0
  %4370 = vmatprep.mubr.f32.mxu0 0.0
  %4371 = vmatmul.mubr.f32.gmra.mrb[0].mxu0 %v4304
  %v4372 = vpop.f32.mrb[0].mxu0
  %v4373 = vadd.f32 0.0, %v4372
  %v4374 = vpop.f32.mrb[0].mxu0
  %4375 = vdwg.mxu0
  %4376 = vrot.lane.b32.xlu0 %v3690, 112
  %v4377 = vpop.permute.xlu0 %4376
  %4378 = vrot.lane.b32.xlu0 %v3695, 112
  %v4379 = vpop.permute.xlu0 %4378
  %v4380 = vsel %vm269, %v4377, 0
  %v4382 = vsel %vm269, %v4379, 0
  %4384 = vmatprep.subr.mxu0 0.0
  %4385 = vmatpush1.xpose.msra.mxu0 %v4380
  %4386 = vmatprep.subr.mxu0 0.0
  %4387 = vmatpush1.xpose.msra.mxu0 %v4382
  %4388 = vmatprep.subr.mxu0 0.0
  %4389 = vmatpush1.xpose.msra.mxu0 0.0
  %4390 = vmatprep.subr.mxu0 0.0
  %4391 = vmatpush1.xpose.msra.mxu0 0.0
  %4392 = vmatprep.subr.mxu0 0.0
  %4393 = vmatpush1.xpose.msra.mxu0 0.0
  %4394 = vmatprep.subr.mxu0 0.0
  %4395 = vmatpush1.xpose.msra.mxu0 0.0
  %4396 = vmatprep.subr.mxu0 0.0
  %4397 = vmatpush1.xpose.msra.mxu0 0.0
  %4398 = vmatprep.subr.mxu0 0.0
  %4399 = vmatpush1.xpose.msra.mxu0 0.0
  %4400 = vmatprep.subr.mxu0 0.0
  %4401 = vmatpush1.xpose.msra.mxu0 0.0
  %4402 = vmatprep.subr.mxu0 0.0
  %4403 = vmatpush1.xpose.msra.mxu0 0.0
  %4404 = vmatprep.subr.mxu0 0.0
  %4405 = vmatpush1.xpose.msra.mxu0 0.0
  %4406 = vmatprep.subr.mxu0 0.0
  %4407 = vmatpush1.xpose.msra.mxu0 0.0
  %4408 = vmatprep.subr.mxu0 0.0
  %4409 = vmatpush1.xpose.msra.mxu0 0.0
  %4410 = vmatprep.subr.mxu0 0.0
  %4411 = vmatpush1.xpose.msra.mxu0 0.0
  %4412 = vmatprep.subr.mxu0 0.0
  %4413 = vmatpush1.xpose.msra.mxu0 0.0
  %4414 = vmatprep.subr.mxu0 0.0
  %4415 = vmatpush1.xpose.msra.mxu0 0.0
  %4416 = vmatprep.subr.mxu0 0.0
  %4417 = vmatpush1.xpose.msra.mxu0 0.0
  %4418 = vmatprep.subr.mxu0 0.0
  %4419 = vmatpush1.xpose.msra.mxu0 0.0
  %4420 = vmatprep.subr.mxu0 0.0
  %4421 = vmatpush1.xpose.msra.mxu0 0.0
  %4422 = vmatprep.subr.mxu0 0.0
  %4423 = vmatpush1.xpose.msra.mxu0 0.0
  %4424 = vmatprep.subr.mxu0 0.0
  %4425 = vmatpush1.xpose.msra.mxu0 0.0
  %4426 = vmatprep.subr.mxu0 0.0
  %4427 = vmatpush1.xpose.msra.mxu0 0.0
  %4428 = vmatprep.subr.mxu0 0.0
  %4429 = vmatpush1.xpose.msra.mxu0 0.0
  %4430 = vmatprep.subr.mxu0 0.0
  %4431 = vmatpush1.xpose.msra.mxu0 0.0
  %4432 = vmatprep.subr.mxu0 0.0
  %4433 = vmatpush1.xpose.msra.mxu0 0.0
  %4434 = vmatprep.subr.mxu0 0.0
  %4435 = vmatpush1.xpose.msra.mxu0 0.0
  %4436 = vmatprep.subr.mxu0 0.0
  %4437 = vmatpush1.xpose.msra.mxu0 0.0
  %4438 = vmatprep.subr.mxu0 0.0
  %4439 = vmatpush1.xpose.msra.mxu0 0.0
  %4440 = vmatprep.subr.mxu0 0.0
  %4441 = vmatpush1.xpose.msra.mxu0 0.0
  %4442 = vmatprep.subr.mxu0 0.0
  %4443 = vmatpush1.xpose.msra.mxu0 0.0
  %4444 = vmatprep.subr.mxu0 0.0
  %4445 = vmatpush1.xpose.msra.mxu0 0.0
  %4446 = vmatprep.subr.mxu0 0.0
  %4447 = vmatpush1.xpose.msra.mxu0 0.0
  %4448 = vmatprep.mubr.f32.mxu0 0.0
  %4449 = vmatmul.mubr.f32.gmra.mrb[0].mxu0 %v2759
  %v4450 = vpop.f32.mrb[0].mxu0
  %v4451 = vadd.f32 0.0, %v4450
  %v4452 = vpop.f32.mrb[0].mxu0
  %4453 = vdwg.mxu0
  %4454 = vrot.lane.b32.xlu0 %v3700, 112
  %v4455 = vpop.permute.xlu0 %4454
  %4456 = vrot.lane.b32.xlu0 %v3705, 112
  %v4457 = vpop.permute.xlu0 %4456
  %v4458 = vsel %vm269, %v4455, 0
  %v4460 = vsel %vm269, %v4457, 0
  %4462 = vmatprep.subr.mxu0 0.0
  %4463 = vmatpush1.xpose.msra.mxu0 %v4458
  %4464 = vmatprep.subr.mxu0 0.0
  %4465 = vmatpush1.xpose.msra.mxu0 %v4460
  %4466 = vmatprep.subr.mxu0 0.0
  %4467 = vmatpush1.xpose.msra.mxu0 0.0
  %4468 = vmatprep.subr.mxu0 0.0
  %4469 = vmatpush1.xpose.msra.mxu0 0.0
  %4470 = vmatprep.subr.mxu0 0.0
  %4471 = vmatpush1.xpose.msra.mxu0 0.0
  %4472 = vmatprep.subr.mxu0 0.0
  %4473 = vmatpush1.xpose.msra.mxu0 0.0
  %4474 = vmatprep.subr.mxu0 0.0
  %4475 = vmatpush1.xpose.msra.mxu0 0.0
  %4476 = vmatprep.subr.mxu0 0.0
  %4477 = vmatpush1.xpose.msra.mxu0 0.0
  %4478 = vmatprep.subr.mxu0 0.0
  %4479 = vmatpush1.xpose.msra.mxu0 0.0
  %4480 = vmatprep.subr.mxu0 0.0
  %4481 = vmatpush1.xpose.msra.mxu0 0.0
  %4482 = vmatprep.subr.mxu0 0.0
  %4483 = vmatpush1.xpose.msra.mxu0 0.0
  %4484 = vmatprep.subr.mxu0 0.0
  %4485 = vmatpush1.xpose.msra.mxu0 0.0
  %4486 = vmatprep.subr.mxu0 0.0
  %4487 = vmatpush1.xpose.msra.mxu0 0.0
  %4488 = vmatprep.subr.mxu0 0.0
  %4489 = vmatpush1.xpose.msra.mxu0 0.0
  %4490 = vmatprep.subr.mxu0 0.0
  %4491 = vmatpush1.xpose.msra.mxu0 0.0
  %4492 = vmatprep.subr.mxu0 0.0
  %4493 = vmatpush1.xpose.msra.mxu0 0.0
  %4494 = vmatprep.subr.mxu0 0.0
  %4495 = vmatpush1.xpose.msra.mxu0 0.0
  %4496 = vmatprep.subr.mxu0 0.0
  %4497 = vmatpush1.xpose.msra.mxu0 0.0
  %4498 = vmatprep.subr.mxu0 0.0
  %4499 = vmatpush1.xpose.msra.mxu0 0.0
  %4500 = vmatprep.subr.mxu0 0.0
  %4501 = vmatpush1.xpose.msra.mxu0 0.0
  %4502 = vmatprep.subr.mxu0 0.0
  %4503 = vmatpush1.xpose.msra.mxu0 0.0
  %4504 = vmatprep.subr.mxu0 0.0
  %4505 = vmatpush1.xpose.msra.mxu0 0.0
  %4506 = vmatprep.subr.mxu0 0.0
  %4507 = vmatpush1.xpose.msra.mxu0 0.0
  %4508 = vmatprep.subr.mxu0 0.0
  %4509 = vmatpush1.xpose.msra.mxu0 0.0
  %4510 = vmatprep.subr.mxu0 0.0
  %4511 = vmatpush1.xpose.msra.mxu0 0.0
  %4512 = vmatprep.subr.mxu0 0.0
  %4513 = vmatpush1.xpose.msra.mxu0 0.0
  %4514 = vmatprep.subr.mxu0 0.0
  %4515 = vmatpush1.xpose.msra.mxu0 0.0
  %4516 = vmatprep.subr.mxu0 0.0
  %4517 = vmatpush1.xpose.msra.mxu0 0.0
  %4518 = vmatprep.subr.mxu0 0.0
  %4519 = vmatpush1.xpose.msra.mxu0 0.0
  %4520 = vmatprep.subr.mxu0 0.0
  %4521 = vmatpush1.xpose.msra.mxu0 0.0
  %4522 = vmatprep.subr.mxu0 0.0
  %4523 = vmatpush1.xpose.msra.mxu0 0.0
  %4524 = vmatprep.subr.mxu0 0.0
  %4525 = vmatpush1.xpose.msra.mxu0 0.0
  %4526 = vmatprep.mubr.f32.mxu0 0.0
  %4527 = vmatmul.mubr.f32.gmra.mrb[0].mxu0 %v2841
  %v4528 = vpop.f32.mrb[0].mxu0
  %v4529 = vadd.f32 0.0, %v4528
  %v4530 = vpop.f32.mrb[0].mxu0
  %4531 = vdwg.mxu0
  %v4532 = vsel %vm1609, %v4451, -inf
  %4533 = vmax.xlane.f32.xlu0 %v4532
  %v4534 = vpop.xlane.xlu0 %4533
  %v4535 = vsel %vm1609, %v4529, -inf
  %4536 = vmax.xlane.f32.xlu0 %v4535
  %v4537 = vpop.xlane.xlu0 %4536
  %v4538 = vsub.f32 %v4451, %v4534
  %v4539 = vsub.f32 %v4529, %v4537
  %v4540 = vmul.f32 %v4538, 1.442695
  %v4541 = vpow.pop %v4540
  %v4542 = vmul.f32 %v4539, 1.442695
  %v4543 = vpow.pop %v4542
  %v4544 = vsel %vm1609, %v4541, 0.0
  %4545 = vadd.xlane.f32.xlu0 %v4544
  %v4546 = vpop.xlane.xlu0 %4545
  %v4547 = vsel %vm1609, %v4543, 0.0
  %4548 = vadd.xlane.f32.xlu0 %v4547
  %v4549 = vpop.xlane.xlu0 %4548
  %v4550 = vrcp.pop %v4546
  %v4551 = vmul.f32 %v4541, %v4550
  %v4552 = vrcp.pop %v4549
  %v4553 = vmul.f32 %v4543, %v4552
  %4554 = vrot.lane.b32.xlu0 %v3690, 80
  %v4555 = vpop.permute.xlu0 %4554
  %4556 = vrot.lane.b32.xlu0 %v3695, 80
  %v4557 = vpop.permute.xlu0 %4556
  %v4561 = vsel %vm1609, %v4551, 0
  %4563 = vmatprep.subr.mxu0 0.0
  %4564 = vmatpush1.msra.mxu0 %v4555
  %4565 = vmatprep.subr.mxu0 0.0
  %4566 = vmatpush1.msra.mxu0 %v4557
  %4567 = vmatprep.subr.mxu0 0.0
  %4568 = vmatpush1.msra.mxu0 0.0
  %4569 = vmatprep.subr.mxu0 0.0
  %4570 = vmatpush1.msra.mxu0 0.0
  %4571 = vmatprep.subr.mxu0 0.0
  %4572 = vmatpush1.msra.mxu0 0.0
  %4573 = vmatprep.subr.mxu0 0.0
  %4574 = vmatpush1.msra.mxu0 0.0
  %4575 = vmatprep.subr.mxu0 0.0
  %4576 = vmatpush1.msra.mxu0 0.0
  %4577 = vmatprep.subr.mxu0 0.0
  %4578 = vmatpush1.msra.mxu0 0.0
  %4579 = vmatprep.subr.mxu0 0.0
  %4580 = vmatpush1.msra.mxu0 0.0
  %4581 = vmatprep.subr.mxu0 0.0
  %4582 = vmatpush1.msra.mxu0 0.0
  %4583 = vmatprep.subr.mxu0 0.0
  %4584 = vmatpush1.msra.mxu0 0.0
  %4585 = vmatprep.subr.mxu0 0.0
  %4586 = vmatpush1.msra.mxu0 0.0
  %4587 = vmatprep.subr.mxu0 0.0
  %4588 = vmatpush1.msra.mxu0 0.0
  %4589 = vmatprep.subr.mxu0 0.0
  %4590 = vmatpush1.msra.mxu0 0.0
  %4591 = vmatprep.subr.mxu0 0.0
  %4592 = vmatpush1.msra.mxu0 0.0
  %4593 = vmatprep.subr.mxu0 0.0
  %4594 = vmatpush1.msra.mxu0 0.0
  %4595 = vmatprep.subr.mxu0 0.0
  %4596 = vmatpush1.msra.mxu0 0.0
  %4597 = vmatprep.subr.mxu0 0.0
  %4598 = vmatpush1.msra.mxu0 0.0
  %4599 = vmatprep.subr.mxu0 0.0
  %4600 = vmatpush1.msra.mxu0 0.0
  %4601 = vmatprep.subr.mxu0 0.0
  %4602 = vmatpush1.msra.mxu0 0.0
  %4603 = vmatprep.subr.mxu0 0.0
  %4604 = vmatpush1.msra.mxu0 0.0
  %4605 = vmatprep.subr.mxu0 0.0
  %4606 = vmatpush1.msra.mxu0 0.0
  %4607 = vmatprep.subr.mxu0 0.0
  %4608 = vmatpush1.msra.mxu0 0.0
  %4609 = vmatprep.subr.mxu0 0.0
  %4610 = vmatpush1.msra.mxu0 0.0
  %4611 = vmatprep.subr.mxu0 0.0
  %4612 = vmatpush1.msra.mxu0 0.0
  %4613 = vmatprep.subr.mxu0 0.0
  %4614 = vmatpush1.msra.mxu0 0.0
  %4615 = vmatprep.subr.mxu0 0.0
  %4616 = vmatpush1.msra.mxu0 0.0
  %4617 = vmatprep.subr.mxu0 0.0
  %4618 = vmatpush1.msra.mxu0 0.0
  %4619 = vmatprep.subr.mxu0 0.0
  %4620 = vmatpush1.msra.mxu0 0.0
  %4621 = vmatprep.subr.mxu0 0.0
  %4622 = vmatpush1.msra.mxu0 0.0
  %4623 = vmatprep.subr.mxu0 0.0
  %4624 = vmatpush1.msra.mxu0 0.0
  %4625 = vmatprep.subr.mxu0 0.0
  %4626 = vmatpush1.msra.mxu0 0.0
  %4627 = vmatprep.mubr.f32.mxu0 0.0
  %4628 = vmatmul.mubr.f32.gmra.mrb[0].mxu0 %v4561
  %v4629 = vpop.f32.mrb[0].mxu0
  %v4630 = vadd.f32 0.0, %v4629
  %v4631 = vpop.f32.mrb[0].mxu0
  %4632 = vdwg.mxu0
  %4633 = vrot.lane.b32.xlu0 %v3700, 80
  %v4634 = vpop.permute.xlu0 %4633
  %4635 = vrot.lane.b32.xlu0 %v3705, 80
  %v4636 = vpop.permute.xlu0 %4635
  %v4640 = vsel %vm1609, %v4553, 0
  %4642 = vmatprep.subr.mxu0 0.0
  %4643 = vmatpush1.msra.mxu0 %v4634
  %4644 = vmatprep.subr.mxu0 0.0
  %4645 = vmatpush1.msra.mxu0 %v4636
  %4646 = vmatprep.subr.mxu0 0.0
  %4647 = vmatpush1.msra.mxu0 0.0
  %4648 = vmatprep.subr.mxu0 0.0
  %4649 = vmatpush1.msra.mxu0 0.0
  %4650 = vmatprep.subr.mxu0 0.0
  %4651 = vmatpush1.msra.mxu0 0.0
  %4652 = vmatprep.subr.mxu0 0.0
  %4653 = vmatpush1.msra.mxu0 0.0
  %4654 = vmatprep.subr.mxu0 0.0
  %4655 = vmatpush1.msra.mxu0 0.0
  %4656 = vmatprep.subr.mxu0 0.0
  %4657 = vmatpush1.msra.mxu0 0.0
  %4658 = vmatprep.subr.mxu0 0.0
  %4659 = vmatpush1.msra.mxu0 0.0
  %4660 = vmatprep.subr.mxu0 0.0
  %4661 = vmatpush1.msra.mxu0 0.0
  %4662 = vmatprep.subr.mxu0 0.0
  %4663 = vmatpush1.msra.mxu0 0.0
  %4664 = vmatprep.subr.mxu0 0.0
  %4665 = vmatpush1.msra.mxu0 0.0
  %4666 = vmatprep.subr.mxu0 0.0
  %4667 = vmatpush1.msra.mxu0 0.0
  %4668 = vmatprep.subr.mxu0 0.0
  %4669 = vmatpush1.msra.mxu0 0.0
  %4670 = vmatprep.subr.mxu0 0.0
  %4671 = vmatpush1.msra.mxu0 0.0
  %4672 = vmatprep.subr.mxu0 0.0
  %4673 = vmatpush1.msra.mxu0 0.0
  %4674 = vmatprep.subr.mxu0 0.0
  %4675 = vmatpush1.msra.mxu0 0.0
  %4676 = vmatprep.subr.mxu0 0.0
  %4677 = vmatpush1.msra.mxu0 0.0
  %4678 = vmatprep.subr.mxu0 0.0
  %4679 = vmatpush1.msra.mxu0 0.0
  %4680 = vmatprep.subr.mxu0 0.0
  %4681 = vmatpush1.msra.mxu0 0.0
  %4682 = vmatprep.subr.mxu0 0.0
  %4683 = vmatpush1.msra.mxu0 0.0
  %4684 = vmatprep.subr.mxu0 0.0
  %4685 = vmatpush1.msra.mxu0 0.0
  %4686 = vmatprep.subr.mxu0 0.0
  %4687 = vmatpush1.msra.mxu0 0.0
  %4688 = vmatprep.subr.mxu0 0.0
  %4689 = vmatpush1.msra.mxu0 0.0
  %4690 = vmatprep.subr.mxu0 0.0
  %4691 = vmatpush1.msra.mxu0 0.0
  %4692 = vmatprep.subr.mxu0 0.0
  %4693 = vmatpush1.msra.mxu0 0.0
  %4694 = vmatprep.subr.mxu0 0.0
  %4695 = vmatpush1.msra.mxu0 0.0
  %4696 = vmatprep.subr.mxu0 0.0
  %4697 = vmatpush1.msra.mxu0 0.0
  %4698 = vmatprep.subr.mxu0 0.0
  %4699 = vmatpush1.msra.mxu0 0.0
  %4700 = vmatprep.subr.mxu0 0.0
  %4701 = vmatpush1.msra.mxu0 0.0
  %4702 = vmatprep.subr.mxu0 0.0
  %4703 = vmatpush1.msra.mxu0 0.0
  %4704 = vmatprep.subr.mxu0 0.0
  %4705 = vmatpush1.msra.mxu0 0.0
  %4706 = vmatprep.mubr.f32.mxu0 0.0
  %4707 = vmatmul.mubr.f32.gmra.mrb[0].mxu0 %v4640
  %v4708 = vpop.f32.mrb[0].mxu0
  %v4709 = vadd.f32 0.0, %v4708
  %v4710 = vpop.f32.mrb[0].mxu0
  %4711 = vdwg.mxu0
  %4712 = vrot.lane.b32.xlu0 %v3690, 104
  %v4713 = vpop.permute.xlu0 %4712
  %4714 = vrot.lane.b32.xlu0 %v3695, 104
  %v4715 = vpop.permute.xlu0 %4714
  %v4716 = vsel %vm269, %v4713, 0
  %v4718 = vsel %vm269, %v4715, 0
  %4720 = vmatprep.subr.mxu0 0.0
  %4721 = vmatpush1.xpose.msra.mxu0 %v4716
  %4722 = vmatprep.subr.mxu0 0.0
  %4723 = vmatpush1.xpose.msra.mxu0 %v4718
  %4724 = vmatprep.subr.mxu0 0.0
  %4725 = vmatpush1.xpose.msra.mxu0 0.0
  %4726 = vmatprep.subr.mxu0 0.0
  %4727 = vmatpush1.xpose.msra.mxu0 0.0
  %4728 = vmatprep.subr.mxu0 0.0
  %4729 = vmatpush1.xpose.msra.mxu0 0.0
  %4730 = vmatprep.subr.mxu0 0.0
  %4731 = vmatpush1.xpose.msra.mxu0 0.0
  %4732 = vmatprep.subr.mxu0 0.0
  %4733 = vmatpush1.xpose.msra.mxu0 0.0
  %4734 = vmatprep.subr.mxu0 0.0
  %4735 = vmatpush1.xpose.msra.mxu0 0.0
  %4736 = vmatprep.subr.mxu0 0.0
  %4737 = vmatpush1.xpose.msra.mxu0 0.0
  %4738 = vmatprep.subr.mxu0 0.0
  %4739 = vmatpush1.xpose.msra.mxu0 0.0
  %4740 = vmatprep.subr.mxu0 0.0
  %4741 = vmatpush1.xpose.msra.mxu0 0.0
  %4742 = vmatprep.subr.mxu0 0.0
  %4743 = vmatpush1.xpose.msra.mxu0 0.0
  %4744 = vmatprep.subr.mxu0 0.0
  %4745 = vmatpush1.xpose.msra.mxu0 0.0
  %4746 = vmatprep.subr.mxu0 0.0
  %4747 = vmatpush1.xpose.msra.mxu0 0.0
  %4748 = vmatprep.subr.mxu0 0.0
  %4749 = vmatpush1.xpose.msra.mxu0 0.0
  %4750 = vmatprep.subr.mxu0 0.0
  %4751 = vmatpush1.xpose.msra.mxu0 0.0
  %4752 = vmatprep.subr.mxu0 0.0
  %4753 = vmatpush1.xpose.msra.mxu0 0.0
  %4754 = vmatprep.subr.mxu0 0.0
  %4755 = vmatpush1.xpose.msra.mxu0 0.0
  %4756 = vmatprep.subr.mxu0 0.0
  %4757 = vmatpush1.xpose.msra.mxu0 0.0
  %4758 = vmatprep.subr.mxu0 0.0
  %4759 = vmatpush1.xpose.msra.mxu0 0.0
  %4760 = vmatprep.subr.mxu0 0.0
  %4761 = vmatpush1.xpose.msra.mxu0 0.0
  %4762 = vmatprep.subr.mxu0 0.0
  %4763 = vmatpush1.xpose.msra.mxu0 0.0
  %4764 = vmatprep.subr.mxu0 0.0
  %4765 = vmatpush1.xpose.msra.mxu0 0.0
  %4766 = vmatprep.subr.mxu0 0.0
  %4767 = vmatpush1.xpose.msra.mxu0 0.0
  %4768 = vmatprep.subr.mxu0 0.0
  %4769 = vmatpush1.xpose.msra.mxu0 0.0
  %4770 = vmatprep.subr.mxu0 0.0
  %4771 = vmatpush1.xpose.msra.mxu0 0.0
  %4772 = vmatprep.subr.mxu0 0.0
  %4773 = vmatpush1.xpose.msra.mxu0 0.0
  %4774 = vmatprep.subr.mxu0 0.0
  %4775 = vmatpush1.xpose.msra.mxu0 0.0
  %4776 = vmatprep.subr.mxu0 0.0
  %4777 = vmatpush1.xpose.msra.mxu0 0.0
  %4778 = vmatprep.subr.mxu0 0.0
  %4779 = vmatpush1.xpose.msra.mxu0 0.0
  %4780 = vmatprep.subr.mxu0 0.0
  %4781 = vmatpush1.xpose.msra.mxu0 0.0
  %4782 = vmatprep.subr.mxu0 0.0
  %4783 = vmatpush1.xpose.msra.mxu0 0.0
  %4784 = vmatprep.mubr.f32.mxu0 0.0
  %4785 = vmatmul.mubr.f32.gmra.mrb[0].mxu0 %v3103
  %v4786 = vpop.f32.mrb[0].mxu0
  %v4787 = vadd.f32 0.0, %v4786
  %v4788 = vpop.f32.mrb[0].mxu0
  %4789 = vdwg.mxu0
  %4790 = vrot.lane.b32.xlu0 %v3700, 104
  %v4791 = vpop.permute.xlu0 %4790
  %4792 = vrot.lane.b32.xlu0 %v3705, 104
  %v4793 = vpop.permute.xlu0 %4792
  %v4794 = vsel %vm269, %v4791, 0
  %v4796 = vsel %vm269, %v4793, 0
  %4798 = vmatprep.subr.mxu0 0.0
  %4799 = vmatpush1.xpose.msra.mxu0 %v4794
  %4800 = vmatprep.subr.mxu0 0.0
  %4801 = vmatpush1.xpose.msra.mxu0 %v4796
  %4802 = vmatprep.subr.mxu0 0.0
  %4803 = vmatpush1.xpose.msra.mxu0 0.0
  %4804 = vmatprep.subr.mxu0 0.0
  %4805 = vmatpush1.xpose.msra.mxu0 0.0
  %4806 = vmatprep.subr.mxu0 0.0
  %4807 = vmatpush1.xpose.msra.mxu0 0.0
  %4808 = vmatprep.subr.mxu0 0.0
  %4809 = vmatpush1.xpose.msra.mxu0 0.0
  %4810 = vmatprep.subr.mxu0 0.0
  %4811 = vmatpush1.xpose.msra.mxu0 0.0
  %4812 = vmatprep.subr.mxu0 0.0
  %4813 = vmatpush1.xpose.msra.mxu0 0.0
  %4814 = vmatprep.subr.mxu0 0.0
  %4815 = vmatpush1.xpose.msra.mxu0 0.0
  %4816 = vmatprep.subr.mxu0 0.0
  %4817 = vmatpush1.xpose.msra.mxu0 0.0
  %4818 = vmatprep.subr.mxu0 0.0
  %4819 = vmatpush1.xpose.msra.mxu0 0.0
  %4820 = vmatprep.subr.mxu0 0.0
  %4821 = vmatpush1.xpose.msra.mxu0 0.0
  %4822 = vmatprep.subr.mxu0 0.0
  %4823 = vmatpush1.xpose.msra.mxu0 0.0
  %4824 = vmatprep.subr.mxu0 0.0
  %4825 = vmatpush1.xpose.msra.mxu0 0.0
  %4826 = vmatprep.subr.mxu0 0.0
  %4827 = vmatpush1.xpose.msra.mxu0 0.0
  %4828 = vmatprep.subr.mxu0 0.0
  %4829 = vmatpush1.xpose.msra.mxu0 0.0
  %4830 = vmatprep.subr.mxu0 0.0
  %4831 = vmatpush1.xpose.msra.mxu0 0.0
  %4832 = vmatprep.subr.mxu0 0.0
  %4833 = vmatpush1.xpose.msra.mxu0 0.0
  %4834 = vmatprep.subr.mxu0 0.0
  %4835 = vmatpush1.xpose.msra.mxu0 0.0
  %4836 = vmatprep.subr.mxu0 0.0
  %4837 = vmatpush1.xpose.msra.mxu0 0.0
  %4838 = vmatprep.subr.mxu0 0.0
  %4839 = vmatpush1.xpose.msra.mxu0 0.0
  %4840 = vmatprep.subr.mxu0 0.0
  %4841 = vmatpush1.xpose.msra.mxu0 0.0
  %4842 = vmatprep.subr.mxu0 0.0
  %4843 = vmatpush1.xpose.msra.mxu0 0.0
  %4844 = vmatprep.subr.mxu0 0.0
  %4845 = vmatpush1.xpose.msra.mxu0 0.0
  %4846 = vmatprep.subr.mxu0 0.0
  %4847 = vmatpush1.xpose.msra.mxu0 0.0
  %4848 = vmatprep.subr.mxu0 0.0
  %4849 = vmatpush1.xpose.msra.mxu0 0.0
  %4850 = vmatprep.subr.mxu0 0.0
  %4851 = vmatpush1.xpose.msra.mxu0 0.0
  %4852 = vmatprep.subr.mxu0 0.0
  %4853 = vmatpush1.xpose.msra.mxu0 0.0
  %4854 = vmatprep.subr.mxu0 0.0
  %4855 = vmatpush1.xpose.msra.mxu0 0.0
  %4856 = vmatprep.subr.mxu0 0.0
  %4857 = vmatpush1.xpose.msra.mxu0 0.0
  %4858 = vmatprep.subr.mxu0 0.0
  %4859 = vmatpush1.xpose.msra.mxu0 0.0
  %4860 = vmatprep.subr.mxu0 0.0
  %4861 = vmatpush1.xpose.msra.mxu0 0.0
  %4862 = vmatprep.mubr.f32.mxu0 0.0
  %4863 = vmatmul.mubr.f32.gmra.mrb[0].mxu0 %v3185
  %v4864 = vpop.f32.mrb[0].mxu0
  %v4865 = vadd.f32 0.0, %v4864
  %v4866 = vpop.f32.mrb[0].mxu0
  %4867 = vdwg.mxu0
  %v4868 = vsel %vm1609, %v4787, -inf
  %4869 = vmax.xlane.f32.xlu0 %v4868
  %v4870 = vpop.xlane.xlu0 %4869
  %v4871 = vsel %vm1609, %v4865, -inf
  %4872 = vmax.xlane.f32.xlu0 %v4871
  %v4873 = vpop.xlane.xlu0 %4872
  %v4874 = vsub.f32 %v4787, %v4870
  %v4875 = vsub.f32 %v4865, %v4873
  %v4876 = vmul.f32 %v4874, 1.442695
  %v4877 = vpow.pop %v4876
  %v4878 = vmul.f32 %v4875, 1.442695
  %v4879 = vpow.pop %v4878
  %v4880 = vsel %vm1609, %v4877, 0.0
  %4881 = vadd.xlane.f32.xlu0 %v4880
  %v4882 = vpop.xlane.xlu0 %4881
  %v4883 = vsel %vm1609, %v4879, 0.0
  %4884 = vadd.xlane.f32.xlu0 %v4883
  %v4885 = vpop.xlane.xlu0 %4884
  %v4886 = vrcp.pop %v4882
  %v4887 = vmul.f32 %v4877, %v4886
  %v4888 = vrcp.pop %v4885
  %v4889 = vmul.f32 %v4879, %v4888
  %4890 = vrot.lane.b32.xlu0 %v3690, 72
  %v4891 = vpop.permute.xlu0 %4890
  %4892 = vrot.lane.b32.xlu0 %v3695, 72
  %v4893 = vpop.permute.xlu0 %4892
  %v4897 = vsel %vm1609, %v4887, 0
  %4899 = vmatprep.subr.mxu0 0.0
  %4900 = vmatpush1.msra.mxu0 %v4891
  %4901 = vmatprep.subr.mxu0 0.0
  %4902 = vmatpush1.msra.mxu0 %v4893
  %4903 = vmatprep.subr.mxu0 0.0
  %4904 = vmatpush1.msra.mxu0 0.0
  %4905 = vmatprep.subr.mxu0 0.0
  %4906 = vmatpush1.msra.mxu0 0.0
  %4907 = vmatprep.subr.mxu0 0.0
  %4908 = vmatpush1.msra.mxu0 0.0
  %4909 = vmatprep.subr.mxu0 0.0
  %4910 = vmatpush1.msra.mxu0 0.0
  %4911 = vmatprep.subr.mxu0 0.0
  %4912 = vmatpush1.msra.mxu0 0.0
  %4913 = vmatprep.subr.mxu0 0.0
  %4914 = vmatpush1.msra.mxu0 0.0
  %4915 = vmatprep.subr.mxu0 0.0
  %4916 = vmatpush1.msra.mxu0 0.0
  %4917 = vmatprep.subr.mxu0 0.0
  %4918 = vmatpush1.msra.mxu0 0.0
  %4919 = vmatprep.subr.mxu0 0.0
  %4920 = vmatpush1.msra.mxu0 0.0
  %4921 = vmatprep.subr.mxu0 0.0
  %4922 = vmatpush1.msra.mxu0 0.0
  %4923 = vmatprep.subr.mxu0 0.0
  %4924 = vmatpush1.msra.mxu0 0.0
  %4925 = vmatprep.subr.mxu0 0.0
  %4926 = vmatpush1.msra.mxu0 0.0
  %4927 = vmatprep.subr.mxu0 0.0
  %4928 = vmatpush1.msra.mxu0 0.0
  %4929 = vmatprep.subr.mxu0 0.0
  %4930 = vmatpush1.msra.mxu0 0.0
  %4931 = vmatprep.subr.mxu0 0.0
  %4932 = vmatpush1.msra.mxu0 0.0
  %4933 = vmatprep.subr.mxu0 0.0
  %4934 = vmatpush1.msra.mxu0 0.0
  %4935 = vmatprep.subr.mxu0 0.0
  %4936 = vmatpush1.msra.mxu0 0.0
  %4937 = vmatprep.subr.mxu0 0.0
  %4938 = vmatpush1.msra.mxu0 0.0
  %4939 = vmatprep.subr.mxu0 0.0
  %4940 = vmatpush1.msra.mxu0 0.0
  %4941 = vmatprep.subr.mxu0 0.0
  %4942 = vmatpush1.msra.mxu0 0.0
  %4943 = vmatprep.subr.mxu0 0.0
  %4944 = vmatpush1.msra.mxu0 0.0
  %4945 = vmatprep.subr.mxu0 0.0
  %4946 = vmatpush1.msra.mxu0 0.0
  %4947 = vmatprep.subr.mxu0 0.0
  %4948 = vmatpush1.msra.mxu0 0.0
  %4949 = vmatprep.subr.mxu0 0.0
  %4950 = vmatpush1.msra.mxu0 0.0
  %4951 = vmatprep.subr.mxu0 0.0
  %4952 = vmatpush1.msra.mxu0 0.0
  %4953 = vmatprep.subr.mxu0 0.0
  %4954 = vmatpush1.msra.mxu0 0.0
  %4955 = vmatprep.subr.mxu0 0.0
  %4956 = vmatpush1.msra.mxu0 0.0
  %4957 = vmatprep.subr.mxu0 0.0
  %4958 = vmatpush1.msra.mxu0 0.0
  %4959 = vmatprep.subr.mxu0 0.0
  %4960 = vmatpush1.msra.mxu0 0.0
  %4961 = vmatprep.subr.mxu0 0.0
  %4962 = vmatpush1.msra.mxu0 0.0
  %4963 = vmatprep.mubr.f32.mxu0 0.0
  %4964 = vmatmul.mubr.f32.gmra.mrb[0].mxu0 %v4897
  %v4965 = vpop.f32.mrb[0].mxu0
  %v4966 = vadd.f32 0.0, %v4965
  %v4967 = vpop.f32.mrb[0].mxu0
  %4968 = vdwg.mxu0
  %4969 = vrot.lane.b32.xlu0 %v3700, 72
  %v4970 = vpop.permute.xlu0 %4969
  %4971 = vrot.lane.b32.xlu0 %v3705, 72
  %v4972 = vpop.permute.xlu0 %4971
  %v4976 = vsel %vm1609, %v4889, 0
  %4978 = vmatprep.subr.mxu0 0.0
  %4979 = vmatpush1.msra.mxu0 %v4970
  %4980 = vmatprep.subr.mxu0 0.0
  %4981 = vmatpush1.msra.mxu0 %v4972
  %4982 = vmatprep.subr.mxu0 0.0
  %4983 = vmatpush1.msra.mxu0 0.0
  %4984 = vmatprep.subr.mxu0 0.0
  %4985 = vmatpush1.msra.mxu0 0.0
  %4986 = vmatprep.subr.mxu0 0.0
  %4987 = vmatpush1.msra.mxu0 0.0
  %4988 = vmatprep.subr.mxu0 0.0
  %4989 = vmatpush1.msra.mxu0 0.0
  %4990 = vmatprep.subr.mxu0 0.0
  %4991 = vmatpush1.msra.mxu0 0.0
  %4992 = vmatprep.subr.mxu0 0.0
  %4993 = vmatpush1.msra.mxu0 0.0
  %4994 = vmatprep.subr.mxu0 0.0
  %4995 = vmatpush1.msra.mxu0 0.0
  %4996 = vmatprep.subr.mxu0 0.0
  %4997 = vmatpush1.msra.mxu0 0.0
  %4998 = vmatprep.subr.mxu0 0.0
  %4999 = vmatpush1.msra.mxu0 0.0
  %5000 = vmatprep.subr.mxu0 0.0
  %5001 = vmatpush1.msra.mxu0 0.0
  %5002 = vmatprep.subr.mxu0 0.0
  %5003 = vmatpush1.msra.mxu0 0.0
  %5004 = vmatprep.subr.mxu0 0.0
  %5005 = vmatpush1.msra.mxu0 0.0
  %5006 = vmatprep.subr.mxu0 0.0
  %5007 = vmatpush1.msra.mxu0 0.0
  %5008 = vmatprep.subr.mxu0 0.0
  %5009 = vmatpush1.msra.mxu0 0.0
  %5010 = vmatprep.subr.mxu0 0.0
  %5011 = vmatpush1.msra.mxu0 0.0
  %5012 = vmatprep.subr.mxu0 0.0
  %5013 = vmatpush1.msra.mxu0 0.0
  %5014 = vmatprep.subr.mxu0 0.0
  %5015 = vmatpush1.msra.mxu0 0.0
  %5016 = vmatprep.subr.mxu0 0.0
  %5017 = vmatpush1.msra.mxu0 0.0
  %5018 = vmatprep.subr.mxu0 0.0
  %5019 = vmatpush1.msra.mxu0 0.0
  %5020 = vmatprep.subr.mxu0 0.0
  %5021 = vmatpush1.msra.mxu0 0.0
  %5022 = vmatprep.subr.mxu0 0.0
  %5023 = vmatpush1.msra.mxu0 0.0
  %5024 = vmatprep.subr.mxu0 0.0
  %5025 = vmatpush1.msra.mxu0 0.0
  %5026 = vmatprep.subr.mxu0 0.0
  %5027 = vmatpush1.msra.mxu0 0.0
  %5028 = vmatprep.subr.mxu0 0.0
  %5029 = vmatpush1.msra.mxu0 0.0
  %5030 = vmatprep.subr.mxu0 0.0
  %5031 = vmatpush1.msra.mxu0 0.0
  %5032 = vmatprep.subr.mxu0 0.0
  %5033 = vmatpush1.msra.mxu0 0.0
  %5034 = vmatprep.subr.mxu0 0.0
  %5035 = vmatpush1.msra.mxu0 0.0
  %5036 = vmatprep.subr.mxu0 0.0
  %5037 = vmatpush1.msra.mxu0 0.0
  %5038 = vmatprep.subr.mxu0 0.0
  %5039 = vmatpush1.msra.mxu0 0.0
  %5040 = vmatprep.subr.mxu0 0.0
  %5041 = vmatpush1.msra.mxu0 0.0
  %5042 = vmatprep.mubr.f32.mxu0 0.0
  %5043 = vmatmul.mubr.f32.gmra.mrb[0].mxu0 %v4976
  %v5044 = vpop.f32.mrb[0].mxu0
  %v5045 = vadd.f32 0.0, %v5044
  %v5046 = vpop.f32.mrb[0].mxu0
  %5047 = vdwg.mxu0
  %5050 = vrot.lane.b32.xlu0 %v4294, 8
  %v5051 = vpop.permute.xlu0 %5050
  %5052 = vrot.lane.b32.xlu0 %v4373, 8
  %v5053 = vpop.permute.xlu0 %5052
  %5058 = vrot.lane.b32.xlu0 %v4630, 16
  %v5059 = vpop.permute.xlu0 %5058
  %5060 = vrot.lane.b32.xlu0 %v4709, 16
  %v5061 = vpop.permute.xlu0 %5060
  %5066 = vrot.lane.b32.xlu0 %v4966, 24
  %v5067 = vpop.permute.xlu0 %5066
  %5068 = vrot.lane.b32.xlu0 %v5045, 24
  %v5069 = vpop.permute.xlu0 %5068
  %v5072 = vsel %vm269, %v3958, %v5051
  %v5073 = vsel %vm269, %v4037, %v5053
  %v5074 = vsel %vm1609, %v5072, %v5059
  %v5075 = vsel %vm1609, %v5073, %v5061
  %v5076 = vsel %vm1612, %v5074, %v5067
  %v5077 = vsel %vm1612, %v5075, %v5069
  %v5079 = vsel %vm82, %v5076, 0
  %v5082 = vsel %vm82, %v5077, 0
  %5084 = vmatprep.subr.mxu0 0.0
  %5085 = vmatpush1.msra.mxu0 %v3472
  %5086 = vmatprep.subr.mxu0 0.0
  %5087 = vmatpush1.msra.mxu0 %v3474
  %5088 = vmatprep.subr.mxu0 0.0
  %5089 = vmatpush1.msra.mxu0 %v3476
  %5090 = vmatprep.subr.mxu0 0.0
  %5091 = vmatpush1.msra.mxu0 %v3478
  %5092 = vmatprep.subr.mxu0 0.0
  %5093 = vmatpush1.msra.mxu0 0.0
  %5094 = vmatprep.subr.mxu0 0.0
  %5095 = vmatpush1.msra.mxu0 0.0
  %5096 = vmatprep.subr.mxu0 0.0
  %5097 = vmatpush1.msra.mxu0 0.0
  %5098 = vmatprep.subr.mxu0 0.0
  %5099 = vmatpush1.msra.mxu0 0.0
  %5100 = vmatprep.subr.mxu0 0.0
  %5101 = vmatpush1.msra.mxu0 0.0
  %5102 = vmatprep.subr.mxu0 0.0
  %5103 = vmatpush1.msra.mxu0 0.0
  %5104 = vmatprep.subr.mxu0 0.0
  %5105 = vmatpush1.msra.mxu0 0.0
  %5106 = vmatprep.subr.mxu0 0.0
  %5107 = vmatpush1.msra.mxu0 0.0
  %5108 = vmatprep.subr.mxu0 0.0
  %5109 = vmatpush1.msra.mxu0 0.0
  %5110 = vmatprep.subr.mxu0 0.0
  %5111 = vmatpush1.msra.mxu0 0.0
  %5112 = vmatprep.subr.mxu0 0.0
  %5113 = vmatpush1.msra.mxu0 0.0
  %5114 = vmatprep.subr.mxu0 0.0
  %5115 = vmatpush1.msra.mxu0 0.0
  %5116 = vmatprep.subr.mxu0 0.0
  %5117 = vmatpush1.msra.mxu0 0.0
  %5118 = vmatprep.subr.mxu0 0.0
  %5119 = vmatpush1.msra.mxu0 0.0
  %5120 = vmatprep.subr.mxu0 0.0
  %5121 = vmatpush1.msra.mxu0 0.0
  %5122 = vmatprep.subr.mxu0 0.0
  %5123 = vmatpush1.msra.mxu0 0.0
  %5124 = vmatprep.subr.mxu0 0.0
  %5125 = vmatpush1.msra.mxu0 0.0
  %5126 = vmatprep.subr.mxu0 0.0
  %5127 = vmatpush1.msra.mxu0 0.0
  %5128 = vmatprep.subr.mxu0 0.0
  %5129 = vmatpush1.msra.mxu0 0.0
  %5130 = vmatprep.subr.mxu0 0.0
  %5131 = vmatpush1.msra.mxu0 0.0
  %5132 = vmatprep.subr.mxu0 0.0
  %5133 = vmatpush1.msra.mxu0 0.0
  %5134 = vmatprep.subr.mxu0 0.0
  %5135 = vmatpush1.msra.mxu0 0.0
  %5136 = vmatprep.subr.mxu0 0.0
  %5137 = vmatpush1.msra.mxu0 0.0
  %5138 = vmatprep.subr.mxu0 0.0
  %5139 = vmatpush1.msra.mxu0 0.0
  %5140 = vmatprep.subr.mxu0 0.0
  %5141 = vmatpush1.msra.mxu0 0.0
  %5142 = vmatprep.subr.mxu0 0.0
  %5143 = vmatpush1.msra.mxu0 0.0
  %5144 = vmatprep.subr.mxu0 0.0
  %5145 = vmatpush1.msra.mxu0 0.0
  %5146 = vmatprep.subr.mxu0 0.0
  %5147 = vmatpush1.msra.mxu0 0.0
  %5148 = vmatprep.mubr.f32.mxu0 0.0
  %5149 = vmatmul.mubr.f32.gmra.mrb[0].mxu0 %v5079
  %v5150 = vpop.f32.mrb[0].mxu0
  %v5151 = vadd.f32 %v3484, %v5150
  %v5152 = vpop.f32.mrb[0].mxu0
  %5153 = vmatprep.mubr.f32.mxu0 0.0
  %5154 = vmatmul.mubr.f32.gmra.mrb[0].mxu0 %v5082
  %v5155 = vpop.f32.mrb[0].mxu0
  %v5156 = vadd.f32 %v3484, %v5155
  %v5157 = vpop.f32.mrb[0].mxu0
  %5158 = vdwg.mxu0
  %v5159 = vadd.f32 %v1750, %v5151
  %v5160 = vadd.f32 %v1751, %v5156
  %v5161 = vsel %vm82, %v5159, 0.0
  %5162 = vadd.xlane.f32.xlu0 %v5161
  %v5163 = vpop.xlane.xlu0 %5162
  %v5164 = vsel %vm82, %v5160, 0.0
  %5165 = vadd.xlane.f32.xlu0 %v5164
  %v5166 = vpop.xlane.xlu0 %5165
  %v5167 = vmul.f32 %v5163, %v1719
  %v5168 = vmul.f32 %v5166, %v1719
  %v5169 = vsub.f32 %v5159, %v5167
  %v5170 = vsub.f32 %v5160, %v5168
  %v5171 = vmul.f32 %v5169, %v5169
  %v5172 = vmul.f32 %v5170, %v5170
  %v5173 = vsel %vm82, %v5171, 0.0
  %5174 = vadd.xlane.f32.xlu0 %v5173
  %v5175 = vpop.xlane.xlu0 %5174
  %v5176 = vsel %vm82, %v5172, 0.0
  %5177 = vadd.xlane.f32.xlu0 %v5176
  %v5178 = vpop.xlane.xlu0 %5177
  %v5179 = vmul.f32 %v5175, %v1719
  %v5180 = vmul.f32 %v5178, %v1719
  %v5181 = vadd.f32 %v5179, 1e-05
  %v5182 = vadd.f32 %v5180, 1e-05
  %v5183 = vrsqrt.pop %v5181
  %v5184 = vrsqrt.pop %v5182
  %v5185 = vmul.f32 %v5169, %v5183
  %v5186 = vmul.f32 %v5170, %v5184
  %v5187 = vmul.f32 %v5185, %v3598
  %v5188 = vmul.f32 %v5186, %v3598
  %v5189 = vadd.f32 %v5187, %v3604
  %v5190 = vadd.f32 %v5188, %v3604
  %v5191 = vadd.f32 %v3605, %v5189
  %v5192 = vadd.f32 %v3606, %v5190
  %v5193 = vlaneseq
  %v5194 = vshrl.u32 %v5193, 7
  %v5195 = vsub.s32 0, %v5194
  %v5196 = vrot.slane %v61, %v5195
  %v5198 = vsel %vm82, %v5191, 0
  %v5201 = vsel %vm82, %v5192, 0
  %5203 = vmatprep.subr.mxu0 0.0
  %5204 = vmatpush1.msra.mxu0 %v57
  %5205 = vmatprep.subr.mxu0 0.0
  %5206 = vmatpush1.msra.mxu0 %v58
  %5207 = vmatprep.subr.mxu0 0.0
  %5208 = vmatpush1.msra.mxu0 %v59
  %5209 = vmatprep.subr.mxu0 0.0
  %5210 = vmatpush1.msra.mxu0 %v60
  %5211 = vmatprep.subr.mxu0 0.0
  %5212 = vmatpush1.msra.mxu0 0.0
  %5213 = vmatprep.subr.mxu0 0.0
  %5214 = vmatpush1.msra.mxu0 0.0
  %5215 = vmatprep.subr.mxu0 0.0
  %5216 = vmatpush1.msra.mxu0 0.0
  %5217 = vmatprep.subr.mxu0 0.0
  %5218 = vmatpush1.msra.mxu0 0.0
  %5219 = vmatprep.subr.mxu0 0.0
  %5220 = vmatpush1.msra.mxu0 0.0
  %5221 = vmatprep.subr.mxu0 0.0
  %5222 = vmatpush1.msra.mxu0 0.0
  %5223 = vmatprep.subr.mxu0 0.0
  %5224 = vmatpush1.msra.mxu0 0.0
  %5225 = vmatprep.subr.mxu0 0.0
  %5226 = vmatpush1.msra.mxu0 0.0
  %5227 = vmatprep.subr.mxu0 0.0
  %5228 = vmatpush1.msra.mxu0 0.0
  %5229 = vmatprep.subr.mxu0 0.0
  %5230 = vmatpush1.msra.mxu0 0.0
  %5231 = vmatprep.subr.mxu0 0.0
  %5232 = vmatpush1.msra.mxu0 0.0
  %5233 = vmatprep.subr.mxu0 0.0
  %5234 = vmatpush1.msra.mxu0 0.0
  %5235 = vmatprep.subr.mxu0 0.0
  %5236 = vmatpush1.msra.mxu0 0.0
  %5237 = vmatprep.subr.mxu0 0.0
  %5238 = vmatpush1.msra.mxu0 0.0
  %5239 = vmatprep.subr.mxu0 0.0
  %5240 = vmatpush1.msra.mxu0 0.0
  %5241 = vmatprep.subr.mxu0 0.0
  %5242 = vmatpush1.msra.mxu0 0.0
  %5243 = vmatprep.subr.mxu0 0.0
  %5244 = vmatpush1.msra.mxu0 0.0
  %5245 = vmatprep.subr.mxu0 0.0
  %5246 = vmatpush1.msra.mxu0 0.0
  %5247 = vmatprep.subr.mxu0 0.0
  %5248 = vmatpush1.msra.mxu0 0.0
  %5249 = vmatprep.subr.mxu0 0.0
  %5250 = vmatpush1.msra.mxu0 0.0
  %5251 = vmatprep.subr.mxu0 0.0
  %5252 = vmatpush1.msra.mxu0 0.0
  %5253 = vmatprep.subr.mxu0 0.0
  %5254 = vmatpush1.msra.mxu0 0.0
  %5255 = vmatprep.subr.mxu0 0.0
  %5256 = vmatpush1.msra.mxu0 0.0
  %5257 = vmatprep.subr.mxu0 0.0
  %5258 = vmatpush1.msra.mxu0 0.0
  %5259 = vmatprep.subr.mxu0 0.0
  %5260 = vmatpush1.msra.mxu0 0.0
  %5261 = vmatprep.subr.mxu0 0.0
  %5262 = vmatpush1.msra.mxu0 0.0
  %5263 = vmatprep.subr.mxu0 0.0
  %5264 = vmatpush1.msra.mxu0 0.0
  %5265 = vmatprep.subr.mxu0 0.0
  %5266 = vmatpush1.msra.mxu0 0.0
  %5267 = vmatprep.mubr.f32.mxu0 0.0
  %5268 = vmatmul.mubr.f32.gmra.mrb[0].mxu0 %v5198
  %v5269 = vpop.f32.mrb[0].mxu0
  %v5270 = vadd.f32 %v5196, %v5269
  %v5271 = vpop.f32.mrb[0].mxu0
  %5272 = vmatprep.mubr.f32.mxu0 0.0
  %5273 = vmatmul.mubr.f32.gmra.mrb[0].mxu0 %v5201
  %v5274 = vpop.f32.mrb[0].mxu0
  %v5275 = vadd.f32 %v5196, %v5274
  %v5276 = vpop.f32.mrb[0].mxu0
  %5277 = vdwg.mxu0
  %v5278 = vmax.f32 %v5270, 0.0
  %v5279 = vmax.f32 %v5275, 0.0
  %v5280 = vlaneseq
  %v5281 = vshrl.u32 %v5280, 7
  %v5282 = vsub.s32 0, %v5281
  %v5283 = vrot.slane %v70, %v5282
  %vm5284 = vcmask 523264
  %v5286 = vsel %vm5284, %v5278, 0
  %v5289 = vsel %vm5284, %v5279, 0
  %5291 = vmatprep.subr.mxu0 0.0
  %5292 = vmatpush1.msra.mxu0 %v62
  %5293 = vmatprep.subr.mxu0 0.0
  %5294 = vmatpush1.msra.mxu0 %v63
  %5295 = vmatprep.subr.mxu0 0.0
  %5296 = vmatpush1.msra.mxu0 %v64
  %5297 = vmatprep.subr.mxu0 0.0
  %5298 = vmatpush1.msra.mxu0 %v65
  %5299 = vmatprep.subr.mxu0 0.0
  %5300 = vmatpush1.msra.mxu0 %v66
  %5301 = vmatprep.subr.mxu0 0.0
  %5302 = vmatpush1.msra.mxu0 %v67
  %5303 = vmatprep.subr.mxu0 0.0
  %5304 = vmatpush1.msra.mxu0 %v68
  %5305 = vmatprep.subr.mxu0 0.0
  %5306 = vmatpush1.msra.mxu0 %v69
  %5307 = vmatprep.subr.mxu0 0.0
  %5308 = vmatpush1.msra.mxu0 0.0
  %5309 = vmatprep.subr.mxu0 0.0
  %5310 = vmatpush1.msra.mxu0 0.0
  %5311 = vmatprep.subr.mxu0 0.0
  %5312 = vmatpush1.msra.mxu0 0.0
  %5313 = vmatprep.subr.mxu0 0.0
  %5314 = vmatpush1.msra.mxu0 0.0
  %5315 = vmatprep.subr.mxu0 0.0
  %5316 = vmatpush1.msra.mxu0 0.0
  %5317 = vmatprep.subr.mxu0 0.0
  %5318 = vmatpush1.msra.mxu0 0.0
  %5319 = vmatprep.subr.mxu0 0.0
  %5320 = vmatpush1.msra.mxu0 0.0
  %5321 = vmatprep.subr.mxu0 0.0
  %5322 = vmatpush1.msra.mxu0 0.0
  %5323 = vmatprep.subr.mxu0 0.0
  %5324 = vmatpush1.msra.mxu0 0.0
  %5325 = vmatprep.subr.mxu0 0.0
  %5326 = vmatpush1.msra.mxu0 0.0
  %5327 = vmatprep.subr.mxu0 0.0
  %5328 = vmatpush1.msra.mxu0 0.0
  %5329 = vmatprep.subr.mxu0 0.0
  %5330 = vmatpush1.msra.mxu0 0.0
  %5331 = vmatprep.subr.mxu0 0.0
  %5332 = vmatpush1.msra.mxu0 0.0
  %5333 = vmatprep.subr.mxu0 0.0
  %5334 = vmatpush1.msra.mxu0 0.0
  %5335 = vmatprep.subr.mxu0 0.0
  %5336 = vmatpush1.msra.mxu0 0.0
  %5337 = vmatprep.subr.mxu0 0.0
  %5338 = vmatpush1.msra.mxu0 0.0
  %5339 = vmatprep.subr.mxu0 0.0
  %5340 = vmatpush1.msra.mxu0 0.0
  %5341 = vmatprep.subr.mxu0 0.0
  %5342 = vmatpush1.msra.mxu0 0.0
  %5343 = vmatprep.subr.mxu0 0.0
  %5344 = vmatpush1.msra.mxu0 0.0
  %5345 = vmatprep.subr.mxu0 0.0
  %5346 = vmatpush1.msra.mxu0 0.0
  %5347 = vmatprep.subr.mxu0 0.0
  %5348 = vmatpush1.msra.mxu0 0.0
  %5349 = vmatprep.subr.mxu0 0.0
  %5350 = vmatpush1.msra.mxu0 0.0
  %5351 = vmatprep.subr.mxu0 0.0
  %5352 = vmatpush1.msra.mxu0 0.0
  %5353 = vmatprep.subr.mxu0 0.0
  %5354 = vmatpush1.msra.mxu0 0.0
  %5355 = vmatprep.mubr.f32.mxu0 0.0
  %5356 = vmatmul.mubr.f32.gmra.mrb[0].mxu0 %v5286
  %v5357 = vpop.f32.mrb[0].mxu0
  %v5358 = vadd.f32 %v5283, %v5357
  %v5359 = vpop.f32.mrb[0].mxu0
  %5360 = vmatprep.mubr.f32.mxu0 0.0
  %5361 = vmatmul.mubr.f32.gmra.mrb[0].mxu0 %v5289
  %v5362 = vpop.f32.mrb[0].mxu0
  %v5363 = vadd.f32 %v5283, %v5362
  %v5364 = vpop.f32.mrb[0].mxu0
  %5365 = vdwg.mxu0
  %v5366 = vadd.f32 %v5191, %v5358
  %v5367 = vadd.f32 %v5192, %v5363
  %v5368 = vsel %vm82, %v5366, 0.0
  %5369 = vadd.xlane.f32.xlu0 %v5368
  %v5370 = vpop.xlane.xlu0 %5369
  %v5371 = vsel %vm82, %v5367, 0.0
  %5372 = vadd.xlane.f32.xlu0 %v5371
  %v5373 = vpop.xlane.xlu0 %5372
  %v5374 = vmul.f32 %v5370, %v1719
  %v5375 = vmul.f32 %v5373, %v1719
  %v5376 = vsub.f32 %v5366, %v5374
  %v5377 = vsub.f32 %v5367, %v5375
  %v5378 = vmul.f32 %v5376, %v5376
  %v5379 = vmul.f32 %v5377, %v5377
  %v5380 = vsel %vm82, %v5378, 0.0
  %5381 = vadd.xlane.f32.xlu0 %v5380
  %v5382 = vpop.xlane.xlu0 %5381
  %v5383 = vsel %vm82, %v5379, 0.0
  %5384 = vadd.xlane.f32.xlu0 %v5383
  %v5385 = vpop.xlane.xlu0 %5384
  %v5386 = vmul.f32 %v5382, %v1719
  %v5387 = vmul.f32 %v5385, %v1719
  %v5388 = vadd.f32 %v5386, 1e-05
  %v5389 = vadd.f32 %v5387, 1e-05
  %v5390 = vrsqrt.pop %v5388
  %v5391 = vrsqrt.pop %v5389
  %v5392 = vmul.f32 %v5376, %v5390
  %v5393 = vmul.f32 %v5377, %v5391
  %v5394 = vlaneseq
  %v5395 = vshrl.u32 %v5394, 7
  %v5396 = vsub.s32 4, %v5395
  %v5397 = vrot.slane %v71, %v5396
  %v5398 = vmul.f32 %v5392, %v5397
  %v5399 = vmul.f32 %v5393, %v5397
  %v5400 = vlaneseq
  %v5401 = vshrl.u32 %v5400, 7
  %v5402 = vsub.s32 5, %v5401
  %v5403 = vrot.slane %v71, %v5402
  %v5404 = vadd.f32 %v5398, %v5403
  %v5405 = vadd.f32 %v5399, %v5403
  %5406 = vst.msk [vmem:[%s12] sm:$0xff] %vm82, %v5404
  %5407 = vst.msk [vmem:[%s12 + $0x8] sm:$0xff] %vm82, %v5405
  // Predicated region
  $region50: #{transformer_decoder_layer.1} parent=0 // pred_check
    _
  $region51: #{transformer_decoder_layer.1} parent=0 // pred_check_branch
    %5409 = sbr.rel (0) target = $region53
  $region52: #{transformer_decoder_layer.1} parent=0 // pred_region
    _
  $region53: #{transformer_decoder_layer.1} parent=0 // pred_fallthru
    _
  // Predicated region
  $region54: #{transformer_decoder_layer.1} parent=0 // pred_check
    _
  $region55: #{transformer_decoder_layer.1} parent=0 // pred_check_branch
    %5411 = sbr.rel (0) target = $region57
  $region56: #{transformer_decoder_layer.1} parent=0 // pred_region
    _
  $region57: #{transformer_decoder_layer.1} parent=0 // pred_fallthru
    _

</llo_original>
